<compile_context>
chip_gen: v7x
topology: tpu7x:2x2x1
jax: 0.10.0
libtpu: 0.0.40
codegen_flags: <defaults>
</compile_context>

<pallas_src>
import functools

import jax
import jax.numpy as jnp
from jax.experimental import pallas as pl
from jax.experimental.pallas import tpu as pltpu

H = 128        # LSTM hidden size (fixed by the module)
IN_FEAT = 20   # lstm_1 input feature size (fixed by the module)


def _gates_to_hc(gates, c):
    """PyTorch LSTM gate math (order i, f, g, o). gates: [BN, 4H] f32."""
    i = jax.nn.sigmoid(gates[:, 0 * H:1 * H])
    f = jax.nn.sigmoid(gates[:, 1 * H:2 * H])
    g = jnp.tanh(gates[:, 2 * H:3 * H])
    o = jax.nn.sigmoid(gates[:, 3 * H:4 * H])
    c_new = f * c + i * g
    h_new = o * jnp.tanh(c_new)
    return h_new, c_new


def metalearner_kernel(x_ref,            # [T, BN, 20]   f32 (time-major)
                       wih1_ref,         # [20, 4H]      bf16
                       b1_ref,           # [1, 4H]       f32  (bih1 + bhh1)
                       whh1_ref,         # [H, 4H]       bf16
                       w2s_ref,          # [2H, 4H]      bf16 (vstack Wih2^T, Whh2^T)
                       b2_ref,           # [1, 4H]       f32  (bih2 + bhh2)
                       wo_ref,           # [H, Cp]       bf16 (folded, lane-padded)
                       bo_ref,           # [1, Cp]       f32  (folded, -1e30 pad)
                       out_ref,          # [BN, Cp]      f32
                       *, fuse_layer2):
    T, BN, F = x_ref.shape
    bf16, f32 = jnp.bfloat16, jnp.float32

    # ---- hoisted layer-1 input projection: one M=T*BN GEMM, bias folded ----
    x_flat = x_ref[...].reshape(T * BN, F).astype(bf16)
    gx1 = (jnp.dot(x_flat, wih1_ref[...], preferred_element_type=f32)
           + b1_ref[...]).reshape(T, BN, 4 * H)        # [T, BN, 4H] f32

    h1 = jnp.zeros((BN, H), f32)
    c1 = jnp.zeros((BN, H), f32)
    h2 = jnp.zeros((BN, H), f32)
    c2 = jnp.zeros((BN, H), f32)

    # T is small and static -> fully unrolled recurrence.  Weight refs and
    # biases are indexed per step (not hoisted) to keep live ranges short; the
    # weights are VMEM-resident, so the re-load is essentially free.
    for t in range(T):
        # layer 1: only the recurrent matmul (K=128) is on the serial chain.
        g1 = gx1[t] + jnp.dot(h1.astype(bf16), whh1_ref[...],
                              preferred_element_type=f32)
        h1, c1 = _gates_to_hc(g1, c1)

        if fuse_layer2:
            # v6e/v7x: fused input+recurrent matmul, K = 2H = 256 -> one pass
            # through the 256-deep MXU.
            hcat = jnp.concatenate(
                [h1.astype(bf16), h2.astype(bf16)], axis=1)
            g2 = (jnp.dot(hcat, w2s_ref[...], preferred_element_type=f32)
                  + b2_ref[...])
        else:
            # v5-generation (128-deep MXU): two K=128 dots, no per-step concat
            # copy on the serial critical path.
            g2 = (jnp.dot(h1.astype(bf16), w2s_ref[0:H, :],
                          preferred_element_type=f32)
                  + jnp.dot(h2.astype(bf16), w2s_ref[H:2 * H, :],
                            preferred_element_type=f32)
                  + b2_ref[...])
        h2, c2 = _gates_to_hc(g2, c2)

    # Folded, lane-padded epilogue: (h2 @ Wh^T + bh) @ Wt^T + bt == h2 @ Wo + bo
    # Padded columns: Wo == 0, bo == -1e30  =>  exp(pad - m) == 0, so the
    # log-softmax over the real C columns is unchanged.
    logits = (jnp.dot(h2.astype(bf16), wo_ref[...],
                      preferred_element_type=f32) + bo_ref[...])
    m = jnp.max(logits, axis=1, keepdims=True)
    lse = m + jnp.log(jnp.sum(jnp.exp(logits - m), axis=1, keepdims=True))
    out_ref[...] = (logits - lse).astype(out_ref.dtype)   # full unmasked vst


def _tpu_generation():
    """Best-effort TPU generation from device_kind; 0 if unknown."""
    try:
        kind = jax.devices()[0].device_kind.lower()
    except Exception:
        return 0
    for g in (7, 6, 5, 4, 3):
        if f"v{g}" in kind:
            return g
    return 0


def _pick_block_n(n, gen):
    """Batch block size.

    Single block (no grid) for typical MAML batch sizes on every chip:
    v5e/v6e have one TensorCore (a grid is a serial loop over an already
    latency-bound recurrence), and on v7x sharding a tiny batch across the two
    cores buys nothing since MXU latency is ~independent of M for M <= 128.
    Split only when each block still fills >= 128 MXU rows (or, on single-TC
    chips, to bound vreg pressure of the fully unrolled time loop).
    """
    if n >= 256 and n % 128 == 0:
        return 128
    return n


def metalearner_forward(x, params, *, block_n=None):
    """Wrapper: weight prep (transpose/stack/fold/pad/bf16-cast) + pallas_call.

    For real MAML workloads, fold as many tasks/episodes as possible into the
    batch axis per launch; blocks are only introduced for large N.
    """
    N, T, F = x.shape
    C = params["wt"].shape[0]
    f32, bf16 = jnp.float32, jnp.bfloat16

    gen = _tpu_generation()
    fuse_layer2 = (gen == 0) or (gen >= 6)   # 256-deep MXU on v6e/v7x

    if block_n is None:
        block_n = _pick_block_n(N, gen)
    if N % block_n:
        block_n = N
    n_blocks = N // block_n

    # Lane-dense output width (multiple of 128 covering C).
    C_pad = max(128, ((C + 127) // 128) * 128)

    # time-major input so per-step access in the kernel is a leading-axis view
    x_tm = jnp.transpose(x.astype(f32), (1, 0, 2))              # [T, N, 20]

    wih1_t = params["wih1"].T.astype(bf16)                      # [20, 4H]
    b1 = (params["bih1"] + params["bhh1"])[None, :].astype(f32)
    whh1_t = params["whh1"].T.astype(bf16)                      # [H, 4H]
    # layer-2 stacked (input || recurrent) weights
    w2s = jnp.concatenate([params["wih2"].T, params["whh2"].T],
                          axis=0).astype(bf16)                  # [2H, 4H]
    b2 = (params["bih2"] + params["bhh2"])[None, :].astype(f32)
    # fold the two output Linears (exact; no activation between them), then
    # pad to C_pad lanes: zero weight columns, -1e30 bias columns.
    wo_f = params["wh"].T @ params["wt"].T                      # [H, C] f32
    bo_f = params["bh"] @ params["wt"].T + params["bt"]         # [C]    f32
    wo = jnp.zeros((H, C_pad), f32).at[:, :C].set(wo_f).astype(bf16)
    bo = jnp.full((1, C_pad), -1e30, f32).at[0, :C].set(bo_f)

    kernel = functools.partial(metalearner_kernel, fuse_layer2=fuse_layer2)

    cost = pl.CostEstimate(
        flops=2 * N * T * (IN_FEAT + 3 * H) * 4 * H + 2 * N * H * C_pad,
        transcendentals=N * (T * 2 * 5 * H + C_pad),
        bytes_accessed=(x_tm.size * 4
                        + (wih1_t.size + whh1_t.size + w2s.size + wo.size) * 2
                        + (b1.size + b2.size + bo.size) * 4
                        + N * C_pad * 4),
    )

    args = (x_tm, wih1_t, b1, whh1_t, w2s, b2, wo, bo)
    out_shape = jax.ShapeDtypeStruct((N, C_pad), f32)

    if n_blocks == 1:
        # No grid at all: whole arrays VMEM-resident, no pipelining machinery.
        out_pad = pl.pallas_call(
            kernel, out_shape=out_shape, cost_estimate=cost)(*args)
    else:
        def resident(arr):  # full-array block, constant index -> stays in VMEM
            nd = arr.ndim
            return pl.BlockSpec(arr.shape, lambda i, _n=nd: (0,) * _n)

        in_specs = [
            pl.BlockSpec((T, block_n, F), lambda i: (0, i, 0)),  # x, blocked on N
            resident(wih1_t), resident(b1), resident(whh1_t),
            resident(w2s), resident(b2), resident(wo), resident(bo),
        ]
        out_pad = pl.pallas_call(
            kernel,
            out_shape=out_shape,
            grid=(n_blocks,),
            in_specs=in_specs,
            out_specs=pl.BlockSpec((block_n, C_pad), lambda i: (i, 0)),
            compiler_params=pltpu.CompilerParams(
                dimension_semantics=("parallel",)),
            cost_estimate=cost,
        )(*args)

    return out_pad[:, :C]


# ----------------------------------------------------------------------------
# Deterministic parameter init (same shapes as the PyTorch module) + reference.
# ----------------------------------------------------------------------------
def init_params(key, num_classes):
    ks = jax.random.split(key, 12)
    u = lambda k, shape, s: jax.random.uniform(k, shape, jnp.float32, -s, s)
    s = 1.0 / jnp.sqrt(jnp.float32(H))
    return {
        # lstm_1: input 20 -> hidden 128
        "wih1": u(ks[0], (4 * H, IN_FEAT), s),
        "whh1": u(ks[1], (4 * H, H), s),
        "bih1": u(ks[2], (4 * H,), s),
        "bhh1": u(ks[3], (4 * H,), s),
        # lstm_2: 128 -> 128
        "wih2": u(ks[4], (4 * H, H), s),
        "whh2": u(ks[5], (4 * H, H), s),
        "bih2": u(ks[6], (4 * H,), s),
        "bhh2": u(ks[7], (4 * H,), s),
        # hidden: Linear(128, 128)
        "wh": u(ks[8], (H, H), s),
        "bh": u(ks[9], (H,), s),
        # hidden2targ: Linear(128, num_classes)
        "wt": u(ks[10], (num_classes, H), s),
        "bt": u(ks[11], (num_classes,), s),
    }


def reference_forward(x, params):
    """Pure-JAX f32 reference matching PyTorch LSTM/Linear/log_softmax."""
    def cell(x_t, h, c, wih, whh, bih, bhh):
        gates = x_t @ wih.T + h @ whh.T + bih + bhh
        i, f, g, o = jnp.split(gates, 4, axis=1)
        i, f, o = jax.nn.sigmoid(i), jax.nn.sigmoid(f), jax.nn.sigmoid(o)
        g = jnp.tanh(g)
        c = f * c + i * g
        h = o * jnp.tanh(c)
        return h, c

    N, T, _ = x.shape
    h1 = c1 = h2 = c2 = jnp.zeros((N, H), jnp.float32)
    for t in range(T):
        h1, c1 = cell(x[:, t, :], h1, c1,
                      params["wih1"], params["whh1"], params["bih1"], params["bhh1"])
        h2, c2 = cell(h1, h2, c2,
                      params["wih2"], params["whh2"], params["bih2"], params["bhh2"])
    hidden = h2 @ params["wh"].T + params["bh"]
    logits = hidden @ params["wt"].T + params["bt"]
    return jax.nn.log_softmax(logits, axis=1)


if __name__ == "__main__":
    # NOTE: flatten_parameters() in the PyTorch code is a cuDNN layout no-op.
    N, T, C = 16, 8, 5
    key = jax.random.PRNGKey(0)
    kx, kp = jax.random.split(key)
    x = jax.random.normal(kx, (N, T, IN_FEAT), jnp.float32)
    params = init_params(kp, C)

    ref = jax.block_until_ready(reference_forward(x, params))

    # Default path: single block, no grid (the common small-N MAML case).
    out = jax.block_until_ready(metalearner_forward(x, params))
    assert out.shape == (N, C), out.shape
    err = float(jnp.max(jnp.abs(out - ref)))
    # bf16 MXU operands -> relaxed tolerance vs the pure-f32 reference.
    assert jnp.allclose(out, ref, atol=2e-2, rtol=2e-2), f"max abs err = {err}"

    # Also exercise the gridded (blocked-batch) path used for large N / v7x.
    out_g = jax.block_until_ready(metalearner_forward(x, params, block_n=8))
    err_g = float(jnp.max(jnp.abs(out_g - ref)))
    assert jnp.allclose(out_g, ref, atol=2e-2, rtol=2e-2), f"max abs err = {err_g}"

    print("KERNEL_OK")
</pallas_src>

<mosaic_0001>
module attributes {stable_mosaic.version = 11 : i64} {
  func.func @metalearner_kernel(%arg0: memref<8x16x20xf32, #tpu.memory_space<vmem>>, %arg1: memref<20x512xbf16, #tpu.memory_space<vmem>>, %arg2: memref<1x512xf32, #tpu.memory_space<vmem>>, %arg3: memref<128x512xbf16, #tpu.memory_space<vmem>>, %arg4: memref<256x512xbf16, #tpu.memory_space<vmem>>, %arg5: memref<1x512xf32, #tpu.memory_space<vmem>>, %arg6: memref<128x128xbf16, #tpu.memory_space<vmem>>, %arg7: memref<1x128xf32, #tpu.memory_space<vmem>>, %arg8: memref<16x128xf32, #tpu.memory_space<vmem>>) attributes {dimension_semantics = [], scalar_prefetch = 0 : i64, scratch_operands = 0 : i64, tpu.core_type = #tpu.core_type<tc>} {
    %c0 = arith.constant 0 : index
    %c0_0 = arith.constant 0 : index
    %c0_1 = arith.constant 0 : index
    %0 = vector.load %arg0[%c0, %c0_0, %c0_1] : memref<8x16x20xf32, #tpu.memory_space<vmem>>, vector<8x16x20xf32>
    %1 = vector.shape_cast %0 : vector<8x16x20xf32> to vector<128x20xf32>
    %2 = arith.truncf %1 : vector<128x20xf32> to vector<128x20xbf16>
    %c0_2 = arith.constant 0 : index
    %c0_3 = arith.constant 0 : index
    %3 = vector.load %arg1[%c0_2, %c0_3] : memref<20x512xbf16, #tpu.memory_space<vmem>>, vector<20x512xbf16>
    %cst = arith.constant dense<0.000000e+00> : vector<128x512xf32>
    %4 = tpu.matmul %2, %3, %cst {dimension_numbers = #tpu.dot_dimension_numbers<[1], [0], [0], [1], [0, 0, 1, 1], [], []>} : vector<128x20xbf16>, vector<20x512xbf16>, vector<128x512xf32> -> vector<128x512xf32>
    %c0_4 = arith.constant 0 : index
    %c0_5 = arith.constant 0 : index
    %5 = vector.load %arg2[%c0_4, %c0_5] : memref<1x512xf32, #tpu.memory_space<vmem>>, vector<1x512xf32>
    %6 = vector.broadcast %5 : vector<1x512xf32> to vector<128x512xf32>
    %7 = arith.addf %4, %6 : vector<128x512xf32>
    %8 = vector.shape_cast %7 : vector<128x512xf32> to vector<8x16x512xf32>
    %cst_6 = arith.constant 0.000000e+00 : f32
    %9 = vector.broadcast %cst_6 : f32 to vector<16x128xf32>
    %cst_7 = arith.constant 0.000000e+00 : f32
    %10 = vector.broadcast %cst_7 : f32 to vector<16x128xf32>
    %cst_8 = arith.constant 0.000000e+00 : f32
    %11 = vector.broadcast %cst_8 : f32 to vector<16x128xf32>
    %cst_9 = arith.constant 0.000000e+00 : f32
    %12 = vector.broadcast %cst_9 : f32 to vector<16x128xf32>
    %13 = vector.extract_strided_slice %8 {offsets = [0, 0, 0], sizes = [1, 16, 512], strides = [1, 1, 1]} : vector<8x16x512xf32> to vector<1x16x512xf32>
    %14 = vector.shape_cast %13 : vector<1x16x512xf32> to vector<16x512xf32>
    %15 = arith.truncf %9 : vector<16x128xf32> to vector<16x128xbf16>
    %c0_10 = arith.constant 0 : index
    %c0_11 = arith.constant 0 : index
    %16 = vector.load %arg3[%c0_10, %c0_11] : memref<128x512xbf16, #tpu.memory_space<vmem>>, vector<128x512xbf16>
    %cst_12 = arith.constant dense<0.000000e+00> : vector<16x512xf32>
    %17 = tpu.matmul %15, %16, %cst_12 {dimension_numbers = #tpu.dot_dimension_numbers<[1], [0], [0], [1], [0, 0, 1, 1], [], []>} : vector<16x128xbf16>, vector<128x512xbf16>, vector<16x512xf32> -> vector<16x512xf32>
    %18 = arith.addf %14, %17 : vector<16x512xf32>
    %19 = vector.extract_strided_slice %18 {offsets = [0, 0], sizes = [16, 128], strides = [1, 1]} : vector<16x512xf32> to vector<16x128xf32>
    %20 = arith.negf %19 : vector<16x128xf32>
    %21 = math.exp %20 : vector<16x128xf32>
    %cst_13 = arith.constant 1.000000e+00 : f32
    %22 = vector.broadcast %cst_13 : f32 to vector<16x128xf32>
    %23 = arith.addf %22, %21 : vector<16x128xf32>
    %24 = arith.divf %22, %23 : vector<16x128xf32>
    %25 = vector.extract_strided_slice %18 {offsets = [0, 128], sizes = [16, 128], strides = [1, 1]} : vector<16x512xf32> to vector<16x128xf32>
    %26 = arith.negf %25 : vector<16x128xf32>
    %27 = math.exp %26 : vector<16x128xf32>
    %cst_14 = arith.constant 1.000000e+00 : f32
    %28 = vector.broadcast %cst_14 : f32 to vector<16x128xf32>
    %29 = arith.addf %28, %27 : vector<16x128xf32>
    %30 = arith.divf %28, %29 : vector<16x128xf32>
    %31 = vector.extract_strided_slice %18 {offsets = [0, 256], sizes = [16, 128], strides = [1, 1]} : vector<16x512xf32> to vector<16x128xf32>
    %32 = math.tanh %31 : vector<16x128xf32>
    %33 = vector.extract_strided_slice %18 {offsets = [0, 384], sizes = [16, 128], strides = [1, 1]} : vector<16x512xf32> to vector<16x128xf32>
    %34 = arith.negf %33 : vector<16x128xf32>
    %35 = math.exp %34 : vector<16x128xf32>
    %cst_15 = arith.constant 1.000000e+00 : f32
    %36 = vector.broadcast %cst_15 : f32 to vector<16x128xf32>
    %37 = arith.addf %36, %35 : vector<16x128xf32>
    %38 = arith.divf %36, %37 : vector<16x128xf32>
    %39 = arith.mulf %30, %10 : vector<16x128xf32>
    %40 = arith.mulf %24, %32 : vector<16x128xf32>
    %41 = arith.addf %39, %40 : vector<16x128xf32>
    %42 = math.tanh %41 : vector<16x128xf32>
    %43 = arith.mulf %38, %42 : vector<16x128xf32>
    %44 = arith.truncf %43 : vector<16x128xf32> to vector<16x128xbf16>
    %45 = arith.truncf %11 : vector<16x128xf32> to vector<16x128xbf16>
    %46 = tpu.concatenate %44, %45 in 1 : vector<16x128xbf16>, vector<16x128xbf16> -> vector<16x256xbf16>
    %c0_16 = arith.constant 0 : index
    %c0_17 = arith.constant 0 : index
    %47 = vector.load %arg4[%c0_16, %c0_17] : memref<256x512xbf16, #tpu.memory_space<vmem>>, vector<256x512xbf16>
    %cst_18 = arith.constant dense<0.000000e+00> : vector<16x512xf32>
    %48 = tpu.matmul %46, %47, %cst_18 {dimension_numbers = #tpu.dot_dimension_numbers<[1], [0], [0], [1], [0, 0, 1, 1], [], []>} : vector<16x256xbf16>, vector<256x512xbf16>, vector<16x512xf32> -> vector<16x512xf32>
    %c0_19 = arith.constant 0 : index
    %c0_20 = arith.constant 0 : index
    %49 = vector.load %arg5[%c0_19, %c0_20] : memref<1x512xf32, #tpu.memory_space<vmem>>, vector<1x512xf32>
    %50 = vector.broadcast %49 : vector<1x512xf32> to vector<16x512xf32>
    %51 = arith.addf %48, %50 : vector<16x512xf32>
    %52 = vector.extract_strided_slice %51 {offsets = [0, 0], sizes = [16, 128], strides = [1, 1]} : vector<16x512xf32> to vector<16x128xf32>
    %53 = arith.negf %52 : vector<16x128xf32>
    %54 = math.exp %53 : vector<16x128xf32>
    %cst_21 = arith.constant 1.000000e+00 : f32
    %55 = vector.broadcast %cst_21 : f32 to vector<16x128xf32>
    %56 = arith.addf %55, %54 : vector<16x128xf32>
    %57 = arith.divf %55, %56 : vector<16x128xf32>
    %58 = vector.extract_strided_slice %51 {offsets = [0, 128], sizes = [16, 128], strides = [1, 1]} : vector<16x512xf32> to vector<16x128xf32>
    %59 = arith.negf %58 : vector<16x128xf32>
    %60 = math.exp %59 : vector<16x128xf32>
    %cst_22 = arith.constant 1.000000e+00 : f32
    %61 = vector.broadcast %cst_22 : f32 to vector<16x128xf32>
    %62 = arith.addf %61, %60 : vector<16x128xf32>
    %63 = arith.divf %61, %62 : vector<16x128xf32>
    %64 = vector.extract_strided_slice %51 {offsets = [0, 256], sizes = [16, 128], strides = [1, 1]} : vector<16x512xf32> to vector<16x128xf32>
    %65 = math.tanh %64 : vector<16x128xf32>
    %66 = vector.extract_strided_slice %51 {offsets = [0, 384], sizes = [16, 128], strides = [1, 1]} : vector<16x512xf32> to vector<16x128xf32>
    %67 = arith.negf %66 : vector<16x128xf32>
    %68 = math.exp %67 : vector<16x128xf32>
    %cst_23 = arith.constant 1.000000e+00 : f32
    %69 = vector.broadcast %cst_23 : f32 to vector<16x128xf32>
    %70 = arith.addf %69, %68 : vector<16x128xf32>
    %71 = arith.divf %69, %70 : vector<16x128xf32>
    %72 = arith.mulf %63, %12 : vector<16x128xf32>
    %73 = arith.mulf %57, %65 : vector<16x128xf32>
    %74 = arith.addf %72, %73 : vector<16x128xf32>
    %75 = math.tanh %74 : vector<16x128xf32>
    %76 = arith.mulf %71, %75 : vector<16x128xf32>
    %77 = vector.extract_strided_slice %8 {offsets = [1, 0, 0], sizes = [1, 16, 512], strides = [1, 1, 1]} : vector<8x16x512xf32> to vector<1x16x512xf32>
    %78 = vector.shape_cast %77 : vector<1x16x512xf32> to vector<16x512xf32>
    %79 = arith.truncf %43 : vector<16x128xf32> to vector<16x128xbf16>
    %c0_24 = arith.constant 0 : index
    %c0_25 = arith.constant 0 : index
    %80 = vector.load %arg3[%c0_24, %c0_25] : memref<128x512xbf16, #tpu.memory_space<vmem>>, vector<128x512xbf16>
    %cst_26 = arith.constant dense<0.000000e+00> : vector<16x512xf32>
    %81 = tpu.matmul %79, %80, %cst_26 {dimension_numbers = #tpu.dot_dimension_numbers<[1], [0], [0], [1], [0, 0, 1, 1], [], []>} : vector<16x128xbf16>, vector<128x512xbf16>, vector<16x512xf32> -> vector<16x512xf32>
    %82 = arith.addf %78, %81 : vector<16x512xf32>
    %83 = vector.extract_strided_slice %82 {offsets = [0, 0], sizes = [16, 128], strides = [1, 1]} : vector<16x512xf32> to vector<16x128xf32>
    %84 = arith.negf %83 : vector<16x128xf32>
    %85 = math.exp %84 : vector<16x128xf32>
    %cst_27 = arith.constant 1.000000e+00 : f32
    %86 = vector.broadcast %cst_27 : f32 to vector<16x128xf32>
    %87 = arith.addf %86, %85 : vector<16x128xf32>
    %88 = arith.divf %86, %87 : vector<16x128xf32>
    %89 = vector.extract_strided_slice %82 {offsets = [0, 128], sizes = [16, 128], strides = [1, 1]} : vector<16x512xf32> to vector<16x128xf32>
    %90 = arith.negf %89 : vector<16x128xf32>
    %91 = math.exp %90 : vector<16x128xf32>
    %cst_28 = arith.constant 1.000000e+00 : f32
    %92 = vector.broadcast %cst_28 : f32 to vector<16x128xf32>
    %93 = arith.addf %92, %91 : vector<16x128xf32>
    %94 = arith.divf %92, %93 : vector<16x128xf32>
    %95 = vector.extract_strided_slice %82 {offsets = [0, 256], sizes = [16, 128], strides = [1, 1]} : vector<16x512xf32> to vector<16x128xf32>
    %96 = math.tanh %95 : vector<16x128xf32>
    %97 = vector.extract_strided_slice %82 {offsets = [0, 384], sizes = [16, 128], strides = [1, 1]} : vector<16x512xf32> to vector<16x128xf32>
    %98 = arith.negf %97 : vector<16x128xf32>
    %99 = math.exp %98 : vector<16x128xf32>
    %cst_29 = arith.constant 1.000000e+00 : f32
    %100 = vector.broadcast %cst_29 : f32 to vector<16x128xf32>
    %101 = arith.addf %100, %99 : vector<16x128xf32>
    %102 = arith.divf %100, %101 : vector<16x128xf32>
    %103 = arith.mulf %94, %41 : vector<16x128xf32>
    %104 = arith.mulf %88, %96 : vector<16x128xf32>
    %105 = arith.addf %103, %104 : vector<16x128xf32>
    %106 = math.tanh %105 : vector<16x128xf32>
    %107 = arith.mulf %102, %106 : vector<16x128xf32>
    %108 = arith.truncf %107 : vector<16x128xf32> to vector<16x128xbf16>
    %109 = arith.truncf %76 : vector<16x128xf32> to vector<16x128xbf16>
    %110 = tpu.concatenate %108, %109 in 1 : vector<16x128xbf16>, vector<16x128xbf16> -> vector<16x256xbf16>
    %c0_30 = arith.constant 0 : index
    %c0_31 = arith.constant 0 : index
    %111 = vector.load %arg4[%c0_30, %c0_31] : memref<256x512xbf16, #tpu.memory_space<vmem>>, vector<256x512xbf16>
    %cst_32 = arith.constant dense<0.000000e+00> : vector<16x512xf32>
    %112 = tpu.matmul %110, %111, %cst_32 {dimension_numbers = #tpu.dot_dimension_numbers<[1], [0], [0], [1], [0, 0, 1, 1], [], []>} : vector<16x256xbf16>, vector<256x512xbf16>, vector<16x512xf32> -> vector<16x512xf32>
    %c0_33 = arith.constant 0 : index
    %c0_34 = arith.constant 0 : index
    %113 = vector.load %arg5[%c0_33, %c0_34] : memref<1x512xf32, #tpu.memory_space<vmem>>, vector<1x512xf32>
    %114 = vector.broadcast %113 : vector<1x512xf32> to vector<16x512xf32>
    %115 = arith.addf %112, %114 : vector<16x512xf32>
    %116 = vector.extract_strided_slice %115 {offsets = [0, 0], sizes = [16, 128], strides = [1, 1]} : vector<16x512xf32> to vector<16x128xf32>
    %117 = arith.negf %116 : vector<16x128xf32>
    %118 = math.exp %117 : vector<16x128xf32>
    %cst_35 = arith.constant 1.000000e+00 : f32
    %119 = vector.broadcast %cst_35 : f32 to vector<16x128xf32>
    %120 = arith.addf %119, %118 : vector<16x128xf32>
    %121 = arith.divf %119, %120 : vector<16x128xf32>
    %122 = vector.extract_strided_slice %115 {offsets = [0, 128], sizes = [16, 128], strides = [1, 1]} : vector<16x512xf32> to vector<16x128xf32>
    %123 = arith.negf %122 : vector<16x128xf32>
    %124 = math.exp %123 : vector<16x128xf32>
    %cst_36 = arith.constant 1.000000e+00 : f32
    %125 = vector.broadcast %cst_36 : f32 to vector<16x128xf32>
    %126 = arith.addf %125, %124 : vector<16x128xf32>
    %127 = arith.divf %125, %126 : vector<16x128xf32>
    %128 = vector.extract_strided_slice %115 {offsets = [0, 256], sizes = [16, 128], strides = [1, 1]} : vector<16x512xf32> to vector<16x128xf32>
    %129 = math.tanh %128 : vector<16x128xf32>
    %130 = vector.extract_strided_slice %115 {offsets = [0, 384], sizes = [16, 128], strides = [1, 1]} : vector<16x512xf32> to vector<16x128xf32>
    %131 = arith.negf %130 : vector<16x128xf32>
    %132 = math.exp %131 : vector<16x128xf32>
    %cst_37 = arith.constant 1.000000e+00 : f32
    %133 = vector.broadcast %cst_37 : f32 to vector<16x128xf32>
    %134 = arith.addf %133, %132 : vector<16x128xf32>
    %135 = arith.divf %133, %134 : vector<16x128xf32>
    %136 = arith.mulf %127, %74 : vector<16x128xf32>
    %137 = arith.mulf %121, %129 : vector<16x128xf32>
    %138 = arith.addf %136, %137 : vector<16x128xf32>
    %139 = math.tanh %138 : vector<16x128xf32>
    %140 = arith.mulf %135, %139 : vector<16x128xf32>
    %141 = vector.extract_strided_slice %8 {offsets = [2, 0, 0], sizes = [1, 16, 512], strides = [1, 1, 1]} : vector<8x16x512xf32> to vector<1x16x512xf32>
    %142 = vector.shape_cast %141 : vector<1x16x512xf32> to vector<16x512xf32>
    %143 = arith.truncf %107 : vector<16x128xf32> to vector<16x128xbf16>
    %c0_38 = arith.constant 0 : index
    %c0_39 = arith.constant 0 : index
    %144 = vector.load %arg3[%c0_38, %c0_39] : memref<128x512xbf16, #tpu.memory_space<vmem>>, vector<128x512xbf16>
    %cst_40 = arith.constant dense<0.000000e+00> : vector<16x512xf32>
    %145 = tpu.matmul %143, %144, %cst_40 {dimension_numbers = #tpu.dot_dimension_numbers<[1], [0], [0], [1], [0, 0, 1, 1], [], []>} : vector<16x128xbf16>, vector<128x512xbf16>, vector<16x512xf32> -> vector<16x512xf32>
    %146 = arith.addf %142, %145 : vector<16x512xf32>
    %147 = vector.extract_strided_slice %146 {offsets = [0, 0], sizes = [16, 128], strides = [1, 1]} : vector<16x512xf32> to vector<16x128xf32>
    %148 = arith.negf %147 : vector<16x128xf32>
    %149 = math.exp %148 : vector<16x128xf32>
    %cst_41 = arith.constant 1.000000e+00 : f32
    %150 = vector.broadcast %cst_41 : f32 to vector<16x128xf32>
    %151 = arith.addf %150, %149 : vector<16x128xf32>
    %152 = arith.divf %150, %151 : vector<16x128xf32>
    %153 = vector.extract_strided_slice %146 {offsets = [0, 128], sizes = [16, 128], strides = [1, 1]} : vector<16x512xf32> to vector<16x128xf32>
    %154 = arith.negf %153 : vector<16x128xf32>
    %155 = math.exp %154 : vector<16x128xf32>
    %cst_42 = arith.constant 1.000000e+00 : f32
    %156 = vector.broadcast %cst_42 : f32 to vector<16x128xf32>
    %157 = arith.addf %156, %155 : vector<16x128xf32>
    %158 = arith.divf %156, %157 : vector<16x128xf32>
    %159 = vector.extract_strided_slice %146 {offsets = [0, 256], sizes = [16, 128], strides = [1, 1]} : vector<16x512xf32> to vector<16x128xf32>
    %160 = math.tanh %159 : vector<16x128xf32>
    %161 = vector.extract_strided_slice %146 {offsets = [0, 384], sizes = [16, 128], strides = [1, 1]} : vector<16x512xf32> to vector<16x128xf32>
    %162 = arith.negf %161 : vector<16x128xf32>
    %163 = math.exp %162 : vector<16x128xf32>
    %cst_43 = arith.constant 1.000000e+00 : f32
    %164 = vector.broadcast %cst_43 : f32 to vector<16x128xf32>
    %165 = arith.addf %164, %163 : vector<16x128xf32>
    %166 = arith.divf %164, %165 : vector<16x128xf32>
    %167 = arith.mulf %158, %105 : vector<16x128xf32>
    %168 = arith.mulf %152, %160 : vector<16x128xf32>
    %169 = arith.addf %167, %168 : vector<16x128xf32>
    %170 = math.tanh %169 : vector<16x128xf32>
    %171 = arith.mulf %166, %170 : vector<16x128xf32>
    %172 = arith.truncf %171 : vector<16x128xf32> to vector<16x128xbf16>
    %173 = arith.truncf %140 : vector<16x128xf32> to vector<16x128xbf16>
    %174 = tpu.concatenate %172, %173 in 1 : vector<16x128xbf16>, vector<16x128xbf16> -> vector<16x256xbf16>
    %c0_44 = arith.constant 0 : index
    %c0_45 = arith.constant 0 : index
    %175 = vector.load %arg4[%c0_44, %c0_45] : memref<256x512xbf16, #tpu.memory_space<vmem>>, vector<256x512xbf16>
    %cst_46 = arith.constant dense<0.000000e+00> : vector<16x512xf32>
    %176 = tpu.matmul %174, %175, %cst_46 {dimension_numbers = #tpu.dot_dimension_numbers<[1], [0], [0], [1], [0, 0, 1, 1], [], []>} : vector<16x256xbf16>, vector<256x512xbf16>, vector<16x512xf32> -> vector<16x512xf32>
    %c0_47 = arith.constant 0 : index
    %c0_48 = arith.constant 0 : index
    %177 = vector.load %arg5[%c0_47, %c0_48] : memref<1x512xf32, #tpu.memory_space<vmem>>, vector<1x512xf32>
    %178 = vector.broadcast %177 : vector<1x512xf32> to vector<16x512xf32>
    %179 = arith.addf %176, %178 : vector<16x512xf32>
    %180 = vector.extract_strided_slice %179 {offsets = [0, 0], sizes = [16, 128], strides = [1, 1]} : vector<16x512xf32> to vector<16x128xf32>
    %181 = arith.negf %180 : vector<16x128xf32>
    %182 = math.exp %181 : vector<16x128xf32>
    %cst_49 = arith.constant 1.000000e+00 : f32
    %183 = vector.broadcast %cst_49 : f32 to vector<16x128xf32>
    %184 = arith.addf %183, %182 : vector<16x128xf32>
    %185 = arith.divf %183, %184 : vector<16x128xf32>
    %186 = vector.extract_strided_slice %179 {offsets = [0, 128], sizes = [16, 128], strides = [1, 1]} : vector<16x512xf32> to vector<16x128xf32>
    %187 = arith.negf %186 : vector<16x128xf32>
    %188 = math.exp %187 : vector<16x128xf32>
    %cst_50 = arith.constant 1.000000e+00 : f32
    %189 = vector.broadcast %cst_50 : f32 to vector<16x128xf32>
    %190 = arith.addf %189, %188 : vector<16x128xf32>
    %191 = arith.divf %189, %190 : vector<16x128xf32>
    %192 = vector.extract_strided_slice %179 {offsets = [0, 256], sizes = [16, 128], strides = [1, 1]} : vector<16x512xf32> to vector<16x128xf32>
    %193 = math.tanh %192 : vector<16x128xf32>
    %194 = vector.extract_strided_slice %179 {offsets = [0, 384], sizes = [16, 128], strides = [1, 1]} : vector<16x512xf32> to vector<16x128xf32>
    %195 = arith.negf %194 : vector<16x128xf32>
    %196 = math.exp %195 : vector<16x128xf32>
    %cst_51 = arith.constant 1.000000e+00 : f32
    %197 = vector.broadcast %cst_51 : f32 to vector<16x128xf32>
    %198 = arith.addf %197, %196 : vector<16x128xf32>
    %199 = arith.divf %197, %198 : vector<16x128xf32>
    %200 = arith.mulf %191, %138 : vector<16x128xf32>
    %201 = arith.mulf %185, %193 : vector<16x128xf32>
    %202 = arith.addf %200, %201 : vector<16x128xf32>
    %203 = math.tanh %202 : vector<16x128xf32>
    %204 = arith.mulf %199, %203 : vector<16x128xf32>
    %205 = vector.extract_strided_slice %8 {offsets = [3, 0, 0], sizes = [1, 16, 512], strides = [1, 1, 1]} : vector<8x16x512xf32> to vector<1x16x512xf32>
    %206 = vector.shape_cast %205 : vector<1x16x512xf32> to vector<16x512xf32>
    %207 = arith.truncf %171 : vector<16x128xf32> to vector<16x128xbf16>
    %c0_52 = arith.constant 0 : index
    %c0_53 = arith.constant 0 : index
    %208 = vector.load %arg3[%c0_52, %c0_53] : memref<128x512xbf16, #tpu.memory_space<vmem>>, vector<128x512xbf16>
    %cst_54 = arith.constant dense<0.000000e+00> : vector<16x512xf32>
    %209 = tpu.matmul %207, %208, %cst_54 {dimension_numbers = #tpu.dot_dimension_numbers<[1], [0], [0], [1], [0, 0, 1, 1], [], []>} : vector<16x128xbf16>, vector<128x512xbf16>, vector<16x512xf32> -> vector<16x512xf32>
    %210 = arith.addf %206, %209 : vector<16x512xf32>
    %211 = vector.extract_strided_slice %210 {offsets = [0, 0], sizes = [16, 128], strides = [1, 1]} : vector<16x512xf32> to vector<16x128xf32>
    %212 = arith.negf %211 : vector<16x128xf32>
    %213 = math.exp %212 : vector<16x128xf32>
    %cst_55 = arith.constant 1.000000e+00 : f32
    %214 = vector.broadcast %cst_55 : f32 to vector<16x128xf32>
    %215 = arith.addf %214, %213 : vector<16x128xf32>
    %216 = arith.divf %214, %215 : vector<16x128xf32>
    %217 = vector.extract_strided_slice %210 {offsets = [0, 128], sizes = [16, 128], strides = [1, 1]} : vector<16x512xf32> to vector<16x128xf32>
    %218 = arith.negf %217 : vector<16x128xf32>
    %219 = math.exp %218 : vector<16x128xf32>
    %cst_56 = arith.constant 1.000000e+00 : f32
    %220 = vector.broadcast %cst_56 : f32 to vector<16x128xf32>
    %221 = arith.addf %220, %219 : vector<16x128xf32>
    %222 = arith.divf %220, %221 : vector<16x128xf32>
    %223 = vector.extract_strided_slice %210 {offsets = [0, 256], sizes = [16, 128], strides = [1, 1]} : vector<16x512xf32> to vector<16x128xf32>
    %224 = math.tanh %223 : vector<16x128xf32>
    %225 = vector.extract_strided_slice %210 {offsets = [0, 384], sizes = [16, 128], strides = [1, 1]} : vector<16x512xf32> to vector<16x128xf32>
    %226 = arith.negf %225 : vector<16x128xf32>
    %227 = math.exp %226 : vector<16x128xf32>
    %cst_57 = arith.constant 1.000000e+00 : f32
    %228 = vector.broadcast %cst_57 : f32 to vector<16x128xf32>
    %229 = arith.addf %228, %227 : vector<16x128xf32>
    %230 = arith.divf %228, %229 : vector<16x128xf32>
    %231 = arith.mulf %222, %169 : vector<16x128xf32>
    %232 = arith.mulf %216, %224 : vector<16x128xf32>
    %233 = arith.addf %231, %232 : vector<16x128xf32>
    %234 = math.tanh %233 : vector<16x128xf32>
    %235 = arith.mulf %230, %234 : vector<16x128xf32>
    %236 = arith.truncf %235 : vector<16x128xf32> to vector<16x128xbf16>
    %237 = arith.truncf %204 : vector<16x128xf32> to vector<16x128xbf16>
    %238 = tpu.concatenate %236, %237 in 1 : vector<16x128xbf16>, vector<16x128xbf16> -> vector<16x256xbf16>
    %c0_58 = arith.constant 0 : index
    %c0_59 = arith.constant 0 : index
    %239 = vector.load %arg4[%c0_58, %c0_59] : memref<256x512xbf16, #tpu.memory_space<vmem>>, vector<256x512xbf16>
    %cst_60 = arith.constant dense<0.000000e+00> : vector<16x512xf32>
    %240 = tpu.matmul %238, %239, %cst_60 {dimension_numbers = #tpu.dot_dimension_numbers<[1], [0], [0], [1], [0, 0, 1, 1], [], []>} : vector<16x256xbf16>, vector<256x512xbf16>, vector<16x512xf32> -> vector<16x512xf32>
    %c0_61 = arith.constant 0 : index
    %c0_62 = arith.constant 0 : index
    %241 = vector.load %arg5[%c0_61, %c0_62] : memref<1x512xf32, #tpu.memory_space<vmem>>, vector<1x512xf32>
    %242 = vector.broadcast %241 : vector<1x512xf32> to vector<16x512xf32>
    %243 = arith.addf %240, %242 : vector<16x512xf32>
    %244 = vector.extract_strided_slice %243 {offsets = [0, 0], sizes = [16, 128], strides = [1, 1]} : vector<16x512xf32> to vector<16x128xf32>
    %245 = arith.negf %244 : vector<16x128xf32>
    %246 = math.exp %245 : vector<16x128xf32>
    %cst_63 = arith.constant 1.000000e+00 : f32
    %247 = vector.broadcast %cst_63 : f32 to vector<16x128xf32>
    %248 = arith.addf %247, %246 : vector<16x128xf32>
    %249 = arith.divf %247, %248 : vector<16x128xf32>
    %250 = vector.extract_strided_slice %243 {offsets = [0, 128], sizes = [16, 128], strides = [1, 1]} : vector<16x512xf32> to vector<16x128xf32>
    %251 = arith.negf %250 : vector<16x128xf32>
    %252 = math.exp %251 : vector<16x128xf32>
    %cst_64 = arith.constant 1.000000e+00 : f32
    %253 = vector.broadcast %cst_64 : f32 to vector<16x128xf32>
    %254 = arith.addf %253, %252 : vector<16x128xf32>
    %255 = arith.divf %253, %254 : vector<16x128xf32>
    %256 = vector.extract_strided_slice %243 {offsets = [0, 256], sizes = [16, 128], strides = [1, 1]} : vector<16x512xf32> to vector<16x128xf32>
    %257 = math.tanh %256 : vector<16x128xf32>
    %258 = vector.extract_strided_slice %243 {offsets = [0, 384], sizes = [16, 128], strides = [1, 1]} : vector<16x512xf32> to vector<16x128xf32>
    %259 = arith.negf %258 : vector<16x128xf32>
    %260 = math.exp %259 : vector<16x128xf32>
    %cst_65 = arith.constant 1.000000e+00 : f32
    %261 = vector.broadcast %cst_65 : f32 to vector<16x128xf32>
    %262 = arith.addf %261, %260 : vector<16x128xf32>
    %263 = arith.divf %261, %262 : vector<16x128xf32>
    %264 = arith.mulf %255, %202 : vector<16x128xf32>
    %265 = arith.mulf %249, %257 : vector<16x128xf32>
    %266 = arith.addf %264, %265 : vector<16x128xf32>
    %267 = math.tanh %266 : vector<16x128xf32>
    %268 = arith.mulf %263, %267 : vector<16x128xf32>
    %269 = vector.extract_strided_slice %8 {offsets = [4, 0, 0], sizes = [1, 16, 512], strides = [1, 1, 1]} : vector<8x16x512xf32> to vector<1x16x512xf32>
    %270 = vector.shape_cast %269 : vector<1x16x512xf32> to vector<16x512xf32>
    %271 = arith.truncf %235 : vector<16x128xf32> to vector<16x128xbf16>
    %c0_66 = arith.constant 0 : index
    %c0_67 = arith.constant 0 : index
    %272 = vector.load %arg3[%c0_66, %c0_67] : memref<128x512xbf16, #tpu.memory_space<vmem>>, vector<128x512xbf16>
    %cst_68 = arith.constant dense<0.000000e+00> : vector<16x512xf32>
    %273 = tpu.matmul %271, %272, %cst_68 {dimension_numbers = #tpu.dot_dimension_numbers<[1], [0], [0], [1], [0, 0, 1, 1], [], []>} : vector<16x128xbf16>, vector<128x512xbf16>, vector<16x512xf32> -> vector<16x512xf32>
    %274 = arith.addf %270, %273 : vector<16x512xf32>
    %275 = vector.extract_strided_slice %274 {offsets = [0, 0], sizes = [16, 128], strides = [1, 1]} : vector<16x512xf32> to vector<16x128xf32>
    %276 = arith.negf %275 : vector<16x128xf32>
    %277 = math.exp %276 : vector<16x128xf32>
    %cst_69 = arith.constant 1.000000e+00 : f32
    %278 = vector.broadcast %cst_69 : f32 to vector<16x128xf32>
    %279 = arith.addf %278, %277 : vector<16x128xf32>
    %280 = arith.divf %278, %279 : vector<16x128xf32>
    %281 = vector.extract_strided_slice %274 {offsets = [0, 128], sizes = [16, 128], strides = [1, 1]} : vector<16x512xf32> to vector<16x128xf32>
    %282 = arith.negf %281 : vector<16x128xf32>
    %283 = math.exp %282 : vector<16x128xf32>
    %cst_70 = arith.constant 1.000000e+00 : f32
    %284 = vector.broadcast %cst_70 : f32 to vector<16x128xf32>
    %285 = arith.addf %284, %283 : vector<16x128xf32>
    %286 = arith.divf %284, %285 : vector<16x128xf32>
    %287 = vector.extract_strided_slice %274 {offsets = [0, 256], sizes = [16, 128], strides = [1, 1]} : vector<16x512xf32> to vector<16x128xf32>
    %288 = math.tanh %287 : vector<16x128xf32>
    %289 = vector.extract_strided_slice %274 {offsets = [0, 384], sizes = [16, 128], strides = [1, 1]} : vector<16x512xf32> to vector<16x128xf32>
    %290 = arith.negf %289 : vector<16x128xf32>
    %291 = math.exp %290 : vector<16x128xf32>
    %cst_71 = arith.constant 1.000000e+00 : f32
    %292 = vector.broadcast %cst_71 : f32 to vector<16x128xf32>
    %293 = arith.addf %292, %291 : vector<16x128xf32>
    %294 = arith.divf %292, %293 : vector<16x128xf32>
    %295 = arith.mulf %286, %233 : vector<16x128xf32>
    %296 = arith.mulf %280, %288 : vector<16x128xf32>
    %297 = arith.addf %295, %296 : vector<16x128xf32>
    %298 = math.tanh %297 : vector<16x128xf32>
    %299 = arith.mulf %294, %298 : vector<16x128xf32>
    %300 = arith.truncf %299 : vector<16x128xf32> to vector<16x128xbf16>
    %301 = arith.truncf %268 : vector<16x128xf32> to vector<16x128xbf16>
    %302 = tpu.concatenate %300, %301 in 1 : vector<16x128xbf16>, vector<16x128xbf16> -> vector<16x256xbf16>
    %c0_72 = arith.constant 0 : index
    %c0_73 = arith.constant 0 : index
    %303 = vector.load %arg4[%c0_72, %c0_73] : memref<256x512xbf16, #tpu.memory_space<vmem>>, vector<256x512xbf16>
    %cst_74 = arith.constant dense<0.000000e+00> : vector<16x512xf32>
    %304 = tpu.matmul %302, %303, %cst_74 {dimension_numbers = #tpu.dot_dimension_numbers<[1], [0], [0], [1], [0, 0, 1, 1], [], []>} : vector<16x256xbf16>, vector<256x512xbf16>, vector<16x512xf32> -> vector<16x512xf32>
    %c0_75 = arith.constant 0 : index
    %c0_76 = arith.constant 0 : index
    %305 = vector.load %arg5[%c0_75, %c0_76] : memref<1x512xf32, #tpu.memory_space<vmem>>, vector<1x512xf32>
    %306 = vector.broadcast %305 : vector<1x512xf32> to vector<16x512xf32>
    %307 = arith.addf %304, %306 : vector<16x512xf32>
    %308 = vector.extract_strided_slice %307 {offsets = [0, 0], sizes = [16, 128], strides = [1, 1]} : vector<16x512xf32> to vector<16x128xf32>
    %309 = arith.negf %308 : vector<16x128xf32>
    %310 = math.exp %309 : vector<16x128xf32>
    %cst_77 = arith.constant 1.000000e+00 : f32
    %311 = vector.broadcast %cst_77 : f32 to vector<16x128xf32>
    %312 = arith.addf %311, %310 : vector<16x128xf32>
    %313 = arith.divf %311, %312 : vector<16x128xf32>
    %314 = vector.extract_strided_slice %307 {offsets = [0, 128], sizes = [16, 128], strides = [1, 1]} : vector<16x512xf32> to vector<16x128xf32>
    %315 = arith.negf %314 : vector<16x128xf32>
    %316 = math.exp %315 : vector<16x128xf32>
    %cst_78 = arith.constant 1.000000e+00 : f32
    %317 = vector.broadcast %cst_78 : f32 to vector<16x128xf32>
    %318 = arith.addf %317, %316 : vector<16x128xf32>
    %319 = arith.divf %317, %318 : vector<16x128xf32>
    %320 = vector.extract_strided_slice %307 {offsets = [0, 256], sizes = [16, 128], strides = [1, 1]} : vector<16x512xf32> to vector<16x128xf32>
    %321 = math.tanh %320 : vector<16x128xf32>
    %322 = vector.extract_strided_slice %307 {offsets = [0, 384], sizes = [16, 128], strides = [1, 1]} : vector<16x512xf32> to vector<16x128xf32>
    %323 = arith.negf %322 : vector<16x128xf32>
    %324 = math.exp %323 : vector<16x128xf32>
    %cst_79 = arith.constant 1.000000e+00 : f32
    %325 = vector.broadcast %cst_79 : f32 to vector<16x128xf32>
    %326 = arith.addf %325, %324 : vector<16x128xf32>
    %327 = arith.divf %325, %326 : vector<16x128xf32>
    %328 = arith.mulf %319, %266 : vector<16x128xf32>
    %329 = arith.mulf %313, %321 : vector<16x128xf32>
    %330 = arith.addf %328, %329 : vector<16x128xf32>
    %331 = math.tanh %330 : vector<16x128xf32>
    %332 = arith.mulf %327, %331 : vector<16x128xf32>
    %333 = vector.extract_strided_slice %8 {offsets = [5, 0, 0], sizes = [1, 16, 512], strides = [1, 1, 1]} : vector<8x16x512xf32> to vector<1x16x512xf32>
    %334 = vector.shape_cast %333 : vector<1x16x512xf32> to vector<16x512xf32>
    %335 = arith.truncf %299 : vector<16x128xf32> to vector<16x128xbf16>
    %c0_80 = arith.constant 0 : index
    %c0_81 = arith.constant 0 : index
    %336 = vector.load %arg3[%c0_80, %c0_81] : memref<128x512xbf16, #tpu.memory_space<vmem>>, vector<128x512xbf16>
    %cst_82 = arith.constant dense<0.000000e+00> : vector<16x512xf32>
    %337 = tpu.matmul %335, %336, %cst_82 {dimension_numbers = #tpu.dot_dimension_numbers<[1], [0], [0], [1], [0, 0, 1, 1], [], []>} : vector<16x128xbf16>, vector<128x512xbf16>, vector<16x512xf32> -> vector<16x512xf32>
    %338 = arith.addf %334, %337 : vector<16x512xf32>
    %339 = vector.extract_strided_slice %338 {offsets = [0, 0], sizes = [16, 128], strides = [1, 1]} : vector<16x512xf32> to vector<16x128xf32>
    %340 = arith.negf %339 : vector<16x128xf32>
    %341 = math.exp %340 : vector<16x128xf32>
    %cst_83 = arith.constant 1.000000e+00 : f32
    %342 = vector.broadcast %cst_83 : f32 to vector<16x128xf32>
    %343 = arith.addf %342, %341 : vector<16x128xf32>
    %344 = arith.divf %342, %343 : vector<16x128xf32>
    %345 = vector.extract_strided_slice %338 {offsets = [0, 128], sizes = [16, 128], strides = [1, 1]} : vector<16x512xf32> to vector<16x128xf32>
    %346 = arith.negf %345 : vector<16x128xf32>
    %347 = math.exp %346 : vector<16x128xf32>
    %cst_84 = arith.constant 1.000000e+00 : f32
    %348 = vector.broadcast %cst_84 : f32 to vector<16x128xf32>
    %349 = arith.addf %348, %347 : vector<16x128xf32>
    %350 = arith.divf %348, %349 : vector<16x128xf32>
    %351 = vector.extract_strided_slice %338 {offsets = [0, 256], sizes = [16, 128], strides = [1, 1]} : vector<16x512xf32> to vector<16x128xf32>
    %352 = math.tanh %351 : vector<16x128xf32>
    %353 = vector.extract_strided_slice %338 {offsets = [0, 384], sizes = [16, 128], strides = [1, 1]} : vector<16x512xf32> to vector<16x128xf32>
    %354 = arith.negf %353 : vector<16x128xf32>
    %355 = math.exp %354 : vector<16x128xf32>
    %cst_85 = arith.constant 1.000000e+00 : f32
    %356 = vector.broadcast %cst_85 : f32 to vector<16x128xf32>
    %357 = arith.addf %356, %355 : vector<16x128xf32>
    %358 = arith.divf %356, %357 : vector<16x128xf32>
    %359 = arith.mulf %350, %297 : vector<16x128xf32>
    %360 = arith.mulf %344, %352 : vector<16x128xf32>
    %361 = arith.addf %359, %360 : vector<16x128xf32>
    %362 = math.tanh %361 : vector<16x128xf32>
    %363 = arith.mulf %358, %362 : vector<16x128xf32>
    %364 = arith.truncf %363 : vector<16x128xf32> to vector<16x128xbf16>
    %365 = arith.truncf %332 : vector<16x128xf32> to vector<16x128xbf16>
    %366 = tpu.concatenate %364, %365 in 1 : vector<16x128xbf16>, vector<16x128xbf16> -> vector<16x256xbf16>
    %c0_86 = arith.constant 0 : index
    %c0_87 = arith.constant 0 : index
    %367 = vector.load %arg4[%c0_86, %c0_87] : memref<256x512xbf16, #tpu.memory_space<vmem>>, vector<256x512xbf16>
    %cst_88 = arith.constant dense<0.000000e+00> : vector<16x512xf32>
    %368 = tpu.matmul %366, %367, %cst_88 {dimension_numbers = #tpu.dot_dimension_numbers<[1], [0], [0], [1], [0, 0, 1, 1], [], []>} : vector<16x256xbf16>, vector<256x512xbf16>, vector<16x512xf32> -> vector<16x512xf32>
    %c0_89 = arith.constant 0 : index
    %c0_90 = arith.constant 0 : index
    %369 = vector.load %arg5[%c0_89, %c0_90] : memref<1x512xf32, #tpu.memory_space<vmem>>, vector<1x512xf32>
    %370 = vector.broadcast %369 : vector<1x512xf32> to vector<16x512xf32>
    %371 = arith.addf %368, %370 : vector<16x512xf32>
    %372 = vector.extract_strided_slice %371 {offsets = [0, 0], sizes = [16, 128], strides = [1, 1]} : vector<16x512xf32> to vector<16x128xf32>
    %373 = arith.negf %372 : vector<16x128xf32>
    %374 = math.exp %373 : vector<16x128xf32>
    %cst_91 = arith.constant 1.000000e+00 : f32
    %375 = vector.broadcast %cst_91 : f32 to vector<16x128xf32>
    %376 = arith.addf %375, %374 : vector<16x128xf32>
    %377 = arith.divf %375, %376 : vector<16x128xf32>
    %378 = vector.extract_strided_slice %371 {offsets = [0, 128], sizes = [16, 128], strides = [1, 1]} : vector<16x512xf32> to vector<16x128xf32>
    %379 = arith.negf %378 : vector<16x128xf32>
    %380 = math.exp %379 : vector<16x128xf32>
    %cst_92 = arith.constant 1.000000e+00 : f32
    %381 = vector.broadcast %cst_92 : f32 to vector<16x128xf32>
    %382 = arith.addf %381, %380 : vector<16x128xf32>
    %383 = arith.divf %381, %382 : vector<16x128xf32>
    %384 = vector.extract_strided_slice %371 {offsets = [0, 256], sizes = [16, 128], strides = [1, 1]} : vector<16x512xf32> to vector<16x128xf32>
    %385 = math.tanh %384 : vector<16x128xf32>
    %386 = vector.extract_strided_slice %371 {offsets = [0, 384], sizes = [16, 128], strides = [1, 1]} : vector<16x512xf32> to vector<16x128xf32>
    %387 = arith.negf %386 : vector<16x128xf32>
    %388 = math.exp %387 : vector<16x128xf32>
    %cst_93 = arith.constant 1.000000e+00 : f32
    %389 = vector.broadcast %cst_93 : f32 to vector<16x128xf32>
    %390 = arith.addf %389, %388 : vector<16x128xf32>
    %391 = arith.divf %389, %390 : vector<16x128xf32>
    %392 = arith.mulf %383, %330 : vector<16x128xf32>
    %393 = arith.mulf %377, %385 : vector<16x128xf32>
    %394 = arith.addf %392, %393 : vector<16x128xf32>
    %395 = math.tanh %394 : vector<16x128xf32>
    %396 = arith.mulf %391, %395 : vector<16x128xf32>
    %397 = vector.extract_strided_slice %8 {offsets = [6, 0, 0], sizes = [1, 16, 512], strides = [1, 1, 1]} : vector<8x16x512xf32> to vector<1x16x512xf32>
    %398 = vector.shape_cast %397 : vector<1x16x512xf32> to vector<16x512xf32>
    %399 = arith.truncf %363 : vector<16x128xf32> to vector<16x128xbf16>
    %c0_94 = arith.constant 0 : index
    %c0_95 = arith.constant 0 : index
    %400 = vector.load %arg3[%c0_94, %c0_95] : memref<128x512xbf16, #tpu.memory_space<vmem>>, vector<128x512xbf16>
    %cst_96 = arith.constant dense<0.000000e+00> : vector<16x512xf32>
    %401 = tpu.matmul %399, %400, %cst_96 {dimension_numbers = #tpu.dot_dimension_numbers<[1], [0], [0], [1], [0, 0, 1, 1], [], []>} : vector<16x128xbf16>, vector<128x512xbf16>, vector<16x512xf32> -> vector<16x512xf32>
    %402 = arith.addf %398, %401 : vector<16x512xf32>
    %403 = vector.extract_strided_slice %402 {offsets = [0, 0], sizes = [16, 128], strides = [1, 1]} : vector<16x512xf32> to vector<16x128xf32>
    %404 = arith.negf %403 : vector<16x128xf32>
    %405 = math.exp %404 : vector<16x128xf32>
    %cst_97 = arith.constant 1.000000e+00 : f32
    %406 = vector.broadcast %cst_97 : f32 to vector<16x128xf32>
    %407 = arith.addf %406, %405 : vector<16x128xf32>
    %408 = arith.divf %406, %407 : vector<16x128xf32>
    %409 = vector.extract_strided_slice %402 {offsets = [0, 128], sizes = [16, 128], strides = [1, 1]} : vector<16x512xf32> to vector<16x128xf32>
    %410 = arith.negf %409 : vector<16x128xf32>
    %411 = math.exp %410 : vector<16x128xf32>
    %cst_98 = arith.constant 1.000000e+00 : f32
    %412 = vector.broadcast %cst_98 : f32 to vector<16x128xf32>
    %413 = arith.addf %412, %411 : vector<16x128xf32>
    %414 = arith.divf %412, %413 : vector<16x128xf32>
    %415 = vector.extract_strided_slice %402 {offsets = [0, 256], sizes = [16, 128], strides = [1, 1]} : vector<16x512xf32> to vector<16x128xf32>
    %416 = math.tanh %415 : vector<16x128xf32>
    %417 = vector.extract_strided_slice %402 {offsets = [0, 384], sizes = [16, 128], strides = [1, 1]} : vector<16x512xf32> to vector<16x128xf32>
    %418 = arith.negf %417 : vector<16x128xf32>
    %419 = math.exp %418 : vector<16x128xf32>
    %cst_99 = arith.constant 1.000000e+00 : f32
    %420 = vector.broadcast %cst_99 : f32 to vector<16x128xf32>
    %421 = arith.addf %420, %419 : vector<16x128xf32>
    %422 = arith.divf %420, %421 : vector<16x128xf32>
    %423 = arith.mulf %414, %361 : vector<16x128xf32>
    %424 = arith.mulf %408, %416 : vector<16x128xf32>
    %425 = arith.addf %423, %424 : vector<16x128xf32>
    %426 = math.tanh %425 : vector<16x128xf32>
    %427 = arith.mulf %422, %426 : vector<16x128xf32>
    %428 = arith.truncf %427 : vector<16x128xf32> to vector<16x128xbf16>
    %429 = arith.truncf %396 : vector<16x128xf32> to vector<16x128xbf16>
    %430 = tpu.concatenate %428, %429 in 1 : vector<16x128xbf16>, vector<16x128xbf16> -> vector<16x256xbf16>
    %c0_100 = arith.constant 0 : index
    %c0_101 = arith.constant 0 : index
    %431 = vector.load %arg4[%c0_100, %c0_101] : memref<256x512xbf16, #tpu.memory_space<vmem>>, vector<256x512xbf16>
    %cst_102 = arith.constant dense<0.000000e+00> : vector<16x512xf32>
    %432 = tpu.matmul %430, %431, %cst_102 {dimension_numbers = #tpu.dot_dimension_numbers<[1], [0], [0], [1], [0, 0, 1, 1], [], []>} : vector<16x256xbf16>, vector<256x512xbf16>, vector<16x512xf32> -> vector<16x512xf32>
    %c0_103 = arith.constant 0 : index
    %c0_104 = arith.constant 0 : index
    %433 = vector.load %arg5[%c0_103, %c0_104] : memref<1x512xf32, #tpu.memory_space<vmem>>, vector<1x512xf32>
    %434 = vector.broadcast %433 : vector<1x512xf32> to vector<16x512xf32>
    %435 = arith.addf %432, %434 : vector<16x512xf32>
    %436 = vector.extract_strided_slice %435 {offsets = [0, 0], sizes = [16, 128], strides = [1, 1]} : vector<16x512xf32> to vector<16x128xf32>
    %437 = arith.negf %436 : vector<16x128xf32>
    %438 = math.exp %437 : vector<16x128xf32>
    %cst_105 = arith.constant 1.000000e+00 : f32
    %439 = vector.broadcast %cst_105 : f32 to vector<16x128xf32>
    %440 = arith.addf %439, %438 : vector<16x128xf32>
    %441 = arith.divf %439, %440 : vector<16x128xf32>
    %442 = vector.extract_strided_slice %435 {offsets = [0, 128], sizes = [16, 128], strides = [1, 1]} : vector<16x512xf32> to vector<16x128xf32>
    %443 = arith.negf %442 : vector<16x128xf32>
    %444 = math.exp %443 : vector<16x128xf32>
    %cst_106 = arith.constant 1.000000e+00 : f32
    %445 = vector.broadcast %cst_106 : f32 to vector<16x128xf32>
    %446 = arith.addf %445, %444 : vector<16x128xf32>
    %447 = arith.divf %445, %446 : vector<16x128xf32>
    %448 = vector.extract_strided_slice %435 {offsets = [0, 256], sizes = [16, 128], strides = [1, 1]} : vector<16x512xf32> to vector<16x128xf32>
    %449 = math.tanh %448 : vector<16x128xf32>
    %450 = vector.extract_strided_slice %435 {offsets = [0, 384], sizes = [16, 128], strides = [1, 1]} : vector<16x512xf32> to vector<16x128xf32>
    %451 = arith.negf %450 : vector<16x128xf32>
    %452 = math.exp %451 : vector<16x128xf32>
    %cst_107 = arith.constant 1.000000e+00 : f32
    %453 = vector.broadcast %cst_107 : f32 to vector<16x128xf32>
    %454 = arith.addf %453, %452 : vector<16x128xf32>
    %455 = arith.divf %453, %454 : vector<16x128xf32>
    %456 = arith.mulf %447, %394 : vector<16x128xf32>
    %457 = arith.mulf %441, %449 : vector<16x128xf32>
    %458 = arith.addf %456, %457 : vector<16x128xf32>
    %459 = math.tanh %458 : vector<16x128xf32>
    %460 = arith.mulf %455, %459 : vector<16x128xf32>
    %461 = vector.extract_strided_slice %8 {offsets = [7, 0, 0], sizes = [1, 16, 512], strides = [1, 1, 1]} : vector<8x16x512xf32> to vector<1x16x512xf32>
    %462 = vector.shape_cast %461 : vector<1x16x512xf32> to vector<16x512xf32>
    %463 = arith.truncf %427 : vector<16x128xf32> to vector<16x128xbf16>
    %c0_108 = arith.constant 0 : index
    %c0_109 = arith.constant 0 : index
    %464 = vector.load %arg3[%c0_108, %c0_109] : memref<128x512xbf16, #tpu.memory_space<vmem>>, vector<128x512xbf16>
    %cst_110 = arith.constant dense<0.000000e+00> : vector<16x512xf32>
    %465 = tpu.matmul %463, %464, %cst_110 {dimension_numbers = #tpu.dot_dimension_numbers<[1], [0], [0], [1], [0, 0, 1, 1], [], []>} : vector<16x128xbf16>, vector<128x512xbf16>, vector<16x512xf32> -> vector<16x512xf32>
    %466 = arith.addf %462, %465 : vector<16x512xf32>
    %467 = vector.extract_strided_slice %466 {offsets = [0, 0], sizes = [16, 128], strides = [1, 1]} : vector<16x512xf32> to vector<16x128xf32>
    %468 = arith.negf %467 : vector<16x128xf32>
    %469 = math.exp %468 : vector<16x128xf32>
    %cst_111 = arith.constant 1.000000e+00 : f32
    %470 = vector.broadcast %cst_111 : f32 to vector<16x128xf32>
    %471 = arith.addf %470, %469 : vector<16x128xf32>
    %472 = arith.divf %470, %471 : vector<16x128xf32>
    %473 = vector.extract_strided_slice %466 {offsets = [0, 128], sizes = [16, 128], strides = [1, 1]} : vector<16x512xf32> to vector<16x128xf32>
    %474 = arith.negf %473 : vector<16x128xf32>
    %475 = math.exp %474 : vector<16x128xf32>
    %cst_112 = arith.constant 1.000000e+00 : f32
    %476 = vector.broadcast %cst_112 : f32 to vector<16x128xf32>
    %477 = arith.addf %476, %475 : vector<16x128xf32>
    %478 = arith.divf %476, %477 : vector<16x128xf32>
    %479 = vector.extract_strided_slice %466 {offsets = [0, 256], sizes = [16, 128], strides = [1, 1]} : vector<16x512xf32> to vector<16x128xf32>
    %480 = math.tanh %479 : vector<16x128xf32>
    %481 = vector.extract_strided_slice %466 {offsets = [0, 384], sizes = [16, 128], strides = [1, 1]} : vector<16x512xf32> to vector<16x128xf32>
    %482 = arith.negf %481 : vector<16x128xf32>
    %483 = math.exp %482 : vector<16x128xf32>
    %cst_113 = arith.constant 1.000000e+00 : f32
    %484 = vector.broadcast %cst_113 : f32 to vector<16x128xf32>
    %485 = arith.addf %484, %483 : vector<16x128xf32>
    %486 = arith.divf %484, %485 : vector<16x128xf32>
    %487 = arith.mulf %478, %425 : vector<16x128xf32>
    %488 = arith.mulf %472, %480 : vector<16x128xf32>
    %489 = arith.addf %487, %488 : vector<16x128xf32>
    %490 = math.tanh %489 : vector<16x128xf32>
    %491 = arith.mulf %486, %490 : vector<16x128xf32>
    %492 = arith.truncf %491 : vector<16x128xf32> to vector<16x128xbf16>
    %493 = arith.truncf %460 : vector<16x128xf32> to vector<16x128xbf16>
    %494 = tpu.concatenate %492, %493 in 1 : vector<16x128xbf16>, vector<16x128xbf16> -> vector<16x256xbf16>
    %c0_114 = arith.constant 0 : index
    %c0_115 = arith.constant 0 : index
    %495 = vector.load %arg4[%c0_114, %c0_115] : memref<256x512xbf16, #tpu.memory_space<vmem>>, vector<256x512xbf16>
    %cst_116 = arith.constant dense<0.000000e+00> : vector<16x512xf32>
    %496 = tpu.matmul %494, %495, %cst_116 {dimension_numbers = #tpu.dot_dimension_numbers<[1], [0], [0], [1], [0, 0, 1, 1], [], []>} : vector<16x256xbf16>, vector<256x512xbf16>, vector<16x512xf32> -> vector<16x512xf32>
    %c0_117 = arith.constant 0 : index
    %c0_118 = arith.constant 0 : index
    %497 = vector.load %arg5[%c0_117, %c0_118] : memref<1x512xf32, #tpu.memory_space<vmem>>, vector<1x512xf32>
    %498 = vector.broadcast %497 : vector<1x512xf32> to vector<16x512xf32>
    %499 = arith.addf %496, %498 : vector<16x512xf32>
    %500 = vector.extract_strided_slice %499 {offsets = [0, 0], sizes = [16, 128], strides = [1, 1]} : vector<16x512xf32> to vector<16x128xf32>
    %501 = arith.negf %500 : vector<16x128xf32>
    %502 = math.exp %501 : vector<16x128xf32>
    %cst_119 = arith.constant 1.000000e+00 : f32
    %503 = vector.broadcast %cst_119 : f32 to vector<16x128xf32>
    %504 = arith.addf %503, %502 : vector<16x128xf32>
    %505 = arith.divf %503, %504 : vector<16x128xf32>
    %506 = vector.extract_strided_slice %499 {offsets = [0, 128], sizes = [16, 128], strides = [1, 1]} : vector<16x512xf32> to vector<16x128xf32>
    %507 = arith.negf %506 : vector<16x128xf32>
    %508 = math.exp %507 : vector<16x128xf32>
    %cst_120 = arith.constant 1.000000e+00 : f32
    %509 = vector.broadcast %cst_120 : f32 to vector<16x128xf32>
    %510 = arith.addf %509, %508 : vector<16x128xf32>
    %511 = arith.divf %509, %510 : vector<16x128xf32>
    %512 = vector.extract_strided_slice %499 {offsets = [0, 256], sizes = [16, 128], strides = [1, 1]} : vector<16x512xf32> to vector<16x128xf32>
    %513 = math.tanh %512 : vector<16x128xf32>
    %514 = vector.extract_strided_slice %499 {offsets = [0, 384], sizes = [16, 128], strides = [1, 1]} : vector<16x512xf32> to vector<16x128xf32>
    %515 = arith.negf %514 : vector<16x128xf32>
    %516 = math.exp %515 : vector<16x128xf32>
    %cst_121 = arith.constant 1.000000e+00 : f32
    %517 = vector.broadcast %cst_121 : f32 to vector<16x128xf32>
    %518 = arith.addf %517, %516 : vector<16x128xf32>
    %519 = arith.divf %517, %518 : vector<16x128xf32>
    %520 = arith.mulf %511, %458 : vector<16x128xf32>
    %521 = arith.mulf %505, %513 : vector<16x128xf32>
    %522 = arith.addf %520, %521 : vector<16x128xf32>
    %523 = math.tanh %522 : vector<16x128xf32>
    %524 = arith.mulf %519, %523 : vector<16x128xf32>
    %525 = arith.truncf %524 : vector<16x128xf32> to vector<16x128xbf16>
    %c0_122 = arith.constant 0 : index
    %c0_123 = arith.constant 0 : index
    %526 = vector.load %arg6[%c0_122, %c0_123] : memref<128x128xbf16, #tpu.memory_space<vmem>>, vector<128x128xbf16>
    %cst_124 = arith.constant dense<0.000000e+00> : vector<16x128xf32>
    %527 = tpu.matmul %525, %526, %cst_124 {dimension_numbers = #tpu.dot_dimension_numbers<[1], [0], [0], [1], [0, 0, 1, 1], [], []>} : vector<16x128xbf16>, vector<128x128xbf16>, vector<16x128xf32> -> vector<16x128xf32>
    %c0_125 = arith.constant 0 : index
    %c0_126 = arith.constant 0 : index
    %528 = vector.load %arg7[%c0_125, %c0_126] : memref<1x128xf32, #tpu.memory_space<vmem>>, vector<1x128xf32>
    %529 = vector.broadcast %528 : vector<1x128xf32> to vector<16x128xf32>
    %530 = arith.addf %527, %529 : vector<16x128xf32>
    %cst_127 = arith.constant dense<0xFF800000> : vector<16xf32>
    %531 = vector.multi_reduction <maximumf>, %530, %cst_127 [1] : vector<16x128xf32> to vector<16xf32>
    %532 = vector.shape_cast %531 : vector<16xf32> to vector<16x1xf32>
    %533 = vector.broadcast %532 : vector<16x1xf32> to vector<16x128xf32>
    %534 = arith.subf %530, %533 : vector<16x128xf32>
    %535 = math.exp %534 : vector<16x128xf32>
    %cst_128 = arith.constant dense<0.000000e+00> : vector<16xf32>
    %536 = vector.multi_reduction <add>, %535, %cst_128 [1] : vector<16x128xf32> to vector<16xf32>
    %537 = vector.shape_cast %536 : vector<16xf32> to vector<16x1xf32>
    %538 = math.log %537 : vector<16x1xf32>
    %539 = arith.addf %532, %538 : vector<16x1xf32>
    %540 = vector.broadcast %539 : vector<16x1xf32> to vector<16x128xf32>
    %541 = arith.subf %530, %540 : vector<16x128xf32>
    %c0_129 = arith.constant 0 : index
    %c0_130 = arith.constant 0 : index
    %542 = vector.load %arg8[%c0_129, %c0_130] : memref<16x128xf32, #tpu.memory_space<vmem>>, vector<16x128xf32>
    tpu.vector_store %arg8[%c0_129, %c0_130], %541 {strides = array<i32>} : memref<16x128xf32, #tpu.memory_space<vmem>>, vector<16x128xf32>,
    return
  }
}

</mosaic_0001>

<llo_original>
// kernel: tpu_custom_call.1
$region0: #{tpu_custom_call.1}
  #allocation0 [shape = 'u32[]', space=smem, size = 0x4, offset = 0x4, fixed_abs, tag = 'smem constant byte address 0x4 - core index']
  #allocation1 [shape = 'u32[144,128]{1,0:T(1,128)}', space=vmem, size = 0x12000, scoped, tag = 'internal scratch']
  %s0 = inlined_call_operand.hbm [shape: f32[8,16,20], index: 0, kind: input, shape index: {}]
  %s1 = inlined_call_operand.hbm [shape: bf16[20,512], index: 1, kind: input, shape index: {}]
  %s2 = inlined_call_operand.vmem [shape: f32[1,512], index: 2, kind: input, shape index: {}]
  %s3 = inlined_call_operand.hbm [shape: bf16[128,512], index: 3, kind: input, shape index: {}]
  %s4 = inlined_call_operand.hbm [shape: bf16[256,512], index: 4, kind: input, shape index: {}]
  %s5 = inlined_call_operand.vmem [shape: f32[1,512], index: 5, kind: input, shape index: {}]
  %s6 = inlined_call_operand.hbm [shape: bf16[128,128], index: 6, kind: input, shape index: {}]
  %s7 = inlined_call_operand.vmem [shape: f32[1,128], index: 7, kind: input, shape index: {}]
  %s8 = inlined_call_operand.hbm [shape: f32[16,128], index: 8, kind: output, shape index: {}]
  %s9 = sld [smem:[#allocation0]]
  $region62: #{tpu_custom_call.1} parent=0
    _
  %s11 = ssub.s32 1, %s9
  %s12 = scalar_select 0, %s11, %s9
  $region1: #{tpu_custom_call.1} parent=0
    #allocation2 [shape = 'u8[65536]{0}', space=vmem, size = 0x10000, scoped, tag = 'input window, operand 0, single buffered']
    #allocation3 [shape = 's32[1]{0}', space=sflag, size = 0x4, scoped, tag = 'scoped memory for tpu_custom_call.1']
    #allocation4 [shape = 's32[1]{0}', space=sflag, size = 0x4, scoped, tag = 'scoped memory for tpu_custom_call.1']
    #allocation5 [shape = 'u8[24576]{0}', space=vmem, size = 0x6000, scoped, tag = 'input window, operand 1, single buffered']
    #allocation6 [shape = 's32[1]{0}', space=sflag, size = 0x4, scoped, tag = 'scoped memory for tpu_custom_call.1']
    #allocation7 [shape = 'u8[131072]{0}', space=vmem, size = 0x20000, scoped, tag = 'input window, operand 3, single buffered']
    #allocation8 [shape = 'u8[262144]{0}', space=vmem, size = 0x40000, scoped, tag = 'input window, operand 4, single buffered']
    #allocation9 [shape = 's32[1]{0}', space=sflag, size = 0x4, scoped, tag = 'scoped memory for tpu_custom_call.1']
    #allocation10 [shape = 'u8[32768]{0}', space=vmem, size = 0x8000, scoped, tag = 'input window, operand 6, single buffered']
    #allocation11 [shape = 'u8[8192]{0}', space=vmem, size = 0x2000, scoped, tag = 'output window, operand 0, single buffered']
    %13 = vsyncpa [#allocation3], 0
    %14 = vsyncpa [#allocation6], 0
    %15 = vsyncpa [#allocation9], 0
    %16 = vsyncpa [#allocation4], 0
    // Predicated region
    $region2: #{tpu_custom_call.1} parent=1 // pred_check
      _
    $region3: #{tpu_custom_call.1} parent=1 // pred_check_branch
      %18 = sbr.rel (0) target = $region5
    $region4: #{tpu_custom_call.1} parent=1 // pred_region
      %s20 = ssub.s32 2048, 2048
      %21 = vsyncadd [#allocation3], %s20
      %s22 = sshll.u32 [#allocation2], 4
      %s23 = int_to_ptr.vmem [resolvable:$true] %s22
      %28 = dma.hbm_to_vmem [thread:$0]  %s0, 2048, %s23, [#allocation3], 128, 128, 8
    $region5: #{tpu_custom_call.1} parent=1 // pred_fallthru
      _
    // Predicated region
    $region6: #{tpu_custom_call.1} parent=1 // pred_check
      _
    $region7: #{tpu_custom_call.1} parent=1 // pred_check_branch
      %30 = sbr.rel (0) target = $region9
    $region8: #{tpu_custom_call.1} parent=1 // pred_region
      %s32 = ssub.s32 768, 768
      %33 = vsyncadd [#allocation6], %s32
      %s34 = sshll.u32 [#allocation5], 4
      %s35 = int_to_ptr.vmem [resolvable:$true] %s34
      %40 = dma.hbm_to_vmem [thread:$0]  %s1, 768, %s35, [#allocation6], 256, 256, 16
    $region9: #{tpu_custom_call.1} parent=1 // pred_fallthru
      _
    // Predicated region
    $region10: #{tpu_custom_call.1} parent=1 // pred_check
      _
    $region11: #{tpu_custom_call.1} parent=1 // pred_check_branch
      %42 = sbr.rel (0) target = $region13
    $region12: #{tpu_custom_call.1} parent=1 // pred_region
      _
    $region13: #{tpu_custom_call.1} parent=1 // pred_fallthru
      _
    // Predicated region
    $region14: #{tpu_custom_call.1} parent=1 // pred_check
      _
    $region15: #{tpu_custom_call.1} parent=1 // pred_check_branch
      %44 = sbr.rel (0) target = $region17
    $region16: #{tpu_custom_call.1} parent=1 // pred_region
      %s46 = ssub.s32 4096, 4096
      %47 = vsyncadd [#allocation6], %s46
      %s48 = sshll.u32 [#allocation7], 4
      %s49 = int_to_ptr.vmem [resolvable:$true] %s48
      %54 = dma.hbm_to_vmem [thread:$0]  %s3, 4096, %s49, [#allocation6], 256, 256, 16
    $region17: #{tpu_custom_call.1} parent=1 // pred_fallthru
      _
    // Predicated region
    $region18: #{tpu_custom_call.1} parent=1 // pred_check
      _
    $region19: #{tpu_custom_call.1} parent=1 // pred_check_branch
      %56 = sbr.rel (0) target = $region21
    $region20: #{tpu_custom_call.1} parent=1 // pred_region
      %s58 = ssub.s32 8192, 8192
      %59 = vsyncadd [#allocation9], %s58
      %s60 = sshll.u32 [#allocation8], 4
      %s61 = int_to_ptr.vmem [resolvable:$true] %s60
      %66 = dma.hbm_to_vmem [thread:$0]  %s4, 8192, %s61, [#allocation9], 256, 256, 16
    $region21: #{tpu_custom_call.1} parent=1 // pred_fallthru
      _
    // Predicated region
    $region22: #{tpu_custom_call.1} parent=1 // pred_check
      _
    $region23: #{tpu_custom_call.1} parent=1 // pred_check_branch
      %68 = sbr.rel (0) target = $region25
    $region24: #{tpu_custom_call.1} parent=1 // pred_region
      _
    $region25: #{tpu_custom_call.1} parent=1 // pred_fallthru
      _
    // Predicated region
    $region26: #{tpu_custom_call.1} parent=1 // pred_check
      _
    $region27: #{tpu_custom_call.1} parent=1 // pred_check_branch
      %70 = sbr.rel (0) target = $region29
    $region28: #{tpu_custom_call.1} parent=1 // pred_region
      %s72 = ssub.s32 1024, 1024
      %73 = vsyncadd [#allocation9], %s72
      %s74 = sshll.u32 [#allocation10], 4
      %s75 = int_to_ptr.vmem [resolvable:$true] %s74
      %80 = dma.hbm_to_vmem [thread:$0]  %s6, 1024, %s75, [#allocation9], 64, 64, 4
    $region29: #{tpu_custom_call.1} parent=1 // pred_fallthru
      _
    // Predicated region
    $region30: #{tpu_custom_call.1} parent=1 // pred_check
      _
    $region31: #{tpu_custom_call.1} parent=1 // pred_check_branch
      %82 = sbr.rel (0) target = $region33
    $region32: #{tpu_custom_call.1} parent=1 // pred_region
      _
    $region33: #{tpu_custom_call.1} parent=1 // pred_fallthru
      _
    // Predicated region
    $region34: #{tpu_custom_call.1} parent=1 // pred_check
      _
    $region35: #{tpu_custom_call.1} parent=1 // pred_check_branch
      %84 = sbr.rel (0) target = $region37
    $region36: #{tpu_custom_call.1} parent=1 // pred_region
      %85 = dma.done [#allocation3], 2048
    $region37: #{tpu_custom_call.1} parent=1 // pred_fallthru
      _
    // Predicated region
    $region38: #{tpu_custom_call.1} parent=1 // pred_check
      _
    $region39: #{tpu_custom_call.1} parent=1 // pred_check_branch
      %87 = sbr.rel (0) target = $region41
    $region40: #{tpu_custom_call.1} parent=1 // pred_region
      %88 = dma.done [#allocation6], 768
    $region41: #{tpu_custom_call.1} parent=1 // pred_fallthru
      _
    // Predicated region
    $region42: #{tpu_custom_call.1} parent=1 // pred_check
      _
    $region43: #{tpu_custom_call.1} parent=1 // pred_check_branch
      %90 = sbr.rel (0) target = $region45
    $region44: #{tpu_custom_call.1} parent=1 // pred_region
      %91 = dma.done [#allocation6], 4096
    $region45: #{tpu_custom_call.1} parent=1 // pred_fallthru
      _
    // Predicated region
    $region46: #{tpu_custom_call.1} parent=1 // pred_check
      _
    $region47: #{tpu_custom_call.1} parent=1 // pred_check_branch
      %93 = sbr.rel (0) target = $region49
    $region48: #{tpu_custom_call.1} parent=1 // pred_region
      %94 = dma.done [#allocation9], 8192
    $region49: #{tpu_custom_call.1} parent=1 // pred_fallthru
      _
    // Predicated region
    $region50: #{tpu_custom_call.1} parent=1 // pred_check
      _
    $region51: #{tpu_custom_call.1} parent=1 // pred_check_branch
      %96 = sbr.rel (0) target = $region53
    $region52: #{tpu_custom_call.1} parent=1 // pred_region
      %97 = dma.done [#allocation9], 1024
    $region53: #{tpu_custom_call.1} parent=1 // pred_fallthru
      _
    %v99 = vld [vmem:[#allocation2] sm:$0xff]
    %v100 = vld [vmem:[#allocation2 + $0x8] sm:$0xff]
    %v101 = vld [vmem:[#allocation2 + $0x10] sm:$0xff]
    %v102 = vld [vmem:[#allocation2 + $0x18] sm:$0xff]
    %v103 = vld [vmem:[#allocation2 + $0x20] sm:$0xff]
    %v104 = vld [vmem:[#allocation2 + $0x28] sm:$0xff]
    %v105 = vld [vmem:[#allocation2 + $0x30] sm:$0xff]
    %v106 = vld [vmem:[#allocation2 + $0x38] sm:$0xff]
    %v107 = vld [vmem:[#allocation2 + $0x40] sm:$0xff]
    %v108 = vld [vmem:[#allocation2 + $0x48] sm:$0xff]
    %v109 = vld [vmem:[#allocation2 + $0x50] sm:$0xff]
    %v110 = vld [vmem:[#allocation2 + $0x58] sm:$0xff]
    %v111 = vld [vmem:[#allocation2 + $0x60] sm:$0xff]
    %v112 = vld [vmem:[#allocation2 + $0x68] sm:$0xff]
    %v113 = vld [vmem:[#allocation2 + $0x70] sm:$0xff]
    %v114 = vld [vmem:[#allocation2 + $0x78] sm:$0xff]
    %v115 = vpack.c.bf16 %v100, %v99
    %v116 = vpack.c.bf16 %v102, %v101
    %v117 = vpack.c.bf16 %v104, %v103
    %v118 = vpack.c.bf16 %v106, %v105
    %v119 = vpack.c.bf16 %v108, %v107
    %v120 = vpack.c.bf16 %v110, %v109
    %v121 = vpack.c.bf16 %v112, %v111
    %v122 = vpack.c.bf16 %v114, %v113
    %v123 = vld [vmem:[#allocation5] sm:$0xff]
    %v124 = vld [vmem:[#allocation5 + $0x8] sm:$0xff]
    %v125 = vld [vmem:[#allocation5 + $0x10] sm:$0xff]
    %v126 = vld [vmem:[#allocation5 + $0x18] sm:$0xff]
    %v127 = vld [vmem:[#allocation5 + $0x20] sm:$0x33]
    %v128 = vld [vmem:[#allocation5 + $0x28] sm:$0x33]
    %v129 = vld [vmem:[%s2] sm:$0xf]
    %v131 = vlaneseq
    %v132 = vshrl.u32 %v131, 7
    %v133 = vsub.s32 0, %v132
    %v134 = vrot.slane %v129, %v133
    %v135 = vlaneseq
    %v136 = vshrl.u32 %v135, 7
    %v137 = vsub.s32 1, %v136
    %v138 = vrot.slane %v129, %v137
    %v139 = vlaneseq
    %v140 = vshrl.u32 %v139, 7
    %v141 = vsub.s32 2, %v140
    %v142 = vrot.slane %v129, %v141
    %v143 = vlaneseq
    %v144 = vshrl.u32 %v143, 7
    %v145 = vsub.s32 3, %v144
    %v146 = vrot.slane %v129, %v145
    %v157 = vunpack.c.l.b16 %v123
    %v158 = vunpack.c.h.b16 %v123
    %v159 = vunpack.c.l.b16 %v124
    %v160 = vunpack.c.h.b16 %v124
    %v161 = vunpack.c.l.b16 %v125
    %v162 = vunpack.c.h.b16 %v125
    %v163 = vunpack.c.l.b16 %v126
    %v164 = vunpack.c.h.b16 %v126
    %v165 = vunpack.c.l.b16 %v127
    %v166 = vunpack.c.h.b16 %v127
    %v167 = vunpack.c.l.b16 %v128
    %v168 = vunpack.c.h.b16 %v128
    %v169 = vpack.c.b16 %v161, %v157
    %v170 = vpack.c.b16 %v162, %v158
    %v171 = vpack.c.b16 %v163, %v159
    %v172 = vpack.c.b16 %v164, %v160
    %v173 = vpack.c.b16 %v165, %v165
    %v174 = vpack.c.b16 %v166, %v166
    %v175 = vpack.c.b16 %v167, %v167
    %v176 = vpack.c.b16 %v168, %v168
    %vm181 = vcmask 162816
    %v183 = vsel %vm181, %v115, 0
    %v186 = vsel %vm181, %v116, 0
    %v189 = vsel %vm181, %v117, 0
    %v192 = vsel %vm181, %v118, 0
    %v195 = vsel %vm181, %v119, 0
    %v198 = vsel %vm181, %v120, 0
    %v201 = vsel %vm181, %v121, 0
    %v204 = vsel %vm181, %v122, 0
    %vm206 = vcmask 1041408
    %v208 = vsel %vm206, %v173, 0
    %v211 = vsel %vm206, %v174, 0
    %v214 = vsel %vm206, %v175, 0
    %v217 = vsel %vm206, %v176, 0
    %219 = vmatprep.subr.bf16.mxu0 %v170
    %220 = vmatpush1.bf16.msra.mxu0 %v169
    %221 = vmatprep.subr.bf16.mxu0 %v211
    %222 = vmatpush1.bf16.msra.mxu0 %v208
    %223 = vmatprep.subr.bf16.mxu0 0
    %224 = vmatpush1.bf16.msra.mxu0 0
    %225 = vmatprep.subr.bf16.mxu0 0
    %226 = vmatpush1.bf16.msra.mxu0 0
    %227 = vmatprep.subr.bf16.mxu0 0
    %228 = vmatpush1.bf16.msra.mxu0 0
    %229 = vmatprep.subr.bf16.mxu0 0
    %230 = vmatpush1.bf16.msra.mxu0 0
    %231 = vmatprep.subr.bf16.mxu0 0
    %232 = vmatpush1.bf16.msra.mxu0 0
    %233 = vmatprep.subr.bf16.mxu0 0
    %234 = vmatpush1.bf16.msra.mxu0 0
    %235 = vmatprep.subr.bf16.mxu0 0
    %236 = vmatpush1.bf16.msra.mxu0 0
    %237 = vmatprep.subr.bf16.mxu0 0
    %238 = vmatpush1.bf16.msra.mxu0 0
    %239 = vmatprep.subr.bf16.mxu0 0
    %240 = vmatpush1.bf16.msra.mxu0 0
    %241 = vmatprep.subr.bf16.mxu0 0
    %242 = vmatpush1.bf16.msra.mxu0 0
    %243 = vmatprep.subr.bf16.mxu0 0
    %244 = vmatpush1.bf16.msra.mxu0 0
    %245 = vmatprep.subr.bf16.mxu0 0
    %246 = vmatpush1.bf16.msra.mxu0 0
    %247 = vmatprep.subr.bf16.mxu0 0
    %248 = vmatpush1.bf16.msra.mxu0 0
    %249 = vmatprep.subr.bf16.mxu0 0
    %250 = vmatpush1.bf16.msra.mxu0 0
    %251 = vmatprep.mubr.bf16.mxu0 0
    %252 = vmatmul.mubr.bf16.gmra.mrb[0].mxu0 %v183
    %v253 = vpop.f32.mrb[0].mxu0
    %v254 = vadd.f32 %v134, %v253
    %v255 = vpop.f32.mrb[0].mxu0
    %v256 = vadd.f32 %v138, %v255
    %v257 = vpop.f32.mrb[0].mxu0
    %v258 = vadd.f32 %v134, %v257
    %v259 = vpop.f32.mrb[0].mxu0
    %v260 = vadd.f32 %v138, %v259
    %261 = vmatprep.mubr.bf16.mxu0 0
    %262 = vmatmul.mubr.bf16.gmra.mrb[0].mxu0 %v186
    %v263 = vpop.f32.mrb[0].mxu0
    %v264 = vadd.f32 %v134, %v263
    %v265 = vpop.f32.mrb[0].mxu0
    %v266 = vadd.f32 %v138, %v265
    %v267 = vpop.f32.mrb[0].mxu0
    %v268 = vadd.f32 %v134, %v267
    %v269 = vpop.f32.mrb[0].mxu0
    %v270 = vadd.f32 %v138, %v269
    %271 = vmatprep.mubr.bf16.mxu0 0
    %272 = vmatmul.mubr.bf16.gmra.mrb[0].mxu0 %v189
    %v273 = vpop.f32.mrb[0].mxu0
    %v274 = vadd.f32 %v134, %v273
    %v275 = vpop.f32.mrb[0].mxu0
    %v276 = vadd.f32 %v138, %v275
    %v277 = vpop.f32.mrb[0].mxu0
    %v278 = vadd.f32 %v134, %v277
    %v279 = vpop.f32.mrb[0].mxu0
    %v280 = vadd.f32 %v138, %v279
    %281 = vmatprep.mubr.bf16.mxu0 0
    %282 = vmatmul.mubr.bf16.gmra.mrb[0].mxu0 %v192
    %v283 = vpop.f32.mrb[0].mxu0
    %v284 = vadd.f32 %v134, %v283
    %v285 = vpop.f32.mrb[0].mxu0
    %v286 = vadd.f32 %v138, %v285
    %v287 = vpop.f32.mrb[0].mxu0
    %v288 = vadd.f32 %v134, %v287
    %v289 = vpop.f32.mrb[0].mxu0
    %v290 = vadd.f32 %v138, %v289
    %291 = vmatprep.mubr.bf16.mxu0 0
    %292 = vmatmul.mubr.bf16.gmra.mrb[0].mxu0 %v195
    %v293 = vpop.f32.mrb[0].mxu0
    %v294 = vadd.f32 %v134, %v293
    %v295 = vpop.f32.mrb[0].mxu0
    %v296 = vadd.f32 %v138, %v295
    %v297 = vpop.f32.mrb[0].mxu0
    %v298 = vadd.f32 %v134, %v297
    %v299 = vpop.f32.mrb[0].mxu0
    %v300 = vadd.f32 %v138, %v299
    %301 = vmatprep.mubr.bf16.mxu0 0
    %302 = vmatmul.mubr.bf16.gmra.mrb[0].mxu0 %v198
    %v303 = vpop.f32.mrb[0].mxu0
    %v304 = vadd.f32 %v134, %v303
    %v305 = vpop.f32.mrb[0].mxu0
    %v306 = vadd.f32 %v138, %v305
    %v307 = vpop.f32.mrb[0].mxu0
    %v308 = vadd.f32 %v134, %v307
    %v309 = vpop.f32.mrb[0].mxu0
    %v310 = vadd.f32 %v138, %v309
    %311 = vmatprep.mubr.bf16.mxu0 0
    %312 = vmatmul.mubr.bf16.gmra.mrb[0].mxu0 %v201
    %v313 = vpop.f32.mrb[0].mxu0
    %v314 = vadd.f32 %v134, %v313
    %v315 = vpop.f32.mrb[0].mxu0
    %v316 = vadd.f32 %v138, %v315
    %v317 = vpop.f32.mrb[0].mxu0
    %v318 = vadd.f32 %v134, %v317
    %v319 = vpop.f32.mrb[0].mxu0
    %v320 = vadd.f32 %v138, %v319
    %321 = vmatprep.mubr.bf16.mxu0 0
    %322 = vmatmul.mubr.bf16.gmra.mrb[0].mxu0 %v204
    %v323 = vpop.f32.mrb[0].mxu0
    %v324 = vadd.f32 %v134, %v323
    %v325 = vpop.f32.mrb[0].mxu0
    %v326 = vadd.f32 %v138, %v325
    %v327 = vpop.f32.mrb[0].mxu0
    %v328 = vadd.f32 %v134, %v327
    %v329 = vpop.f32.mrb[0].mxu0
    %v330 = vadd.f32 %v138, %v329
    %331 = vdwg.mxu0
    %332 = vmatprep.subr.bf16.mxu0 %v172
    %333 = vmatpush1.bf16.msra.mxu0 %v171
    %334 = vmatprep.subr.bf16.mxu0 %v217
    %335 = vmatpush1.bf16.msra.mxu0 %v214
    %336 = vmatprep.subr.bf16.mxu0 0
    %337 = vmatpush1.bf16.msra.mxu0 0
    %338 = vmatprep.subr.bf16.mxu0 0
    %339 = vmatpush1.bf16.msra.mxu0 0
    %340 = vmatprep.subr.bf16.mxu0 0
    %341 = vmatpush1.bf16.msra.mxu0 0
    %342 = vmatprep.subr.bf16.mxu0 0
    %343 = vmatpush1.bf16.msra.mxu0 0
    %344 = vmatprep.subr.bf16.mxu0 0
    %345 = vmatpush1.bf16.msra.mxu0 0
    %346 = vmatprep.subr.bf16.mxu0 0
    %347 = vmatpush1.bf16.msra.mxu0 0
    %348 = vmatprep.subr.bf16.mxu0 0
    %349 = vmatpush1.bf16.msra.mxu0 0
    %350 = vmatprep.subr.bf16.mxu0 0
    %351 = vmatpush1.bf16.msra.mxu0 0
    %352 = vmatprep.subr.bf16.mxu0 0
    %353 = vmatpush1.bf16.msra.mxu0 0
    %354 = vmatprep.subr.bf16.mxu0 0
    %355 = vmatpush1.bf16.msra.mxu0 0
    %356 = vmatprep.subr.bf16.mxu0 0
    %357 = vmatpush1.bf16.msra.mxu0 0
    %358 = vmatprep.subr.bf16.mxu0 0
    %359 = vmatpush1.bf16.msra.mxu0 0
    %360 = vmatprep.subr.bf16.mxu0 0
    %361 = vmatpush1.bf16.msra.mxu0 0
    %362 = vmatprep.subr.bf16.mxu0 0
    %363 = vmatpush1.bf16.msra.mxu0 0
    %364 = vmatprep.mubr.bf16.mxu0 0
    %365 = vmatmul.mubr.bf16.gmra.mrb[0].mxu0 %v183
    %v366 = vpop.f32.mrb[0].mxu0
    %v367 = vadd.f32 %v142, %v366
    %v368 = vpop.f32.mrb[0].mxu0
    %v369 = vadd.f32 %v146, %v368
    %v370 = vpop.f32.mrb[0].mxu0
    %v371 = vadd.f32 %v142, %v370
    %v372 = vpop.f32.mrb[0].mxu0
    %v373 = vadd.f32 %v146, %v372
    %374 = vmatprep.mubr.bf16.mxu0 0
    %375 = vmatmul.mubr.bf16.gmra.mrb[0].mxu0 %v186
    %v376 = vpop.f32.mrb[0].mxu0
    %v377 = vadd.f32 %v142, %v376
    %v378 = vpop.f32.mrb[0].mxu0
    %v379 = vadd.f32 %v146, %v378
    %v380 = vpop.f32.mrb[0].mxu0
    %v381 = vadd.f32 %v142, %v380
    %v382 = vpop.f32.mrb[0].mxu0
    %v383 = vadd.f32 %v146, %v382
    %384 = vmatprep.mubr.bf16.mxu0 0
    %385 = vmatmul.mubr.bf16.gmra.mrb[0].mxu0 %v189
    %v386 = vpop.f32.mrb[0].mxu0
    %v387 = vadd.f32 %v142, %v386
    %v388 = vpop.f32.mrb[0].mxu0
    %v389 = vadd.f32 %v146, %v388
    %v390 = vpop.f32.mrb[0].mxu0
    %v391 = vadd.f32 %v142, %v390
    %v392 = vpop.f32.mrb[0].mxu0
    %v393 = vadd.f32 %v146, %v392
    %394 = vmatprep.mubr.bf16.mxu0 0
    %395 = vmatmul.mubr.bf16.gmra.mrb[0].mxu0 %v192
    %v396 = vpop.f32.mrb[0].mxu0
    %v397 = vadd.f32 %v142, %v396
    %v398 = vpop.f32.mrb[0].mxu0
    %v399 = vadd.f32 %v146, %v398
    %v400 = vpop.f32.mrb[0].mxu0
    %v401 = vadd.f32 %v142, %v400
    %v402 = vpop.f32.mrb[0].mxu0
    %v403 = vadd.f32 %v146, %v402
    %404 = vmatprep.mubr.bf16.mxu0 0
    %405 = vmatmul.mubr.bf16.gmra.mrb[0].mxu0 %v195
    %v406 = vpop.f32.mrb[0].mxu0
    %v407 = vadd.f32 %v142, %v406
    %v408 = vpop.f32.mrb[0].mxu0
    %v409 = vadd.f32 %v146, %v408
    %v410 = vpop.f32.mrb[0].mxu0
    %v411 = vadd.f32 %v142, %v410
    %v412 = vpop.f32.mrb[0].mxu0
    %v413 = vadd.f32 %v146, %v412
    %414 = vmatprep.mubr.bf16.mxu0 0
    %415 = vmatmul.mubr.bf16.gmra.mrb[0].mxu0 %v198
    %v416 = vpop.f32.mrb[0].mxu0
    %v417 = vadd.f32 %v142, %v416
    %v418 = vpop.f32.mrb[0].mxu0
    %v419 = vadd.f32 %v146, %v418
    %v420 = vpop.f32.mrb[0].mxu0
    %v421 = vadd.f32 %v142, %v420
    %v422 = vpop.f32.mrb[0].mxu0
    %v423 = vadd.f32 %v146, %v422
    %424 = vmatprep.mubr.bf16.mxu0 0
    %425 = vmatmul.mubr.bf16.gmra.mrb[0].mxu0 %v201
    %v426 = vpop.f32.mrb[0].mxu0
    %v427 = vadd.f32 %v142, %v426
    %v428 = vpop.f32.mrb[0].mxu0
    %v429 = vadd.f32 %v146, %v428
    %v430 = vpop.f32.mrb[0].mxu0
    %v431 = vadd.f32 %v142, %v430
    %v432 = vpop.f32.mrb[0].mxu0
    %v433 = vadd.f32 %v146, %v432
    %434 = vmatprep.mubr.bf16.mxu0 0
    %435 = vmatmul.mubr.bf16.gmra.mrb[0].mxu0 %v204
    %v436 = vpop.f32.mrb[0].mxu0
    %v437 = vadd.f32 %v142, %v436
    %v438 = vpop.f32.mrb[0].mxu0
    %v439 = vadd.f32 %v146, %v438
    %v440 = vpop.f32.mrb[0].mxu0
    %v441 = vadd.f32 %v142, %v440
    %v442 = vpop.f32.mrb[0].mxu0
    %v443 = vadd.f32 %v146, %v442
    %444 = vdwg.mxu0
    %v445 = vld [vmem:[#allocation7] sm:$0xff]
    %v446 = vld [vmem:[#allocation7 + $0x8] sm:$0xff]
    %v447 = vld [vmem:[#allocation7 + $0x10] sm:$0xff]
    %v448 = vld [vmem:[#allocation7 + $0x18] sm:$0xff]
    %v449 = vld [vmem:[#allocation7 + $0x20] sm:$0xff]
    %v450 = vld [vmem:[#allocation7 + $0x28] sm:$0xff]
    %v451 = vld [vmem:[#allocation7 + $0x30] sm:$0xff]
    %v452 = vld [vmem:[#allocation7 + $0x38] sm:$0xff]
    %v453 = vld [vmem:[#allocation7 + $0x40] sm:$0xff]
    %v454 = vld [vmem:[#allocation7 + $0x48] sm:$0xff]
    %v455 = vld [vmem:[#allocation7 + $0x50] sm:$0xff]
    %v456 = vld [vmem:[#allocation7 + $0x58] sm:$0xff]
    %v457 = vld [vmem:[#allocation7 + $0x60] sm:$0xff]
    %v458 = vld [vmem:[#allocation7 + $0x68] sm:$0xff]
    %v459 = vld [vmem:[#allocation7 + $0x70] sm:$0xff]
    %v460 = vld [vmem:[#allocation7 + $0x78] sm:$0xff]
    %v461 = vld [vmem:[#allocation7 + $0x80] sm:$0xff]
    %v462 = vld [vmem:[#allocation7 + $0x88] sm:$0xff]
    %v463 = vld [vmem:[#allocation7 + $0x90] sm:$0xff]
    %v464 = vld [vmem:[#allocation7 + $0x98] sm:$0xff]
    %v465 = vld [vmem:[#allocation7 + $0xa0] sm:$0xff]
    %v466 = vld [vmem:[#allocation7 + $0xa8] sm:$0xff]
    %v467 = vld [vmem:[#allocation7 + $0xb0] sm:$0xff]
    %v468 = vld [vmem:[#allocation7 + $0xb8] sm:$0xff]
    %v469 = vld [vmem:[#allocation7 + $0xc0] sm:$0xff]
    %v470 = vld [vmem:[#allocation7 + $0xc8] sm:$0xff]
    %v471 = vld [vmem:[#allocation7 + $0xd0] sm:$0xff]
    %v472 = vld [vmem:[#allocation7 + $0xd8] sm:$0xff]
    %v473 = vld [vmem:[#allocation7 + $0xe0] sm:$0xff]
    %v474 = vld [vmem:[#allocation7 + $0xe8] sm:$0xff]
    %v475 = vld [vmem:[#allocation7 + $0xf0] sm:$0xff]
    %v476 = vld [vmem:[#allocation7 + $0xf8] sm:$0xff]
    %v509 = vunpack.c.l.b16 %v445
    %v510 = vunpack.c.h.b16 %v445
    %v511 = vunpack.c.l.b16 %v446
    %v512 = vunpack.c.h.b16 %v446
    %v513 = vunpack.c.l.b16 %v447
    %v514 = vunpack.c.h.b16 %v447
    %v515 = vunpack.c.l.b16 %v448
    %v516 = vunpack.c.h.b16 %v448
    %v517 = vunpack.c.l.b16 %v449
    %v518 = vunpack.c.h.b16 %v449
    %v519 = vunpack.c.l.b16 %v450
    %v520 = vunpack.c.h.b16 %v450
    %v521 = vunpack.c.l.b16 %v451
    %v522 = vunpack.c.h.b16 %v451
    %v523 = vunpack.c.l.b16 %v452
    %v524 = vunpack.c.h.b16 %v452
    %v525 = vunpack.c.l.b16 %v453
    %v526 = vunpack.c.h.b16 %v453
    %v527 = vunpack.c.l.b16 %v454
    %v528 = vunpack.c.h.b16 %v454
    %v529 = vunpack.c.l.b16 %v455
    %v530 = vunpack.c.h.b16 %v455
    %v531 = vunpack.c.l.b16 %v456
    %v532 = vunpack.c.h.b16 %v456
    %v533 = vunpack.c.l.b16 %v457
    %v534 = vunpack.c.h.b16 %v457
    %v535 = vunpack.c.l.b16 %v458
    %v536 = vunpack.c.h.b16 %v458
    %v537 = vunpack.c.l.b16 %v459
    %v538 = vunpack.c.h.b16 %v459
    %v539 = vunpack.c.l.b16 %v460
    %v540 = vunpack.c.h.b16 %v460
    %v541 = vunpack.c.l.b16 %v461
    %v542 = vunpack.c.h.b16 %v461
    %v543 = vunpack.c.l.b16 %v462
    %v544 = vunpack.c.h.b16 %v462
    %v545 = vunpack.c.l.b16 %v463
    %v546 = vunpack.c.h.b16 %v463
    %v547 = vunpack.c.l.b16 %v464
    %v548 = vunpack.c.h.b16 %v464
    %v549 = vunpack.c.l.b16 %v465
    %v550 = vunpack.c.h.b16 %v465
    %v551 = vunpack.c.l.b16 %v466
    %v552 = vunpack.c.h.b16 %v466
    %v553 = vunpack.c.l.b16 %v467
    %v554 = vunpack.c.h.b16 %v467
    %v555 = vunpack.c.l.b16 %v468
    %v556 = vunpack.c.h.b16 %v468
    %v557 = vunpack.c.l.b16 %v469
    %v558 = vunpack.c.h.b16 %v469
    %v559 = vunpack.c.l.b16 %v470
    %v560 = vunpack.c.h.b16 %v470
    %v561 = vunpack.c.l.b16 %v471
    %v562 = vunpack.c.h.b16 %v471
    %v563 = vunpack.c.l.b16 %v472
    %v564 = vunpack.c.h.b16 %v472
    %v565 = vunpack.c.l.b16 %v473
    %v566 = vunpack.c.h.b16 %v473
    %v567 = vunpack.c.l.b16 %v474
    %v568 = vunpack.c.h.b16 %v474
    %v569 = vunpack.c.l.b16 %v475
    %v570 = vunpack.c.h.b16 %v475
    %v571 = vunpack.c.l.b16 %v476
    %v572 = vunpack.c.h.b16 %v476
    %v573 = vpack.c.b16 %v513, %v509
    %v574 = vpack.c.b16 %v514, %v510
    %v575 = vpack.c.b16 %v515, %v511
    %v576 = vpack.c.b16 %v516, %v512
    %v577 = vpack.c.b16 %v521, %v517
    %v578 = vpack.c.b16 %v522, %v518
    %v579 = vpack.c.b16 %v523, %v519
    %v580 = vpack.c.b16 %v524, %v520
    %v581 = vpack.c.b16 %v529, %v525
    %v582 = vpack.c.b16 %v530, %v526
    %v583 = vpack.c.b16 %v531, %v527
    %v584 = vpack.c.b16 %v532, %v528
    %v585 = vpack.c.b16 %v537, %v533
    %v586 = vpack.c.b16 %v538, %v534
    %v587 = vpack.c.b16 %v539, %v535
    %v588 = vpack.c.b16 %v540, %v536
    %v589 = vpack.c.b16 %v545, %v541
    %v590 = vpack.c.b16 %v546, %v542
    %v591 = vpack.c.b16 %v547, %v543
    %v592 = vpack.c.b16 %v548, %v544
    %v593 = vpack.c.b16 %v553, %v549
    %v594 = vpack.c.b16 %v554, %v550
    %v595 = vpack.c.b16 %v555, %v551
    %v596 = vpack.c.b16 %v556, %v552
    %v597 = vpack.c.b16 %v561, %v557
    %v598 = vpack.c.b16 %v562, %v558
    %v599 = vpack.c.b16 %v563, %v559
    %v600 = vpack.c.b16 %v564, %v560
    %v601 = vpack.c.b16 %v569, %v565
    %v602 = vpack.c.b16 %v570, %v566
    %v603 = vpack.c.b16 %v571, %v567
    %v604 = vpack.c.b16 %v572, %v568
    %637 = vmatprep.subr.bf16.mxu0 %v574
    %638 = vmatpush1.bf16.msra.mxu0 %v573
    %639 = vmatprep.subr.bf16.mxu0 %v578
    %640 = vmatpush1.bf16.msra.mxu0 %v577
    %641 = vmatprep.subr.bf16.mxu0 %v582
    %642 = vmatpush1.bf16.msra.mxu0 %v581
    %643 = vmatprep.subr.bf16.mxu0 %v586
    %644 = vmatpush1.bf16.msra.mxu0 %v585
    %645 = vmatprep.subr.bf16.mxu0 %v590
    %646 = vmatpush1.bf16.msra.mxu0 %v589
    %647 = vmatprep.subr.bf16.mxu0 %v594
    %648 = vmatpush1.bf16.msra.mxu0 %v593
    %649 = vmatprep.subr.bf16.mxu0 %v598
    %650 = vmatpush1.bf16.msra.mxu0 %v597
    %651 = vmatprep.subr.bf16.mxu0 %v602
    %652 = vmatpush1.bf16.msra.mxu0 %v601
    %653 = vmatprep.subr.bf16.mxu0 0
    %654 = vmatpush1.bf16.msra.mxu0 0
    %655 = vmatprep.subr.bf16.mxu0 0
    %656 = vmatpush1.bf16.msra.mxu0 0
    %657 = vmatprep.subr.bf16.mxu0 0
    %658 = vmatpush1.bf16.msra.mxu0 0
    %659 = vmatprep.subr.bf16.mxu0 0
    %660 = vmatpush1.bf16.msra.mxu0 0
    %661 = vmatprep.subr.bf16.mxu0 0
    %662 = vmatpush1.bf16.msra.mxu0 0
    %663 = vmatprep.subr.bf16.mxu0 0
    %664 = vmatpush1.bf16.msra.mxu0 0
    %665 = vmatprep.subr.bf16.mxu0 0
    %666 = vmatpush1.bf16.msra.mxu0 0
    %667 = vmatprep.subr.bf16.mxu0 0
    %668 = vmatpush1.bf16.msra.mxu0 0
    %669 = vmatprep.mubr.bf16.mxu0 0
    %670 = vmatmul.mubr.bf16.gmra.mrb[0].mxu0 0
    %v671 = vpop.f32.mrb[0].mxu0
    %v672 = vadd.f32 0.0, %v671
    %v673 = vpop.f32.mrb[0].mxu0
    %v674 = vadd.f32 0.0, %v673
    %v675 = vpop.f32.mrb[0].mxu0
    %v676 = vadd.f32 0.0, %v675
    %v677 = vpop.f32.mrb[0].mxu0
    %v678 = vadd.f32 0.0, %v677
    %679 = vdwg.mxu0
    %680 = vmatprep.subr.bf16.mxu0 %v576
    %681 = vmatpush1.bf16.msra.mxu0 %v575
    %682 = vmatprep.subr.bf16.mxu0 %v580
    %683 = vmatpush1.bf16.msra.mxu0 %v579
    %684 = vmatprep.subr.bf16.mxu0 %v584
    %685 = vmatpush1.bf16.msra.mxu0 %v583
    %686 = vmatprep.subr.bf16.mxu0 %v588
    %687 = vmatpush1.bf16.msra.mxu0 %v587
    %688 = vmatprep.subr.bf16.mxu0 %v592
    %689 = vmatpush1.bf16.msra.mxu0 %v591
    %690 = vmatprep.subr.bf16.mxu0 %v596
    %691 = vmatpush1.bf16.msra.mxu0 %v595
    %692 = vmatprep.subr.bf16.mxu0 %v600
    %693 = vmatpush1.bf16.msra.mxu0 %v599
    %694 = vmatprep.subr.bf16.mxu0 %v604
    %695 = vmatpush1.bf16.msra.mxu0 %v603
    %696 = vmatprep.subr.bf16.mxu0 0
    %697 = vmatpush1.bf16.msra.mxu0 0
    %698 = vmatprep.subr.bf16.mxu0 0
    %699 = vmatpush1.bf16.msra.mxu0 0
    %700 = vmatprep.subr.bf16.mxu0 0
    %701 = vmatpush1.bf16.msra.mxu0 0
    %702 = vmatprep.subr.bf16.mxu0 0
    %703 = vmatpush1.bf16.msra.mxu0 0
    %704 = vmatprep.subr.bf16.mxu0 0
    %705 = vmatpush1.bf16.msra.mxu0 0
    %706 = vmatprep.subr.bf16.mxu0 0
    %707 = vmatpush1.bf16.msra.mxu0 0
    %708 = vmatprep.subr.bf16.mxu0 0
    %709 = vmatpush1.bf16.msra.mxu0 0
    %710 = vmatprep.subr.bf16.mxu0 0
    %711 = vmatpush1.bf16.msra.mxu0 0
    %712 = vmatprep.mubr.bf16.mxu0 0
    %713 = vmatmul.mubr.bf16.gmra.mrb[0].mxu0 0
    %v714 = vpop.f32.mrb[0].mxu0
    %v715 = vadd.f32 0.0, %v714
    %v716 = vpop.f32.mrb[0].mxu0
    %v717 = vadd.f32 0.0, %v716
    %v718 = vpop.f32.mrb[0].mxu0
    %v719 = vadd.f32 0.0, %v718
    %v720 = vpop.f32.mrb[0].mxu0
    %v721 = vadd.f32 0.0, %v720
    %722 = vdwg.mxu0
    %v723 = vadd.f32 %v254, %v672
    %v724 = vadd.f32 %v256, %v674
    %v725 = vadd.f32 %v367, %v715
    %v726 = vadd.f32 %v369, %v717
    %v727 = vadd.f32 %v258, %v676
    %v728 = vadd.f32 %v260, %v678
    %v729 = vadd.f32 %v371, %v719
    %v730 = vadd.f32 %v373, %v721
    %v731 = vxor.u32 %v723, 2147483648
    %v732 = vxor.u32 %v727, 2147483648
    %v733 = vmul.f32 %v731, 1.442695
    %v734 = vpow.pop %v733
    %v735 = vmul.f32 %v732, 1.442695
    %v736 = vpow.pop %v735
    %v737 = vadd.f32 %v734, 1.0
    %v738 = vadd.f32 %v736, 1.0
    %v739 = vrcp.pop %v737
    %v740 = vmul.f32 1.0, %v739
    %v741 = vrcp.pop %v738
    %v742 = vmul.f32 1.0, %v741
    %v743 = vxor.u32 %v724, 2147483648
    %v744 = vxor.u32 %v728, 2147483648
    %v745 = vmul.f32 %v743, 1.442695
    %v746 = vpow.pop %v745
    %v747 = vmul.f32 %v744, 1.442695
    %v748 = vpow.pop %v747
    %v749 = vadd.f32 %v746, 1.0
    %v750 = vadd.f32 %v748, 1.0
    %v751 = vrcp.pop %v749
    %v752 = vmul.f32 1.0, %v751
    %v753 = vrcp.pop %v750
    %v754 = vmul.f32 1.0, %v753
    %v755 = vtanh.pop %v725
    %v756 = vtanh.pop %v729
    %v757 = vxor.u32 %v726, 2147483648
    %v758 = vxor.u32 %v730, 2147483648
    %v759 = vmul.f32 %v757, 1.442695
    %v760 = vpow.pop %v759
    %v761 = vmul.f32 %v758, 1.442695
    %v762 = vpow.pop %v761
    %v763 = vadd.f32 %v760, 1.0
    %v764 = vadd.f32 %v762, 1.0
    %v765 = vrcp.pop %v763
    %v766 = vmul.f32 1.0, %v765
    %v767 = vrcp.pop %v764
    %v768 = vmul.f32 1.0, %v767
    %v769 = vmul.f32 %v752, 0.0
    %v770 = vmul.f32 %v754, 0.0
    %v771 = vmul.f32 %v740, %v755
    %v772 = vmul.f32 %v742, %v756
    %v773 = vadd.f32 %v769, %v771
    %v774 = vadd.f32 %v770, %v772
    %v775 = vtanh.pop %v773
    %v776 = vtanh.pop %v774
    %v777 = vmul.f32 %v766, %v775
    %v778 = vmul.f32 %v768, %v776
    %v779 = vpack.c.bf16 %v778, %v777
    %v780 = vld [vmem:[#allocation8] sm:$0xff]
    %v781 = vld [vmem:[#allocation8 + $0x8] sm:$0xff]
    %v782 = vld [vmem:[#allocation8 + $0x10] sm:$0xff]
    %v783 = vld [vmem:[#allocation8 + $0x18] sm:$0xff]
    %v784 = vld [vmem:[#allocation8 + $0x20] sm:$0xff]
    %v785 = vld [vmem:[#allocation8 + $0x28] sm:$0xff]
    %v786 = vld [vmem:[#allocation8 + $0x30] sm:$0xff]
    %v787 = vld [vmem:[#allocation8 + $0x38] sm:$0xff]
    %v788 = vld [vmem:[#allocation8 + $0x40] sm:$0xff]
    %v789 = vld [vmem:[#allocation8 + $0x48] sm:$0xff]
    %v790 = vld [vmem:[#allocation8 + $0x50] sm:$0xff]
    %v791 = vld [vmem:[#allocation8 + $0x58] sm:$0xff]
    %v792 = vld [vmem:[#allocation8 + $0x60] sm:$0xff]
    %v793 = vld [vmem:[#allocation8 + $0x68] sm:$0xff]
    %v794 = vld [vmem:[#allocation8 + $0x70] sm:$0xff]
    %v795 = vld [vmem:[#allocation8 + $0x78] sm:$0xff]
    %v796 = vld [vmem:[#allocation8 + $0x80] sm:$0xff]
    %v797 = vld [vmem:[#allocation8 + $0x88] sm:$0xff]
    %v798 = vld [vmem:[#allocation8 + $0x90] sm:$0xff]
    %v799 = vld [vmem:[#allocation8 + $0x98] sm:$0xff]
    %v800 = vld [vmem:[#allocation8 + $0xa0] sm:$0xff]
    %v801 = vld [vmem:[#allocation8 + $0xa8] sm:$0xff]
    %v802 = vld [vmem:[#allocation8 + $0xb0] sm:$0xff]
    %v803 = vld [vmem:[#allocation8 + $0xb8] sm:$0xff]
    %v804 = vld [vmem:[#allocation8 + $0xc0] sm:$0xff]
    %v805 = vld [vmem:[#allocation8 + $0xc8] sm:$0xff]
    %v806 = vld [vmem:[#allocation8 + $0xd0] sm:$0xff]
    %v807 = vld [vmem:[#allocation8 + $0xd8] sm:$0xff]
    %v808 = vld [vmem:[#allocation8 + $0xe0] sm:$0xff]
    %v809 = vld [vmem:[#allocation8 + $0xe8] sm:$0xff]
    %v810 = vld [vmem:[#allocation8 + $0xf0] sm:$0xff]
    %v811 = vld [vmem:[#allocation8 + $0xf8] sm:$0xff]
    %v812 = vld [vmem:[#allocation8 + $0x100] sm:$0xff]
    %v813 = vld [vmem:[#allocation8 + $0x108] sm:$0xff]
    %v814 = vld [vmem:[#allocation8 + $0x110] sm:$0xff]
    %v815 = vld [vmem:[#allocation8 + $0x118] sm:$0xff]
    %v816 = vld [vmem:[#allocation8 + $0x120] sm:$0xff]
    %v817 = vld [vmem:[#allocation8 + $0x128] sm:$0xff]
    %v818 = vld [vmem:[#allocation8 + $0x130] sm:$0xff]
    %v819 = vld [vmem:[#allocation8 + $0x138] sm:$0xff]
    %v820 = vld [vmem:[#allocation8 + $0x140] sm:$0xff]
    %v821 = vld [vmem:[#allocation8 + $0x148] sm:$0xff]
    %v822 = vld [vmem:[#allocation8 + $0x150] sm:$0xff]
    %v823 = vld [vmem:[#allocation8 + $0x158] sm:$0xff]
    %v824 = vld [vmem:[#allocation8 + $0x160] sm:$0xff]
    %v825 = vld [vmem:[#allocation8 + $0x168] sm:$0xff]
    %v826 = vld [vmem:[#allocation8 + $0x170] sm:$0xff]
    %v827 = vld [vmem:[#allocation8 + $0x178] sm:$0xff]
    %v828 = vld [vmem:[#allocation8 + $0x180] sm:$0xff]
    %v829 = vld [vmem:[#allocation8 + $0x188] sm:$0xff]
    %v830 = vld [vmem:[#allocation8 + $0x190] sm:$0xff]
    %v831 = vld [vmem:[#allocation8 + $0x198] sm:$0xff]
    %v832 = vld [vmem:[#allocation8 + $0x1a0] sm:$0xff]
    %v833 = vld [vmem:[#allocation8 + $0x1a8] sm:$0xff]
    %v834 = vld [vmem:[#allocation8 + $0x1b0] sm:$0xff]
    %v835 = vld [vmem:[#allocation8 + $0x1b8] sm:$0xff]
    %v836 = vld [vmem:[#allocation8 + $0x1c0] sm:$0xff]
    %v837 = vld [vmem:[#allocation8 + $0x1c8] sm:$0xff]
    %v838 = vld [vmem:[#allocation8 + $0x1d0] sm:$0xff]
    %v839 = vld [vmem:[#allocation8 + $0x1d8] sm:$0xff]
    %v840 = vld [vmem:[#allocation8 + $0x1e0] sm:$0xff]
    %v841 = vld [vmem:[#allocation8 + $0x1e8] sm:$0xff]
    %v842 = vld [vmem:[#allocation8 + $0x1f0] sm:$0xff]
    %v843 = vld [vmem:[#allocation8 + $0x1f8] sm:$0xff]
    %v844 = vld [vmem:[%s5] sm:$0xf]
    %v846 = vlaneseq
    %v847 = vshrl.u32 %v846, 7
    %v848 = vsub.s32 0, %v847
    %v849 = vrot.slane %v844, %v848
    %v850 = vlaneseq
    %v851 = vshrl.u32 %v850, 7
    %v852 = vsub.s32 1, %v851
    %v853 = vrot.slane %v844, %v852
    %v854 = vlaneseq
    %v855 = vshrl.u32 %v854, 7
    %v856 = vsub.s32 2, %v855
    %v857 = vrot.slane %v844, %v856
    %v858 = vlaneseq
    %v859 = vshrl.u32 %v858, 7
    %v860 = vsub.s32 3, %v859
    %v861 = vrot.slane %v844, %v860
    %v930 = vunpack.c.l.b16 %v780
    %v931 = vunpack.c.h.b16 %v780
    %v932 = vunpack.c.l.b16 %v781
    %v933 = vunpack.c.h.b16 %v781
    %v934 = vunpack.c.l.b16 %v782
    %v935 = vunpack.c.h.b16 %v782
    %v936 = vunpack.c.l.b16 %v783
    %v937 = vunpack.c.h.b16 %v783
    %v938 = vunpack.c.l.b16 %v784
    %v939 = vunpack.c.h.b16 %v784
    %v940 = vunpack.c.l.b16 %v785
    %v941 = vunpack.c.h.b16 %v785
    %v942 = vunpack.c.l.b16 %v786
    %v943 = vunpack.c.h.b16 %v786
    %v944 = vunpack.c.l.b16 %v787
    %v945 = vunpack.c.h.b16 %v787
    %v946 = vunpack.c.l.b16 %v788
    %v947 = vunpack.c.h.b16 %v788
    %v948 = vunpack.c.l.b16 %v789
    %v949 = vunpack.c.h.b16 %v789
    %v950 = vunpack.c.l.b16 %v790
    %v951 = vunpack.c.h.b16 %v790
    %v952 = vunpack.c.l.b16 %v791
    %v953 = vunpack.c.h.b16 %v791
    %v954 = vunpack.c.l.b16 %v792
    %v955 = vunpack.c.h.b16 %v792
    %v956 = vunpack.c.l.b16 %v793
    %v957 = vunpack.c.h.b16 %v793
    %v958 = vunpack.c.l.b16 %v794
    %v959 = vunpack.c.h.b16 %v794
    %v960 = vunpack.c.l.b16 %v795
    %v961 = vunpack.c.h.b16 %v795
    %v962 = vunpack.c.l.b16 %v796
    %v963 = vunpack.c.h.b16 %v796
    %v964 = vunpack.c.l.b16 %v797
    %v965 = vunpack.c.h.b16 %v797
    %v966 = vunpack.c.l.b16 %v798
    %v967 = vunpack.c.h.b16 %v798
    %v968 = vunpack.c.l.b16 %v799
    %v969 = vunpack.c.h.b16 %v799
    %v970 = vunpack.c.l.b16 %v800
    %v971 = vunpack.c.h.b16 %v800
    %v972 = vunpack.c.l.b16 %v801
    %v973 = vunpack.c.h.b16 %v801
    %v974 = vunpack.c.l.b16 %v802
    %v975 = vunpack.c.h.b16 %v802
    %v976 = vunpack.c.l.b16 %v803
    %v977 = vunpack.c.h.b16 %v803
    %v978 = vunpack.c.l.b16 %v804
    %v979 = vunpack.c.h.b16 %v804
    %v980 = vunpack.c.l.b16 %v805
    %v981 = vunpack.c.h.b16 %v805
    %v982 = vunpack.c.l.b16 %v806
    %v983 = vunpack.c.h.b16 %v806
    %v984 = vunpack.c.l.b16 %v807
    %v985 = vunpack.c.h.b16 %v807
    %v986 = vunpack.c.l.b16 %v808
    %v987 = vunpack.c.h.b16 %v808
    %v988 = vunpack.c.l.b16 %v809
    %v989 = vunpack.c.h.b16 %v809
    %v990 = vunpack.c.l.b16 %v810
    %v991 = vunpack.c.h.b16 %v810
    %v992 = vunpack.c.l.b16 %v811
    %v993 = vunpack.c.h.b16 %v811
    %v994 = vunpack.c.l.b16 %v812
    %v995 = vunpack.c.h.b16 %v812
    %v996 = vunpack.c.l.b16 %v813
    %v997 = vunpack.c.h.b16 %v813
    %v998 = vunpack.c.l.b16 %v814
    %v999 = vunpack.c.h.b16 %v814
    %v1000 = vunpack.c.l.b16 %v815
    %v1001 = vunpack.c.h.b16 %v815
    %v1002 = vunpack.c.l.b16 %v816
    %v1003 = vunpack.c.h.b16 %v816
    %v1004 = vunpack.c.l.b16 %v817
    %v1005 = vunpack.c.h.b16 %v817
    %v1006 = vunpack.c.l.b16 %v818
    %v1007 = vunpack.c.h.b16 %v818
    %v1008 = vunpack.c.l.b16 %v819
    %v1009 = vunpack.c.h.b16 %v819
    %v1010 = vunpack.c.l.b16 %v820
    %v1011 = vunpack.c.h.b16 %v820
    %v1012 = vunpack.c.l.b16 %v821
    %v1013 = vunpack.c.h.b16 %v821
    %v1014 = vunpack.c.l.b16 %v822
    %v1015 = vunpack.c.h.b16 %v822
    %v1016 = vunpack.c.l.b16 %v823
    %v1017 = vunpack.c.h.b16 %v823
    %v1018 = vunpack.c.l.b16 %v824
    %v1019 = vunpack.c.h.b16 %v824
    %v1020 = vunpack.c.l.b16 %v825
    %v1021 = vunpack.c.h.b16 %v825
    %v1022 = vunpack.c.l.b16 %v826
    %v1023 = vunpack.c.h.b16 %v826
    %v1024 = vunpack.c.l.b16 %v827
    %v1025 = vunpack.c.h.b16 %v827
    %v1026 = vunpack.c.l.b16 %v828
    %v1027 = vunpack.c.h.b16 %v828
    %v1028 = vunpack.c.l.b16 %v829
    %v1029 = vunpack.c.h.b16 %v829
    %v1030 = vunpack.c.l.b16 %v830
    %v1031 = vunpack.c.h.b16 %v830
    %v1032 = vunpack.c.l.b16 %v831
    %v1033 = vunpack.c.h.b16 %v831
    %v1034 = vunpack.c.l.b16 %v832
    %v1035 = vunpack.c.h.b16 %v832
    %v1036 = vunpack.c.l.b16 %v833
    %v1037 = vunpack.c.h.b16 %v833
    %v1038 = vunpack.c.l.b16 %v834
    %v1039 = vunpack.c.h.b16 %v834
    %v1040 = vunpack.c.l.b16 %v835
    %v1041 = vunpack.c.h.b16 %v835
    %v1042 = vunpack.c.l.b16 %v836
    %v1043 = vunpack.c.h.b16 %v836
    %v1044 = vunpack.c.l.b16 %v837
    %v1045 = vunpack.c.h.b16 %v837
    %v1046 = vunpack.c.l.b16 %v838
    %v1047 = vunpack.c.h.b16 %v838
    %v1048 = vunpack.c.l.b16 %v839
    %v1049 = vunpack.c.h.b16 %v839
    %v1050 = vunpack.c.l.b16 %v840
    %v1051 = vunpack.c.h.b16 %v840
    %v1052 = vunpack.c.l.b16 %v841
    %v1053 = vunpack.c.h.b16 %v841
    %v1054 = vunpack.c.l.b16 %v842
    %v1055 = vunpack.c.h.b16 %v842
    %v1056 = vunpack.c.l.b16 %v843
    %v1057 = vunpack.c.h.b16 %v843
    %v1058 = vpack.c.b16 %v934, %v930
    %v1059 = vpack.c.b16 %v935, %v931
    %v1060 = vpack.c.b16 %v936, %v932
    %v1061 = vpack.c.b16 %v937, %v933
    %v1062 = vpack.c.b16 %v942, %v938
    %v1063 = vpack.c.b16 %v943, %v939
    %v1064 = vpack.c.b16 %v944, %v940
    %v1065 = vpack.c.b16 %v945, %v941
    %v1066 = vpack.c.b16 %v950, %v946
    %v1067 = vpack.c.b16 %v951, %v947
    %v1068 = vpack.c.b16 %v952, %v948
    %v1069 = vpack.c.b16 %v953, %v949
    %v1070 = vpack.c.b16 %v958, %v954
    %v1071 = vpack.c.b16 %v959, %v955
    %v1072 = vpack.c.b16 %v960, %v956
    %v1073 = vpack.c.b16 %v961, %v957
    %v1074 = vpack.c.b16 %v966, %v962
    %v1075 = vpack.c.b16 %v967, %v963
    %v1076 = vpack.c.b16 %v968, %v964
    %v1077 = vpack.c.b16 %v969, %v965
    %v1078 = vpack.c.b16 %v974, %v970
    %v1079 = vpack.c.b16 %v975, %v971
    %v1080 = vpack.c.b16 %v976, %v972
    %v1081 = vpack.c.b16 %v977, %v973
    %v1082 = vpack.c.b16 %v982, %v978
    %v1083 = vpack.c.b16 %v983, %v979
    %v1084 = vpack.c.b16 %v984, %v980
    %v1085 = vpack.c.b16 %v985, %v981
    %v1086 = vpack.c.b16 %v990, %v986
    %v1087 = vpack.c.b16 %v991, %v987
    %v1088 = vpack.c.b16 %v992, %v988
    %v1089 = vpack.c.b16 %v993, %v989
    %v1090 = vpack.c.b16 %v998, %v994
    %v1091 = vpack.c.b16 %v999, %v995
    %v1092 = vpack.c.b16 %v1000, %v996
    %v1093 = vpack.c.b16 %v1001, %v997
    %v1094 = vpack.c.b16 %v1006, %v1002
    %v1095 = vpack.c.b16 %v1007, %v1003
    %v1096 = vpack.c.b16 %v1008, %v1004
    %v1097 = vpack.c.b16 %v1009, %v1005
    %v1098 = vpack.c.b16 %v1014, %v1010
    %v1099 = vpack.c.b16 %v1015, %v1011
    %v1100 = vpack.c.b16 %v1016, %v1012
    %v1101 = vpack.c.b16 %v1017, %v1013
    %v1102 = vpack.c.b16 %v1022, %v1018
    %v1103 = vpack.c.b16 %v1023, %v1019
    %v1104 = vpack.c.b16 %v1024, %v1020
    %v1105 = vpack.c.b16 %v1025, %v1021
    %v1106 = vpack.c.b16 %v1030, %v1026
    %v1107 = vpack.c.b16 %v1031, %v1027
    %v1108 = vpack.c.b16 %v1032, %v1028
    %v1109 = vpack.c.b16 %v1033, %v1029
    %v1110 = vpack.c.b16 %v1038, %v1034
    %v1111 = vpack.c.b16 %v1039, %v1035
    %v1112 = vpack.c.b16 %v1040, %v1036
    %v1113 = vpack.c.b16 %v1041, %v1037
    %v1114 = vpack.c.b16 %v1046, %v1042
    %v1115 = vpack.c.b16 %v1047, %v1043
    %v1116 = vpack.c.b16 %v1048, %v1044
    %v1117 = vpack.c.b16 %v1049, %v1045
    %v1118 = vpack.c.b16 %v1054, %v1050
    %v1119 = vpack.c.b16 %v1055, %v1051
    %v1120 = vpack.c.b16 %v1056, %v1052
    %v1121 = vpack.c.b16 %v1057, %v1053
    %1186 = vmatprep.subr.bf16.mxu0 %v1059
    %1187 = vmatpush1.bf16.msra.mxu0 %v1058
    %1188 = vmatprep.subr.bf16.mxu0 %v1063
    %1189 = vmatpush1.bf16.msra.mxu0 %v1062
    %1190 = vmatprep.subr.bf16.mxu0 %v1067
    %1191 = vmatpush1.bf16.msra.mxu0 %v1066
    %1192 = vmatprep.subr.bf16.mxu0 %v1071
    %1193 = vmatpush1.bf16.msra.mxu0 %v1070
    %1194 = vmatprep.subr.bf16.mxu0 %v1075
    %1195 = vmatpush1.bf16.msra.mxu0 %v1074
    %1196 = vmatprep.subr.bf16.mxu0 %v1079
    %1197 = vmatpush1.bf16.msra.mxu0 %v1078
    %1198 = vmatprep.subr.bf16.mxu0 %v1083
    %1199 = vmatpush1.bf16.msra.mxu0 %v1082
    %1200 = vmatprep.subr.bf16.mxu0 %v1087
    %1201 = vmatpush1.bf16.msra.mxu0 %v1086
    %1202 = vmatprep.subr.bf16.mxu0 %v1091
    %1203 = vmatpush1.bf16.msra.mxu0 %v1090
    %1204 = vmatprep.subr.bf16.mxu0 %v1095
    %1205 = vmatpush1.bf16.msra.mxu0 %v1094
    %1206 = vmatprep.subr.bf16.mxu0 %v1099
    %1207 = vmatpush1.bf16.msra.mxu0 %v1098
    %1208 = vmatprep.subr.bf16.mxu0 %v1103
    %1209 = vmatpush1.bf16.msra.mxu0 %v1102
    %1210 = vmatprep.subr.bf16.mxu0 %v1107
    %1211 = vmatpush1.bf16.msra.mxu0 %v1106
    %1212 = vmatprep.subr.bf16.mxu0 %v1111
    %1213 = vmatpush1.bf16.msra.mxu0 %v1110
    %1214 = vmatprep.subr.bf16.mxu0 %v1115
    %1215 = vmatpush1.bf16.msra.mxu0 %v1114
    %1216 = vmatprep.subr.bf16.mxu0 %v1119
    %1217 = vmatpush1.bf16.msra.mxu0 %v1118
    %1218 = vmatprep.mubr.bf16.mxu0 0
    %1219 = vmatmul.mubr.bf16.gmra.mrb[0].mxu0 %v779
    %v1220 = vpop.f32.mrb[0].mxu0
    %v1221 = vadd.f32 %v849, %v1220
    %v1222 = vpop.f32.mrb[0].mxu0
    %v1223 = vadd.f32 %v853, %v1222
    %v1224 = vpop.f32.mrb[0].mxu0
    %v1225 = vadd.f32 %v849, %v1224
    %v1226 = vpop.f32.mrb[0].mxu0
    %v1227 = vadd.f32 %v853, %v1226
    %1228 = vdwg.mxu0
    %1229 = vmatprep.subr.bf16.mxu0 %v1061
    %1230 = vmatpush1.bf16.msra.mxu0 %v1060
    %1231 = vmatprep.subr.bf16.mxu0 %v1065
    %1232 = vmatpush1.bf16.msra.mxu0 %v1064
    %1233 = vmatprep.subr.bf16.mxu0 %v1069
    %1234 = vmatpush1.bf16.msra.mxu0 %v1068
    %1235 = vmatprep.subr.bf16.mxu0 %v1073
    %1236 = vmatpush1.bf16.msra.mxu0 %v1072
    %1237 = vmatprep.subr.bf16.mxu0 %v1077
    %1238 = vmatpush1.bf16.msra.mxu0 %v1076
    %1239 = vmatprep.subr.bf16.mxu0 %v1081
    %1240 = vmatpush1.bf16.msra.mxu0 %v1080
    %1241 = vmatprep.subr.bf16.mxu0 %v1085
    %1242 = vmatpush1.bf16.msra.mxu0 %v1084
    %1243 = vmatprep.subr.bf16.mxu0 %v1089
    %1244 = vmatpush1.bf16.msra.mxu0 %v1088
    %1245 = vmatprep.subr.bf16.mxu0 %v1093
    %1246 = vmatpush1.bf16.msra.mxu0 %v1092
    %1247 = vmatprep.subr.bf16.mxu0 %v1097
    %1248 = vmatpush1.bf16.msra.mxu0 %v1096
    %1249 = vmatprep.subr.bf16.mxu0 %v1101
    %1250 = vmatpush1.bf16.msra.mxu0 %v1100
    %1251 = vmatprep.subr.bf16.mxu0 %v1105
    %1252 = vmatpush1.bf16.msra.mxu0 %v1104
    %1253 = vmatprep.subr.bf16.mxu0 %v1109
    %1254 = vmatpush1.bf16.msra.mxu0 %v1108
    %1255 = vmatprep.subr.bf16.mxu0 %v1113
    %1256 = vmatpush1.bf16.msra.mxu0 %v1112
    %1257 = vmatprep.subr.bf16.mxu0 %v1117
    %1258 = vmatpush1.bf16.msra.mxu0 %v1116
    %1259 = vmatprep.subr.bf16.mxu0 %v1121
    %1260 = vmatpush1.bf16.msra.mxu0 %v1120
    %1261 = vmatprep.mubr.bf16.mxu0 0
    %1262 = vmatmul.mubr.bf16.gmra.mrb[0].mxu0 %v779
    %v1263 = vpop.f32.mrb[0].mxu0
    %v1264 = vadd.f32 %v857, %v1263
    %v1265 = vpop.f32.mrb[0].mxu0
    %v1266 = vadd.f32 %v861, %v1265
    %v1267 = vpop.f32.mrb[0].mxu0
    %v1268 = vadd.f32 %v857, %v1267
    %v1269 = vpop.f32.mrb[0].mxu0
    %v1270 = vadd.f32 %v861, %v1269
    %1271 = vdwg.mxu0
    %v1272 = vxor.u32 %v1221, 2147483648
    %v1273 = vxor.u32 %v1225, 2147483648
    %v1274 = vmul.f32 %v1272, 1.442695
    %v1275 = vpow.pop %v1274
    %v1276 = vmul.f32 %v1273, 1.442695
    %v1277 = vpow.pop %v1276
    %v1278 = vadd.f32 %v1275, 1.0
    %v1279 = vadd.f32 %v1277, 1.0
    %v1280 = vrcp.pop %v1278
    %v1281 = vmul.f32 1.0, %v1280
    %v1282 = vrcp.pop %v1279
    %v1283 = vmul.f32 1.0, %v1282
    %v1284 = vxor.u32 %v1223, 2147483648
    %v1285 = vxor.u32 %v1227, 2147483648
    %v1286 = vmul.f32 %v1284, 1.442695
    %v1287 = vpow.pop %v1286
    %v1288 = vmul.f32 %v1285, 1.442695
    %v1289 = vpow.pop %v1288
    %v1290 = vadd.f32 %v1287, 1.0
    %v1291 = vadd.f32 %v1289, 1.0
    %v1292 = vrcp.pop %v1290
    %v1293 = vmul.f32 1.0, %v1292
    %v1294 = vrcp.pop %v1291
    %v1295 = vmul.f32 1.0, %v1294
    %v1296 = vtanh.pop %v1264
    %v1297 = vtanh.pop %v1268
    %v1298 = vxor.u32 %v1266, 2147483648
    %v1299 = vxor.u32 %v1270, 2147483648
    %v1300 = vmul.f32 %v1298, 1.442695
    %v1301 = vpow.pop %v1300
    %v1302 = vmul.f32 %v1299, 1.442695
    %v1303 = vpow.pop %v1302
    %v1304 = vadd.f32 %v1301, 1.0
    %v1305 = vadd.f32 %v1303, 1.0
    %v1306 = vrcp.pop %v1304
    %v1307 = vmul.f32 1.0, %v1306
    %v1308 = vrcp.pop %v1305
    %v1309 = vmul.f32 1.0, %v1308
    %v1310 = vmul.f32 %v1293, 0.0
    %v1311 = vmul.f32 %v1295, 0.0
    %v1312 = vmul.f32 %v1281, %v1296
    %v1313 = vmul.f32 %v1283, %v1297
    %v1314 = vadd.f32 %v1310, %v1312
    %v1315 = vadd.f32 %v1311, %v1313
    %v1316 = vtanh.pop %v1314
    %v1317 = vtanh.pop %v1315
    %v1318 = vmul.f32 %v1307, %v1316
    %v1319 = vmul.f32 %v1309, %v1317
    %1320 = vmatprep.subr.bf16.mxu0 %v574
    %1321 = vmatpush1.bf16.msra.mxu0 %v573
    %1322 = vmatprep.subr.bf16.mxu0 %v578
    %1323 = vmatpush1.bf16.msra.mxu0 %v577
    %1324 = vmatprep.subr.bf16.mxu0 %v582
    %1325 = vmatpush1.bf16.msra.mxu0 %v581
    %1326 = vmatprep.subr.bf16.mxu0 %v586
    %1327 = vmatpush1.bf16.msra.mxu0 %v585
    %1328 = vmatprep.subr.bf16.mxu0 %v590
    %1329 = vmatpush1.bf16.msra.mxu0 %v589
    %1330 = vmatprep.subr.bf16.mxu0 %v594
    %1331 = vmatpush1.bf16.msra.mxu0 %v593
    %1332 = vmatprep.subr.bf16.mxu0 %v598
    %1333 = vmatpush1.bf16.msra.mxu0 %v597
    %1334 = vmatprep.subr.bf16.mxu0 %v602
    %1335 = vmatpush1.bf16.msra.mxu0 %v601
    %1336 = vmatprep.subr.bf16.mxu0 0
    %1337 = vmatpush1.bf16.msra.mxu0 0
    %1338 = vmatprep.subr.bf16.mxu0 0
    %1339 = vmatpush1.bf16.msra.mxu0 0
    %1340 = vmatprep.subr.bf16.mxu0 0
    %1341 = vmatpush1.bf16.msra.mxu0 0
    %1342 = vmatprep.subr.bf16.mxu0 0
    %1343 = vmatpush1.bf16.msra.mxu0 0
    %1344 = vmatprep.subr.bf16.mxu0 0
    %1345 = vmatpush1.bf16.msra.mxu0 0
    %1346 = vmatprep.subr.bf16.mxu0 0
    %1347 = vmatpush1.bf16.msra.mxu0 0
    %1348 = vmatprep.subr.bf16.mxu0 0
    %1349 = vmatpush1.bf16.msra.mxu0 0
    %1350 = vmatprep.subr.bf16.mxu0 0
    %1351 = vmatpush1.bf16.msra.mxu0 0
    %1352 = vmatprep.mubr.bf16.mxu0 0
    %1353 = vmatmul.mubr.bf16.gmra.mrb[0].mxu0 %v779
    %v1354 = vpop.f32.mrb[0].mxu0
    %v1355 = vadd.f32 0.0, %v1354
    %v1356 = vpop.f32.mrb[0].mxu0
    %v1357 = vadd.f32 0.0, %v1356
    %v1358 = vpop.f32.mrb[0].mxu0
    %v1359 = vadd.f32 0.0, %v1358
    %v1360 = vpop.f32.mrb[0].mxu0
    %v1361 = vadd.f32 0.0, %v1360
    %1362 = vdwg.mxu0
    %1363 = vmatprep.subr.bf16.mxu0 %v576
    %1364 = vmatpush1.bf16.msra.mxu0 %v575
    %1365 = vmatprep.subr.bf16.mxu0 %v580
    %1366 = vmatpush1.bf16.msra.mxu0 %v579
    %1367 = vmatprep.subr.bf16.mxu0 %v584
    %1368 = vmatpush1.bf16.msra.mxu0 %v583
    %1369 = vmatprep.subr.bf16.mxu0 %v588
    %1370 = vmatpush1.bf16.msra.mxu0 %v587
    %1371 = vmatprep.subr.bf16.mxu0 %v592
    %1372 = vmatpush1.bf16.msra.mxu0 %v591
    %1373 = vmatprep.subr.bf16.mxu0 %v596
    %1374 = vmatpush1.bf16.msra.mxu0 %v595
    %1375 = vmatprep.subr.bf16.mxu0 %v600
    %1376 = vmatpush1.bf16.msra.mxu0 %v599
    %1377 = vmatprep.subr.bf16.mxu0 %v604
    %1378 = vmatpush1.bf16.msra.mxu0 %v603
    %1379 = vmatprep.subr.bf16.mxu0 0
    %1380 = vmatpush1.bf16.msra.mxu0 0
    %1381 = vmatprep.subr.bf16.mxu0 0
    %1382 = vmatpush1.bf16.msra.mxu0 0
    %1383 = vmatprep.subr.bf16.mxu0 0
    %1384 = vmatpush1.bf16.msra.mxu0 0
    %1385 = vmatprep.subr.bf16.mxu0 0
    %1386 = vmatpush1.bf16.msra.mxu0 0
    %1387 = vmatprep.subr.bf16.mxu0 0
    %1388 = vmatpush1.bf16.msra.mxu0 0
    %1389 = vmatprep.subr.bf16.mxu0 0
    %1390 = vmatpush1.bf16.msra.mxu0 0
    %1391 = vmatprep.subr.bf16.mxu0 0
    %1392 = vmatpush1.bf16.msra.mxu0 0
    %1393 = vmatprep.subr.bf16.mxu0 0
    %1394 = vmatpush1.bf16.msra.mxu0 0
    %1395 = vmatprep.mubr.bf16.mxu0 0
    %1396 = vmatmul.mubr.bf16.gmra.mrb[0].mxu0 %v779
    %v1397 = vpop.f32.mrb[0].mxu0
    %v1398 = vadd.f32 0.0, %v1397
    %v1399 = vpop.f32.mrb[0].mxu0
    %v1400 = vadd.f32 0.0, %v1399
    %v1401 = vpop.f32.mrb[0].mxu0
    %v1402 = vadd.f32 0.0, %v1401
    %v1403 = vpop.f32.mrb[0].mxu0
    %v1404 = vadd.f32 0.0, %v1403
    %1405 = vdwg.mxu0
    %v1406 = vadd.f32 %v264, %v1355
    %v1407 = vadd.f32 %v266, %v1357
    %v1408 = vadd.f32 %v377, %v1398
    %v1409 = vadd.f32 %v379, %v1400
    %v1410 = vadd.f32 %v268, %v1359
    %v1411 = vadd.f32 %v270, %v1361
    %v1412 = vadd.f32 %v381, %v1402
    %v1413 = vadd.f32 %v383, %v1404
    %v1414 = vxor.u32 %v1406, 2147483648
    %v1415 = vxor.u32 %v1410, 2147483648
    %v1416 = vmul.f32 %v1414, 1.442695
    %v1417 = vpow.pop %v1416
    %v1418 = vmul.f32 %v1415, 1.442695
    %v1419 = vpow.pop %v1418
    %v1420 = vadd.f32 %v1417, 1.0
    %v1421 = vadd.f32 %v1419, 1.0
    %v1422 = vrcp.pop %v1420
    %v1423 = vmul.f32 1.0, %v1422
    %v1424 = vrcp.pop %v1421
    %v1425 = vmul.f32 1.0, %v1424
    %v1426 = vxor.u32 %v1407, 2147483648
    %v1427 = vxor.u32 %v1411, 2147483648
    %v1428 = vmul.f32 %v1426, 1.442695
    %v1429 = vpow.pop %v1428
    %v1430 = vmul.f32 %v1427, 1.442695
    %v1431 = vpow.pop %v1430
    %v1432 = vadd.f32 %v1429, 1.0
    %v1433 = vadd.f32 %v1431, 1.0
    %v1434 = vrcp.pop %v1432
    %v1435 = vmul.f32 1.0, %v1434
    %v1436 = vrcp.pop %v1433
    %v1437 = vmul.f32 1.0, %v1436
    %v1438 = vtanh.pop %v1408
    %v1439 = vtanh.pop %v1412
    %v1440 = vxor.u32 %v1409, 2147483648
    %v1441 = vxor.u32 %v1413, 2147483648
    %v1442 = vmul.f32 %v1440, 1.442695
    %v1443 = vpow.pop %v1442
    %v1444 = vmul.f32 %v1441, 1.442695
    %v1445 = vpow.pop %v1444
    %v1446 = vadd.f32 %v1443, 1.0
    %v1447 = vadd.f32 %v1445, 1.0
    %v1448 = vrcp.pop %v1446
    %v1449 = vmul.f32 1.0, %v1448
    %v1450 = vrcp.pop %v1447
    %v1451 = vmul.f32 1.0, %v1450
    %v1452 = vmul.f32 %v1435, %v773
    %v1453 = vmul.f32 %v1437, %v774
    %v1454 = vmul.f32 %v1423, %v1438
    %v1455 = vmul.f32 %v1425, %v1439
    %v1456 = vadd.f32 %v1452, %v1454
    %v1457 = vadd.f32 %v1453, %v1455
    %v1458 = vtanh.pop %v1456
    %v1459 = vtanh.pop %v1457
    %v1460 = vmul.f32 %v1449, %v1458
    %v1461 = vmul.f32 %v1451, %v1459
    %v1462 = vpack.c.bf16 %v1461, %v1460
    %v1463 = vpack.c.bf16 %v1319, %v1318
    %1464 = vmatprep.subr.bf16.mxu0 %v1059
    %1465 = vmatpush1.bf16.msra.mxu0 %v1058
    %1466 = vmatprep.subr.bf16.mxu0 %v1063
    %1467 = vmatpush1.bf16.msra.mxu0 %v1062
    %1468 = vmatprep.subr.bf16.mxu0 %v1067
    %1469 = vmatpush1.bf16.msra.mxu0 %v1066
    %1470 = vmatprep.subr.bf16.mxu0 %v1071
    %1471 = vmatpush1.bf16.msra.mxu0 %v1070
    %1472 = vmatprep.subr.bf16.mxu0 %v1075
    %1473 = vmatpush1.bf16.msra.mxu0 %v1074
    %1474 = vmatprep.subr.bf16.mxu0 %v1079
    %1475 = vmatpush1.bf16.msra.mxu0 %v1078
    %1476 = vmatprep.subr.bf16.mxu0 %v1083
    %1477 = vmatpush1.bf16.msra.mxu0 %v1082
    %1478 = vmatprep.subr.bf16.mxu0 %v1087
    %1479 = vmatpush1.bf16.msra.mxu0 %v1086
    %1480 = vmatprep.subr.bf16.mxu0 %v1091
    %1481 = vmatpush1.bf16.msra.mxu0 %v1090
    %1482 = vmatprep.subr.bf16.mxu0 %v1095
    %1483 = vmatpush1.bf16.msra.mxu0 %v1094
    %1484 = vmatprep.subr.bf16.mxu0 %v1099
    %1485 = vmatpush1.bf16.msra.mxu0 %v1098
    %1486 = vmatprep.subr.bf16.mxu0 %v1103
    %1487 = vmatpush1.bf16.msra.mxu0 %v1102
    %1488 = vmatprep.subr.bf16.mxu0 %v1107
    %1489 = vmatpush1.bf16.msra.mxu0 %v1106
    %1490 = vmatprep.subr.bf16.mxu0 %v1111
    %1491 = vmatpush1.bf16.msra.mxu0 %v1110
    %1492 = vmatprep.subr.bf16.mxu0 %v1115
    %1493 = vmatpush1.bf16.msra.mxu0 %v1114
    %1494 = vmatprep.subr.bf16.mxu0 %v1119
    %1495 = vmatpush1.bf16.msra.mxu0 %v1118
    %1496 = vmatprep.mubr.bf16.mxu0 %v1463
    %1497 = vmatmul.mubr.bf16.gmra.mrb[0].mxu0 %v1462
    %v1498 = vpop.f32.mrb[0].mxu0
    %v1499 = vadd.f32 %v849, %v1498
    %v1500 = vpop.f32.mrb[0].mxu0
    %v1501 = vadd.f32 %v853, %v1500
    %v1502 = vpop.f32.mrb[0].mxu0
    %v1503 = vadd.f32 %v849, %v1502
    %v1504 = vpop.f32.mrb[0].mxu0
    %v1505 = vadd.f32 %v853, %v1504
    %1506 = vdwg.mxu0
    %1507 = vmatprep.subr.bf16.mxu0 %v1061
    %1508 = vmatpush1.bf16.msra.mxu0 %v1060
    %1509 = vmatprep.subr.bf16.mxu0 %v1065
    %1510 = vmatpush1.bf16.msra.mxu0 %v1064
    %1511 = vmatprep.subr.bf16.mxu0 %v1069
    %1512 = vmatpush1.bf16.msra.mxu0 %v1068
    %1513 = vmatprep.subr.bf16.mxu0 %v1073
    %1514 = vmatpush1.bf16.msra.mxu0 %v1072
    %1515 = vmatprep.subr.bf16.mxu0 %v1077
    %1516 = vmatpush1.bf16.msra.mxu0 %v1076
    %1517 = vmatprep.subr.bf16.mxu0 %v1081
    %1518 = vmatpush1.bf16.msra.mxu0 %v1080
    %1519 = vmatprep.subr.bf16.mxu0 %v1085
    %1520 = vmatpush1.bf16.msra.mxu0 %v1084
    %1521 = vmatprep.subr.bf16.mxu0 %v1089
    %1522 = vmatpush1.bf16.msra.mxu0 %v1088
    %1523 = vmatprep.subr.bf16.mxu0 %v1093
    %1524 = vmatpush1.bf16.msra.mxu0 %v1092
    %1525 = vmatprep.subr.bf16.mxu0 %v1097
    %1526 = vmatpush1.bf16.msra.mxu0 %v1096
    %1527 = vmatprep.subr.bf16.mxu0 %v1101
    %1528 = vmatpush1.bf16.msra.mxu0 %v1100
    %1529 = vmatprep.subr.bf16.mxu0 %v1105
    %1530 = vmatpush1.bf16.msra.mxu0 %v1104
    %1531 = vmatprep.subr.bf16.mxu0 %v1109
    %1532 = vmatpush1.bf16.msra.mxu0 %v1108
    %1533 = vmatprep.subr.bf16.mxu0 %v1113
    %1534 = vmatpush1.bf16.msra.mxu0 %v1112
    %1535 = vmatprep.subr.bf16.mxu0 %v1117
    %1536 = vmatpush1.bf16.msra.mxu0 %v1116
    %1537 = vmatprep.subr.bf16.mxu0 %v1121
    %1538 = vmatpush1.bf16.msra.mxu0 %v1120
    %1539 = vmatprep.mubr.bf16.mxu0 %v1463
    %1540 = vmatmul.mubr.bf16.gmra.mrb[0].mxu0 %v1462
    %v1541 = vpop.f32.mrb[0].mxu0
    %v1542 = vadd.f32 %v857, %v1541
    %v1543 = vpop.f32.mrb[0].mxu0
    %v1544 = vadd.f32 %v861, %v1543
    %v1545 = vpop.f32.mrb[0].mxu0
    %v1546 = vadd.f32 %v857, %v1545
    %v1547 = vpop.f32.mrb[0].mxu0
    %v1548 = vadd.f32 %v861, %v1547
    %1549 = vdwg.mxu0
    %v1550 = vxor.u32 %v1499, 2147483648
    %v1551 = vxor.u32 %v1503, 2147483648
    %v1552 = vmul.f32 %v1550, 1.442695
    %v1553 = vpow.pop %v1552
    %v1554 = vmul.f32 %v1551, 1.442695
    %v1555 = vpow.pop %v1554
    %v1556 = vadd.f32 %v1553, 1.0
    %v1557 = vadd.f32 %v1555, 1.0
    %v1558 = vrcp.pop %v1556
    %v1559 = vmul.f32 1.0, %v1558
    %v1560 = vrcp.pop %v1557
    %v1561 = vmul.f32 1.0, %v1560
    %v1562 = vxor.u32 %v1501, 2147483648
    %v1563 = vxor.u32 %v1505, 2147483648
    %v1564 = vmul.f32 %v1562, 1.442695
    %v1565 = vpow.pop %v1564
    %v1566 = vmul.f32 %v1563, 1.442695
    %v1567 = vpow.pop %v1566
    %v1568 = vadd.f32 %v1565, 1.0
    %v1569 = vadd.f32 %v1567, 1.0
    %v1570 = vrcp.pop %v1568
    %v1571 = vmul.f32 1.0, %v1570
    %v1572 = vrcp.pop %v1569
    %v1573 = vmul.f32 1.0, %v1572
    %v1574 = vtanh.pop %v1542
    %v1575 = vtanh.pop %v1546
    %v1576 = vxor.u32 %v1544, 2147483648
    %v1577 = vxor.u32 %v1548, 2147483648
    %v1578 = vmul.f32 %v1576, 1.442695
    %v1579 = vpow.pop %v1578
    %v1580 = vmul.f32 %v1577, 1.442695
    %v1581 = vpow.pop %v1580
    %v1582 = vadd.f32 %v1579, 1.0
    %v1583 = vadd.f32 %v1581, 1.0
    %v1584 = vrcp.pop %v1582
    %v1585 = vmul.f32 1.0, %v1584
    %v1586 = vrcp.pop %v1583
    %v1587 = vmul.f32 1.0, %v1586
    %v1588 = vmul.f32 %v1571, %v1314
    %v1589 = vmul.f32 %v1573, %v1315
    %v1590 = vmul.f32 %v1559, %v1574
    %v1591 = vmul.f32 %v1561, %v1575
    %v1592 = vadd.f32 %v1588, %v1590
    %v1593 = vadd.f32 %v1589, %v1591
    %v1594 = vtanh.pop %v1592
    %v1595 = vtanh.pop %v1593
    %v1596 = vmul.f32 %v1585, %v1594
    %v1597 = vmul.f32 %v1587, %v1595
    %1598 = vmatprep.subr.bf16.mxu0 %v574
    %1599 = vmatpush1.bf16.msra.mxu0 %v573
    %1600 = vmatprep.subr.bf16.mxu0 %v578
    %1601 = vmatpush1.bf16.msra.mxu0 %v577
    %1602 = vmatprep.subr.bf16.mxu0 %v582
    %1603 = vmatpush1.bf16.msra.mxu0 %v581
    %1604 = vmatprep.subr.bf16.mxu0 %v586
    %1605 = vmatpush1.bf16.msra.mxu0 %v585
    %1606 = vmatprep.subr.bf16.mxu0 %v590
    %1607 = vmatpush1.bf16.msra.mxu0 %v589
    %1608 = vmatprep.subr.bf16.mxu0 %v594
    %1609 = vmatpush1.bf16.msra.mxu0 %v593
    %1610 = vmatprep.subr.bf16.mxu0 %v598
    %1611 = vmatpush1.bf16.msra.mxu0 %v597
    %1612 = vmatprep.subr.bf16.mxu0 %v602
    %1613 = vmatpush1.bf16.msra.mxu0 %v601
    %1614 = vmatprep.subr.bf16.mxu0 0
    %1615 = vmatpush1.bf16.msra.mxu0 0
    %1616 = vmatprep.subr.bf16.mxu0 0
    %1617 = vmatpush1.bf16.msra.mxu0 0
    %1618 = vmatprep.subr.bf16.mxu0 0
    %1619 = vmatpush1.bf16.msra.mxu0 0
    %1620 = vmatprep.subr.bf16.mxu0 0
    %1621 = vmatpush1.bf16.msra.mxu0 0
    %1622 = vmatprep.subr.bf16.mxu0 0
    %1623 = vmatpush1.bf16.msra.mxu0 0
    %1624 = vmatprep.subr.bf16.mxu0 0
    %1625 = vmatpush1.bf16.msra.mxu0 0
    %1626 = vmatprep.subr.bf16.mxu0 0
    %1627 = vmatpush1.bf16.msra.mxu0 0
    %1628 = vmatprep.subr.bf16.mxu0 0
    %1629 = vmatpush1.bf16.msra.mxu0 0
    %1630 = vmatprep.mubr.bf16.mxu0 0
    %1631 = vmatmul.mubr.bf16.gmra.mrb[0].mxu0 %v1462
    %v1632 = vpop.f32.mrb[0].mxu0
    %v1633 = vadd.f32 0.0, %v1632
    %v1634 = vpop.f32.mrb[0].mxu0
    %v1635 = vadd.f32 0.0, %v1634
    %v1636 = vpop.f32.mrb[0].mxu0
    %v1637 = vadd.f32 0.0, %v1636
    %v1638 = vpop.f32.mrb[0].mxu0
    %v1639 = vadd.f32 0.0, %v1638
    %1640 = vdwg.mxu0
    %1641 = vmatprep.subr.bf16.mxu0 %v576
    %1642 = vmatpush1.bf16.msra.mxu0 %v575
    %1643 = vmatprep.subr.bf16.mxu0 %v580
    %1644 = vmatpush1.bf16.msra.mxu0 %v579
    %1645 = vmatprep.subr.bf16.mxu0 %v584
    %1646 = vmatpush1.bf16.msra.mxu0 %v583
    %1647 = vmatprep.subr.bf16.mxu0 %v588
    %1648 = vmatpush1.bf16.msra.mxu0 %v587
    %1649 = vmatprep.subr.bf16.mxu0 %v592
    %1650 = vmatpush1.bf16.msra.mxu0 %v591
    %1651 = vmatprep.subr.bf16.mxu0 %v596
    %1652 = vmatpush1.bf16.msra.mxu0 %v595
    %1653 = vmatprep.subr.bf16.mxu0 %v600
    %1654 = vmatpush1.bf16.msra.mxu0 %v599
    %1655 = vmatprep.subr.bf16.mxu0 %v604
    %1656 = vmatpush1.bf16.msra.mxu0 %v603
    %1657 = vmatprep.subr.bf16.mxu0 0
    %1658 = vmatpush1.bf16.msra.mxu0 0
    %1659 = vmatprep.subr.bf16.mxu0 0
    %1660 = vmatpush1.bf16.msra.mxu0 0
    %1661 = vmatprep.subr.bf16.mxu0 0
    %1662 = vmatpush1.bf16.msra.mxu0 0
    %1663 = vmatprep.subr.bf16.mxu0 0
    %1664 = vmatpush1.bf16.msra.mxu0 0
    %1665 = vmatprep.subr.bf16.mxu0 0
    %1666 = vmatpush1.bf16.msra.mxu0 0
    %1667 = vmatprep.subr.bf16.mxu0 0
    %1668 = vmatpush1.bf16.msra.mxu0 0
    %1669 = vmatprep.subr.bf16.mxu0 0
    %1670 = vmatpush1.bf16.msra.mxu0 0
    %1671 = vmatprep.subr.bf16.mxu0 0
    %1672 = vmatpush1.bf16.msra.mxu0 0
    %1673 = vmatprep.mubr.bf16.mxu0 0
    %1674 = vmatmul.mubr.bf16.gmra.mrb[0].mxu0 %v1462
    %v1675 = vpop.f32.mrb[0].mxu0
    %v1676 = vadd.f32 0.0, %v1675
    %v1677 = vpop.f32.mrb[0].mxu0
    %v1678 = vadd.f32 0.0, %v1677
    %v1679 = vpop.f32.mrb[0].mxu0
    %v1680 = vadd.f32 0.0, %v1679
    %v1681 = vpop.f32.mrb[0].mxu0
    %v1682 = vadd.f32 0.0, %v1681
    %1683 = vdwg.mxu0
    %v1684 = vadd.f32 %v274, %v1633
    %v1685 = vadd.f32 %v276, %v1635
    %v1686 = vadd.f32 %v387, %v1676
    %v1687 = vadd.f32 %v389, %v1678
    %v1688 = vadd.f32 %v278, %v1637
    %v1689 = vadd.f32 %v280, %v1639
    %v1690 = vadd.f32 %v391, %v1680
    %v1691 = vadd.f32 %v393, %v1682
    %v1692 = vxor.u32 %v1684, 2147483648
    %v1693 = vxor.u32 %v1688, 2147483648
    %v1694 = vmul.f32 %v1692, 1.442695
    %v1695 = vpow.pop %v1694
    %v1696 = vmul.f32 %v1693, 1.442695
    %v1697 = vpow.pop %v1696
    %v1698 = vadd.f32 %v1695, 1.0
    %v1699 = vadd.f32 %v1697, 1.0
    %v1700 = vrcp.pop %v1698
    %v1701 = vmul.f32 1.0, %v1700
    %v1702 = vrcp.pop %v1699
    %v1703 = vmul.f32 1.0, %v1702
    %v1704 = vxor.u32 %v1685, 2147483648
    %v1705 = vxor.u32 %v1689, 2147483648
    %v1706 = vmul.f32 %v1704, 1.442695
    %v1707 = vpow.pop %v1706
    %v1708 = vmul.f32 %v1705, 1.442695
    %v1709 = vpow.pop %v1708
    %v1710 = vadd.f32 %v1707, 1.0
    %v1711 = vadd.f32 %v1709, 1.0
    %v1712 = vrcp.pop %v1710
    %v1713 = vmul.f32 1.0, %v1712
    %v1714 = vrcp.pop %v1711
    %v1715 = vmul.f32 1.0, %v1714
    %v1716 = vtanh.pop %v1686
    %v1717 = vtanh.pop %v1690
    %v1718 = vxor.u32 %v1687, 2147483648
    %v1719 = vxor.u32 %v1691, 2147483648
    %v1720 = vmul.f32 %v1718, 1.442695
    %v1721 = vpow.pop %v1720
    %v1722 = vmul.f32 %v1719, 1.442695
    %v1723 = vpow.pop %v1722
    %v1724 = vadd.f32 %v1721, 1.0
    %v1725 = vadd.f32 %v1723, 1.0
    %v1726 = vrcp.pop %v1724
    %v1727 = vmul.f32 1.0, %v1726
    %v1728 = vrcp.pop %v1725
    %v1729 = vmul.f32 1.0, %v1728
    %v1730 = vmul.f32 %v1713, %v1456
    %v1731 = vmul.f32 %v1715, %v1457
    %v1732 = vmul.f32 %v1701, %v1716
    %v1733 = vmul.f32 %v1703, %v1717
    %v1734 = vadd.f32 %v1730, %v1732
    %v1735 = vadd.f32 %v1731, %v1733
    %v1736 = vtanh.pop %v1734
    %v1737 = vtanh.pop %v1735
    %v1738 = vmul.f32 %v1727, %v1736
    %v1739 = vmul.f32 %v1729, %v1737
    %v1740 = vpack.c.bf16 %v1739, %v1738
    %v1741 = vpack.c.bf16 %v1597, %v1596
    %1742 = vmatprep.subr.bf16.mxu0 %v1059
    %1743 = vmatpush1.bf16.msra.mxu0 %v1058
    %1744 = vmatprep.subr.bf16.mxu0 %v1063
    %1745 = vmatpush1.bf16.msra.mxu0 %v1062
    %1746 = vmatprep.subr.bf16.mxu0 %v1067
    %1747 = vmatpush1.bf16.msra.mxu0 %v1066
    %1748 = vmatprep.subr.bf16.mxu0 %v1071
    %1749 = vmatpush1.bf16.msra.mxu0 %v1070
    %1750 = vmatprep.subr.bf16.mxu0 %v1075
    %1751 = vmatpush1.bf16.msra.mxu0 %v1074
    %1752 = vmatprep.subr.bf16.mxu0 %v1079
    %1753 = vmatpush1.bf16.msra.mxu0 %v1078
    %1754 = vmatprep.subr.bf16.mxu0 %v1083
    %1755 = vmatpush1.bf16.msra.mxu0 %v1082
    %1756 = vmatprep.subr.bf16.mxu0 %v1087
    %1757 = vmatpush1.bf16.msra.mxu0 %v1086
    %1758 = vmatprep.subr.bf16.mxu0 %v1091
    %1759 = vmatpush1.bf16.msra.mxu0 %v1090
    %1760 = vmatprep.subr.bf16.mxu0 %v1095
    %1761 = vmatpush1.bf16.msra.mxu0 %v1094
    %1762 = vmatprep.subr.bf16.mxu0 %v1099
    %1763 = vmatpush1.bf16.msra.mxu0 %v1098
    %1764 = vmatprep.subr.bf16.mxu0 %v1103
    %1765 = vmatpush1.bf16.msra.mxu0 %v1102
    %1766 = vmatprep.subr.bf16.mxu0 %v1107
    %1767 = vmatpush1.bf16.msra.mxu0 %v1106
    %1768 = vmatprep.subr.bf16.mxu0 %v1111
    %1769 = vmatpush1.bf16.msra.mxu0 %v1110
    %1770 = vmatprep.subr.bf16.mxu0 %v1115
    %1771 = vmatpush1.bf16.msra.mxu0 %v1114
    %1772 = vmatprep.subr.bf16.mxu0 %v1119
    %1773 = vmatpush1.bf16.msra.mxu0 %v1118
    %1774 = vmatprep.mubr.bf16.mxu0 %v1741
    %1775 = vmatmul.mubr.bf16.gmra.mrb[0].mxu0 %v1740
    %v1776 = vpop.f32.mrb[0].mxu0
    %v1777 = vadd.f32 %v849, %v1776
    %v1778 = vpop.f32.mrb[0].mxu0
    %v1779 = vadd.f32 %v853, %v1778
    %v1780 = vpop.f32.mrb[0].mxu0
    %v1781 = vadd.f32 %v849, %v1780
    %v1782 = vpop.f32.mrb[0].mxu0
    %v1783 = vadd.f32 %v853, %v1782
    %1784 = vdwg.mxu0
    %1785 = vmatprep.subr.bf16.mxu0 %v1061
    %1786 = vmatpush1.bf16.msra.mxu0 %v1060
    %1787 = vmatprep.subr.bf16.mxu0 %v1065
    %1788 = vmatpush1.bf16.msra.mxu0 %v1064
    %1789 = vmatprep.subr.bf16.mxu0 %v1069
    %1790 = vmatpush1.bf16.msra.mxu0 %v1068
    %1791 = vmatprep.subr.bf16.mxu0 %v1073
    %1792 = vmatpush1.bf16.msra.mxu0 %v1072
    %1793 = vmatprep.subr.bf16.mxu0 %v1077
    %1794 = vmatpush1.bf16.msra.mxu0 %v1076
    %1795 = vmatprep.subr.bf16.mxu0 %v1081
    %1796 = vmatpush1.bf16.msra.mxu0 %v1080
    %1797 = vmatprep.subr.bf16.mxu0 %v1085
    %1798 = vmatpush1.bf16.msra.mxu0 %v1084
    %1799 = vmatprep.subr.bf16.mxu0 %v1089
    %1800 = vmatpush1.bf16.msra.mxu0 %v1088
    %1801 = vmatprep.subr.bf16.mxu0 %v1093
    %1802 = vmatpush1.bf16.msra.mxu0 %v1092
    %1803 = vmatprep.subr.bf16.mxu0 %v1097
    %1804 = vmatpush1.bf16.msra.mxu0 %v1096
    %1805 = vmatprep.subr.bf16.mxu0 %v1101
    %1806 = vmatpush1.bf16.msra.mxu0 %v1100
    %1807 = vmatprep.subr.bf16.mxu0 %v1105
    %1808 = vmatpush1.bf16.msra.mxu0 %v1104
    %1809 = vmatprep.subr.bf16.mxu0 %v1109
    %1810 = vmatpush1.bf16.msra.mxu0 %v1108
    %1811 = vmatprep.subr.bf16.mxu0 %v1113
    %1812 = vmatpush1.bf16.msra.mxu0 %v1112
    %1813 = vmatprep.subr.bf16.mxu0 %v1117
    %1814 = vmatpush1.bf16.msra.mxu0 %v1116
    %1815 = vmatprep.subr.bf16.mxu0 %v1121
    %1816 = vmatpush1.bf16.msra.mxu0 %v1120
    %1817 = vmatprep.mubr.bf16.mxu0 %v1741
    %1818 = vmatmul.mubr.bf16.gmra.mrb[0].mxu0 %v1740
    %v1819 = vpop.f32.mrb[0].mxu0
    %v1820 = vadd.f32 %v857, %v1819
    %v1821 = vpop.f32.mrb[0].mxu0
    %v1822 = vadd.f32 %v861, %v1821
    %v1823 = vpop.f32.mrb[0].mxu0
    %v1824 = vadd.f32 %v857, %v1823
    %v1825 = vpop.f32.mrb[0].mxu0
    %v1826 = vadd.f32 %v861, %v1825
    %1827 = vdwg.mxu0
    %v1828 = vxor.u32 %v1777, 2147483648
    %v1829 = vxor.u32 %v1781, 2147483648
    %v1830 = vmul.f32 %v1828, 1.442695
    %v1831 = vpow.pop %v1830
    %v1832 = vmul.f32 %v1829, 1.442695
    %v1833 = vpow.pop %v1832
    %v1834 = vadd.f32 %v1831, 1.0
    %v1835 = vadd.f32 %v1833, 1.0
    %v1836 = vrcp.pop %v1834
    %v1837 = vmul.f32 1.0, %v1836
    %v1838 = vrcp.pop %v1835
    %v1839 = vmul.f32 1.0, %v1838
    %v1840 = vxor.u32 %v1779, 2147483648
    %v1841 = vxor.u32 %v1783, 2147483648
    %v1842 = vmul.f32 %v1840, 1.442695
    %v1843 = vpow.pop %v1842
    %v1844 = vmul.f32 %v1841, 1.442695
    %v1845 = vpow.pop %v1844
    %v1846 = vadd.f32 %v1843, 1.0
    %v1847 = vadd.f32 %v1845, 1.0
    %v1848 = vrcp.pop %v1846
    %v1849 = vmul.f32 1.0, %v1848
    %v1850 = vrcp.pop %v1847
    %v1851 = vmul.f32 1.0, %v1850
    %v1852 = vtanh.pop %v1820
    %v1853 = vtanh.pop %v1824
    %v1854 = vxor.u32 %v1822, 2147483648
    %v1855 = vxor.u32 %v1826, 2147483648
    %v1856 = vmul.f32 %v1854, 1.442695
    %v1857 = vpow.pop %v1856
    %v1858 = vmul.f32 %v1855, 1.442695
    %v1859 = vpow.pop %v1858
    %v1860 = vadd.f32 %v1857, 1.0
    %v1861 = vadd.f32 %v1859, 1.0
    %v1862 = vrcp.pop %v1860
    %v1863 = vmul.f32 1.0, %v1862
    %v1864 = vrcp.pop %v1861
    %v1865 = vmul.f32 1.0, %v1864
    %v1866 = vmul.f32 %v1849, %v1592
    %v1867 = vmul.f32 %v1851, %v1593
    %v1868 = vmul.f32 %v1837, %v1852
    %v1869 = vmul.f32 %v1839, %v1853
    %v1870 = vadd.f32 %v1866, %v1868
    %v1871 = vadd.f32 %v1867, %v1869
    %v1872 = vtanh.pop %v1870
    %v1873 = vtanh.pop %v1871
    %v1874 = vmul.f32 %v1863, %v1872
    %v1875 = vmul.f32 %v1865, %v1873
    %1876 = vmatprep.subr.bf16.mxu0 %v574
    %1877 = vmatpush1.bf16.msra.mxu0 %v573
    %1878 = vmatprep.subr.bf16.mxu0 %v578
    %1879 = vmatpush1.bf16.msra.mxu0 %v577
    %1880 = vmatprep.subr.bf16.mxu0 %v582
    %1881 = vmatpush1.bf16.msra.mxu0 %v581
    %1882 = vmatprep.subr.bf16.mxu0 %v586
    %1883 = vmatpush1.bf16.msra.mxu0 %v585
    %1884 = vmatprep.subr.bf16.mxu0 %v590
    %1885 = vmatpush1.bf16.msra.mxu0 %v589
    %1886 = vmatprep.subr.bf16.mxu0 %v594
    %1887 = vmatpush1.bf16.msra.mxu0 %v593
    %1888 = vmatprep.subr.bf16.mxu0 %v598
    %1889 = vmatpush1.bf16.msra.mxu0 %v597
    %1890 = vmatprep.subr.bf16.mxu0 %v602
    %1891 = vmatpush1.bf16.msra.mxu0 %v601
    %1892 = vmatprep.subr.bf16.mxu0 0
    %1893 = vmatpush1.bf16.msra.mxu0 0
    %1894 = vmatprep.subr.bf16.mxu0 0
    %1895 = vmatpush1.bf16.msra.mxu0 0
    %1896 = vmatprep.subr.bf16.mxu0 0
    %1897 = vmatpush1.bf16.msra.mxu0 0
    %1898 = vmatprep.subr.bf16.mxu0 0
    %1899 = vmatpush1.bf16.msra.mxu0 0
    %1900 = vmatprep.subr.bf16.mxu0 0
    %1901 = vmatpush1.bf16.msra.mxu0 0
    %1902 = vmatprep.subr.bf16.mxu0 0
    %1903 = vmatpush1.bf16.msra.mxu0 0
    %1904 = vmatprep.subr.bf16.mxu0 0
    %1905 = vmatpush1.bf16.msra.mxu0 0
    %1906 = vmatprep.subr.bf16.mxu0 0
    %1907 = vmatpush1.bf16.msra.mxu0 0
    %1908 = vmatprep.mubr.bf16.mxu0 0
    %1909 = vmatmul.mubr.bf16.gmra.mrb[0].mxu0 %v1740
    %v1910 = vpop.f32.mrb[0].mxu0
    %v1911 = vadd.f32 0.0, %v1910
    %v1912 = vpop.f32.mrb[0].mxu0
    %v1913 = vadd.f32 0.0, %v1912
    %v1914 = vpop.f32.mrb[0].mxu0
    %v1915 = vadd.f32 0.0, %v1914
    %v1916 = vpop.f32.mrb[0].mxu0
    %v1917 = vadd.f32 0.0, %v1916
    %1918 = vdwg.mxu0
    %1919 = vmatprep.subr.bf16.mxu0 %v576
    %1920 = vmatpush1.bf16.msra.mxu0 %v575
    %1921 = vmatprep.subr.bf16.mxu0 %v580
    %1922 = vmatpush1.bf16.msra.mxu0 %v579
    %1923 = vmatprep.subr.bf16.mxu0 %v584
    %1924 = vmatpush1.bf16.msra.mxu0 %v583
    %1925 = vmatprep.subr.bf16.mxu0 %v588
    %1926 = vmatpush1.bf16.msra.mxu0 %v587
    %1927 = vmatprep.subr.bf16.mxu0 %v592
    %1928 = vmatpush1.bf16.msra.mxu0 %v591
    %1929 = vmatprep.subr.bf16.mxu0 %v596
    %1930 = vmatpush1.bf16.msra.mxu0 %v595
    %1931 = vmatprep.subr.bf16.mxu0 %v600
    %1932 = vmatpush1.bf16.msra.mxu0 %v599
    %1933 = vmatprep.subr.bf16.mxu0 %v604
    %1934 = vmatpush1.bf16.msra.mxu0 %v603
    %1935 = vmatprep.subr.bf16.mxu0 0
    %1936 = vmatpush1.bf16.msra.mxu0 0
    %1937 = vmatprep.subr.bf16.mxu0 0
    %1938 = vmatpush1.bf16.msra.mxu0 0
    %1939 = vmatprep.subr.bf16.mxu0 0
    %1940 = vmatpush1.bf16.msra.mxu0 0
    %1941 = vmatprep.subr.bf16.mxu0 0
    %1942 = vmatpush1.bf16.msra.mxu0 0
    %1943 = vmatprep.subr.bf16.mxu0 0
    %1944 = vmatpush1.bf16.msra.mxu0 0
    %1945 = vmatprep.subr.bf16.mxu0 0
    %1946 = vmatpush1.bf16.msra.mxu0 0
    %1947 = vmatprep.subr.bf16.mxu0 0
    %1948 = vmatpush1.bf16.msra.mxu0 0
    %1949 = vmatprep.subr.bf16.mxu0 0
    %1950 = vmatpush1.bf16.msra.mxu0 0
    %1951 = vmatprep.mubr.bf16.mxu0 0
    %1952 = vmatmul.mubr.bf16.gmra.mrb[0].mxu0 %v1740
    %v1953 = vpop.f32.mrb[0].mxu0
    %v1954 = vadd.f32 0.0, %v1953
    %v1955 = vpop.f32.mrb[0].mxu0
    %v1956 = vadd.f32 0.0, %v1955
    %v1957 = vpop.f32.mrb[0].mxu0
    %v1958 = vadd.f32 0.0, %v1957
    %v1959 = vpop.f32.mrb[0].mxu0
    %v1960 = vadd.f32 0.0, %v1959
    %1961 = vdwg.mxu0
    %v1962 = vadd.f32 %v284, %v1911
    %v1963 = vadd.f32 %v286, %v1913
    %v1964 = vadd.f32 %v397, %v1954
    %v1965 = vadd.f32 %v399, %v1956
    %v1966 = vadd.f32 %v288, %v1915
    %v1967 = vadd.f32 %v290, %v1917
    %v1968 = vadd.f32 %v401, %v1958
    %v1969 = vadd.f32 %v403, %v1960
    %v1970 = vxor.u32 %v1962, 2147483648
    %v1971 = vxor.u32 %v1966, 2147483648
    %v1972 = vmul.f32 %v1970, 1.442695
    %v1973 = vpow.pop %v1972
    %v1974 = vmul.f32 %v1971, 1.442695
    %v1975 = vpow.pop %v1974
    %v1976 = vadd.f32 %v1973, 1.0
    %v1977 = vadd.f32 %v1975, 1.0
    %v1978 = vrcp.pop %v1976
    %v1979 = vmul.f32 1.0, %v1978
    %v1980 = vrcp.pop %v1977
    %v1981 = vmul.f32 1.0, %v1980
    %v1982 = vxor.u32 %v1963, 2147483648
    %v1983 = vxor.u32 %v1967, 2147483648
    %v1984 = vmul.f32 %v1982, 1.442695
    %v1985 = vpow.pop %v1984
    %v1986 = vmul.f32 %v1983, 1.442695
    %v1987 = vpow.pop %v1986
    %v1988 = vadd.f32 %v1985, 1.0
    %v1989 = vadd.f32 %v1987, 1.0
    %v1990 = vrcp.pop %v1988
    %v1991 = vmul.f32 1.0, %v1990
    %v1992 = vrcp.pop %v1989
    %v1993 = vmul.f32 1.0, %v1992
    %v1994 = vtanh.pop %v1964
    %v1995 = vtanh.pop %v1968
    %v1996 = vxor.u32 %v1965, 2147483648
    %v1997 = vxor.u32 %v1969, 2147483648
    %v1998 = vmul.f32 %v1996, 1.442695
    %v1999 = vpow.pop %v1998
    %v2000 = vmul.f32 %v1997, 1.442695
    %v2001 = vpow.pop %v2000
    %v2002 = vadd.f32 %v1999, 1.0
    %v2003 = vadd.f32 %v2001, 1.0
    %v2004 = vrcp.pop %v2002
    %v2005 = vmul.f32 1.0, %v2004
    %v2006 = vrcp.pop %v2003
    %v2007 = vmul.f32 1.0, %v2006
    %v2008 = vmul.f32 %v1991, %v1734
    %v2009 = vmul.f32 %v1993, %v1735
    %v2010 = vmul.f32 %v1979, %v1994
    %v2011 = vmul.f32 %v1981, %v1995
    %v2012 = vadd.f32 %v2008, %v2010
    %v2013 = vadd.f32 %v2009, %v2011
    %v2014 = vtanh.pop %v2012
    %v2015 = vtanh.pop %v2013
    %v2016 = vmul.f32 %v2005, %v2014
    %v2017 = vmul.f32 %v2007, %v2015
    %v2018 = vpack.c.bf16 %v2017, %v2016
    %v2019 = vpack.c.bf16 %v1875, %v1874
    %2020 = vmatprep.subr.bf16.mxu0 %v1059
    %2021 = vmatpush1.bf16.msra.mxu0 %v1058
    %2022 = vmatprep.subr.bf16.mxu0 %v1063
    %2023 = vmatpush1.bf16.msra.mxu0 %v1062
    %2024 = vmatprep.subr.bf16.mxu0 %v1067
    %2025 = vmatpush1.bf16.msra.mxu0 %v1066
    %2026 = vmatprep.subr.bf16.mxu0 %v1071
    %2027 = vmatpush1.bf16.msra.mxu0 %v1070
    %2028 = vmatprep.subr.bf16.mxu0 %v1075
    %2029 = vmatpush1.bf16.msra.mxu0 %v1074
    %2030 = vmatprep.subr.bf16.mxu0 %v1079
    %2031 = vmatpush1.bf16.msra.mxu0 %v1078
    %2032 = vmatprep.subr.bf16.mxu0 %v1083
    %2033 = vmatpush1.bf16.msra.mxu0 %v1082
    %2034 = vmatprep.subr.bf16.mxu0 %v1087
    %2035 = vmatpush1.bf16.msra.mxu0 %v1086
    %2036 = vmatprep.subr.bf16.mxu0 %v1091
    %2037 = vmatpush1.bf16.msra.mxu0 %v1090
    %2038 = vmatprep.subr.bf16.mxu0 %v1095
    %2039 = vmatpush1.bf16.msra.mxu0 %v1094
    %2040 = vmatprep.subr.bf16.mxu0 %v1099
    %2041 = vmatpush1.bf16.msra.mxu0 %v1098
    %2042 = vmatprep.subr.bf16.mxu0 %v1103
    %2043 = vmatpush1.bf16.msra.mxu0 %v1102
    %2044 = vmatprep.subr.bf16.mxu0 %v1107
    %2045 = vmatpush1.bf16.msra.mxu0 %v1106
    %2046 = vmatprep.subr.bf16.mxu0 %v1111
    %2047 = vmatpush1.bf16.msra.mxu0 %v1110
    %2048 = vmatprep.subr.bf16.mxu0 %v1115
    %2049 = vmatpush1.bf16.msra.mxu0 %v1114
    %2050 = vmatprep.subr.bf16.mxu0 %v1119
    %2051 = vmatpush1.bf16.msra.mxu0 %v1118
    %2052 = vmatprep.mubr.bf16.mxu0 %v2019
    %2053 = vmatmul.mubr.bf16.gmra.mrb[0].mxu0 %v2018
    %v2054 = vpop.f32.mrb[0].mxu0
    %v2055 = vadd.f32 %v849, %v2054
    %v2056 = vpop.f32.mrb[0].mxu0
    %v2057 = vadd.f32 %v853, %v2056
    %v2058 = vpop.f32.mrb[0].mxu0
    %v2059 = vadd.f32 %v849, %v2058
    %v2060 = vpop.f32.mrb[0].mxu0
    %v2061 = vadd.f32 %v853, %v2060
    %2062 = vdwg.mxu0
    %2063 = vmatprep.subr.bf16.mxu0 %v1061
    %2064 = vmatpush1.bf16.msra.mxu0 %v1060
    %2065 = vmatprep.subr.bf16.mxu0 %v1065
    %2066 = vmatpush1.bf16.msra.mxu0 %v1064
    %2067 = vmatprep.subr.bf16.mxu0 %v1069
    %2068 = vmatpush1.bf16.msra.mxu0 %v1068
    %2069 = vmatprep.subr.bf16.mxu0 %v1073
    %2070 = vmatpush1.bf16.msra.mxu0 %v1072
    %2071 = vmatprep.subr.bf16.mxu0 %v1077
    %2072 = vmatpush1.bf16.msra.mxu0 %v1076
    %2073 = vmatprep.subr.bf16.mxu0 %v1081
    %2074 = vmatpush1.bf16.msra.mxu0 %v1080
    %2075 = vmatprep.subr.bf16.mxu0 %v1085
    %2076 = vmatpush1.bf16.msra.mxu0 %v1084
    %2077 = vmatprep.subr.bf16.mxu0 %v1089
    %2078 = vmatpush1.bf16.msra.mxu0 %v1088
    %2079 = vmatprep.subr.bf16.mxu0 %v1093
    %2080 = vmatpush1.bf16.msra.mxu0 %v1092
    %2081 = vmatprep.subr.bf16.mxu0 %v1097
    %2082 = vmatpush1.bf16.msra.mxu0 %v1096
    %2083 = vmatprep.subr.bf16.mxu0 %v1101
    %2084 = vmatpush1.bf16.msra.mxu0 %v1100
    %2085 = vmatprep.subr.bf16.mxu0 %v1105
    %2086 = vmatpush1.bf16.msra.mxu0 %v1104
    %2087 = vmatprep.subr.bf16.mxu0 %v1109
    %2088 = vmatpush1.bf16.msra.mxu0 %v1108
    %2089 = vmatprep.subr.bf16.mxu0 %v1113
    %2090 = vmatpush1.bf16.msra.mxu0 %v1112
    %2091 = vmatprep.subr.bf16.mxu0 %v1117
    %2092 = vmatpush1.bf16.msra.mxu0 %v1116
    %2093 = vmatprep.subr.bf16.mxu0 %v1121
    %2094 = vmatpush1.bf16.msra.mxu0 %v1120
    %2095 = vmatprep.mubr.bf16.mxu0 %v2019
    %2096 = vmatmul.mubr.bf16.gmra.mrb[0].mxu0 %v2018
    %v2097 = vpop.f32.mrb[0].mxu0
    %v2098 = vadd.f32 %v857, %v2097
    %v2099 = vpop.f32.mrb[0].mxu0
    %v2100 = vadd.f32 %v861, %v2099
    %v2101 = vpop.f32.mrb[0].mxu0
    %v2102 = vadd.f32 %v857, %v2101
    %v2103 = vpop.f32.mrb[0].mxu0
    %v2104 = vadd.f32 %v861, %v2103
    %2105 = vdwg.mxu0
    %v2106 = vxor.u32 %v2055, 2147483648
    %v2107 = vxor.u32 %v2059, 2147483648
    %v2108 = vmul.f32 %v2106, 1.442695
    %v2109 = vpow.pop %v2108
    %v2110 = vmul.f32 %v2107, 1.442695
    %v2111 = vpow.pop %v2110
    %v2112 = vadd.f32 %v2109, 1.0
    %v2113 = vadd.f32 %v2111, 1.0
    %v2114 = vrcp.pop %v2112
    %v2115 = vmul.f32 1.0, %v2114
    %v2116 = vrcp.pop %v2113
    %v2117 = vmul.f32 1.0, %v2116
    %v2118 = vxor.u32 %v2057, 2147483648
    %v2119 = vxor.u32 %v2061, 2147483648
    %v2120 = vmul.f32 %v2118, 1.442695
    %v2121 = vpow.pop %v2120
    %v2122 = vmul.f32 %v2119, 1.442695
    %v2123 = vpow.pop %v2122
    %v2124 = vadd.f32 %v2121, 1.0
    %v2125 = vadd.f32 %v2123, 1.0
    %v2126 = vrcp.pop %v2124
    %v2127 = vmul.f32 1.0, %v2126
    %v2128 = vrcp.pop %v2125
    %v2129 = vmul.f32 1.0, %v2128
    %v2130 = vtanh.pop %v2098
    %v2131 = vtanh.pop %v2102
    %v2132 = vxor.u32 %v2100, 2147483648
    %v2133 = vxor.u32 %v2104, 2147483648
    %v2134 = vmul.f32 %v2132, 1.442695
    %v2135 = vpow.pop %v2134
    %v2136 = vmul.f32 %v2133, 1.442695
    %v2137 = vpow.pop %v2136
    %v2138 = vadd.f32 %v2135, 1.0
    %v2139 = vadd.f32 %v2137, 1.0
    %v2140 = vrcp.pop %v2138
    %v2141 = vmul.f32 1.0, %v2140
    %v2142 = vrcp.pop %v2139
    %v2143 = vmul.f32 1.0, %v2142
    %v2144 = vmul.f32 %v2127, %v1870
    %v2145 = vmul.f32 %v2129, %v1871
    %v2146 = vmul.f32 %v2115, %v2130
    %v2147 = vmul.f32 %v2117, %v2131
    %v2148 = vadd.f32 %v2144, %v2146
    %v2149 = vadd.f32 %v2145, %v2147
    %v2150 = vtanh.pop %v2148
    %v2151 = vtanh.pop %v2149
    %v2152 = vmul.f32 %v2141, %v2150
    %v2153 = vmul.f32 %v2143, %v2151
    %2154 = vmatprep.subr.bf16.mxu0 %v574
    %2155 = vmatpush1.bf16.msra.mxu0 %v573
    %2156 = vmatprep.subr.bf16.mxu0 %v578
    %2157 = vmatpush1.bf16.msra.mxu0 %v577
    %2158 = vmatprep.subr.bf16.mxu0 %v582
    %2159 = vmatpush1.bf16.msra.mxu0 %v581
    %2160 = vmatprep.subr.bf16.mxu0 %v586
    %2161 = vmatpush1.bf16.msra.mxu0 %v585
    %2162 = vmatprep.subr.bf16.mxu0 %v590
    %2163 = vmatpush1.bf16.msra.mxu0 %v589
    %2164 = vmatprep.subr.bf16.mxu0 %v594
    %2165 = vmatpush1.bf16.msra.mxu0 %v593
    %2166 = vmatprep.subr.bf16.mxu0 %v598
    %2167 = vmatpush1.bf16.msra.mxu0 %v597
    %2168 = vmatprep.subr.bf16.mxu0 %v602
    %2169 = vmatpush1.bf16.msra.mxu0 %v601
    %2170 = vmatprep.subr.bf16.mxu0 0
    %2171 = vmatpush1.bf16.msra.mxu0 0
    %2172 = vmatprep.subr.bf16.mxu0 0
    %2173 = vmatpush1.bf16.msra.mxu0 0
    %2174 = vmatprep.subr.bf16.mxu0 0
    %2175 = vmatpush1.bf16.msra.mxu0 0
    %2176 = vmatprep.subr.bf16.mxu0 0
    %2177 = vmatpush1.bf16.msra.mxu0 0
    %2178 = vmatprep.subr.bf16.mxu0 0
    %2179 = vmatpush1.bf16.msra.mxu0 0
    %2180 = vmatprep.subr.bf16.mxu0 0
    %2181 = vmatpush1.bf16.msra.mxu0 0
    %2182 = vmatprep.subr.bf16.mxu0 0
    %2183 = vmatpush1.bf16.msra.mxu0 0
    %2184 = vmatprep.subr.bf16.mxu0 0
    %2185 = vmatpush1.bf16.msra.mxu0 0
    %2186 = vmatprep.mubr.bf16.mxu0 0
    %2187 = vmatmul.mubr.bf16.gmra.mrb[0].mxu0 %v2018
    %v2188 = vpop.f32.mrb[0].mxu0
    %v2189 = vadd.f32 0.0, %v2188
    %v2190 = vpop.f32.mrb[0].mxu0
    %v2191 = vadd.f32 0.0, %v2190
    %v2192 = vpop.f32.mrb[0].mxu0
    %v2193 = vadd.f32 0.0, %v2192
    %v2194 = vpop.f32.mrb[0].mxu0
    %v2195 = vadd.f32 0.0, %v2194
    %2196 = vdwg.mxu0
    %2197 = vmatprep.subr.bf16.mxu0 %v576
    %2198 = vmatpush1.bf16.msra.mxu0 %v575
    %2199 = vmatprep.subr.bf16.mxu0 %v580
    %2200 = vmatpush1.bf16.msra.mxu0 %v579
    %2201 = vmatprep.subr.bf16.mxu0 %v584
    %2202 = vmatpush1.bf16.msra.mxu0 %v583
    %2203 = vmatprep.subr.bf16.mxu0 %v588
    %2204 = vmatpush1.bf16.msra.mxu0 %v587
    %2205 = vmatprep.subr.bf16.mxu0 %v592
    %2206 = vmatpush1.bf16.msra.mxu0 %v591
    %2207 = vmatprep.subr.bf16.mxu0 %v596
    %2208 = vmatpush1.bf16.msra.mxu0 %v595
    %2209 = vmatprep.subr.bf16.mxu0 %v600
    %2210 = vmatpush1.bf16.msra.mxu0 %v599
    %2211 = vmatprep.subr.bf16.mxu0 %v604
    %2212 = vmatpush1.bf16.msra.mxu0 %v603
    %2213 = vmatprep.subr.bf16.mxu0 0
    %2214 = vmatpush1.bf16.msra.mxu0 0
    %2215 = vmatprep.subr.bf16.mxu0 0
    %2216 = vmatpush1.bf16.msra.mxu0 0
    %2217 = vmatprep.subr.bf16.mxu0 0
    %2218 = vmatpush1.bf16.msra.mxu0 0
    %2219 = vmatprep.subr.bf16.mxu0 0
    %2220 = vmatpush1.bf16.msra.mxu0 0
    %2221 = vmatprep.subr.bf16.mxu0 0
    %2222 = vmatpush1.bf16.msra.mxu0 0
    %2223 = vmatprep.subr.bf16.mxu0 0
    %2224 = vmatpush1.bf16.msra.mxu0 0
    %2225 = vmatprep.subr.bf16.mxu0 0
    %2226 = vmatpush1.bf16.msra.mxu0 0
    %2227 = vmatprep.subr.bf16.mxu0 0
    %2228 = vmatpush1.bf16.msra.mxu0 0
    %2229 = vmatprep.mubr.bf16.mxu0 0
    %2230 = vmatmul.mubr.bf16.gmra.mrb[0].mxu0 %v2018
    %v2231 = vpop.f32.mrb[0].mxu0
    %v2232 = vadd.f32 0.0, %v2231
    %v2233 = vpop.f32.mrb[0].mxu0
    %v2234 = vadd.f32 0.0, %v2233
    %v2235 = vpop.f32.mrb[0].mxu0
    %v2236 = vadd.f32 0.0, %v2235
    %v2237 = vpop.f32.mrb[0].mxu0
    %v2238 = vadd.f32 0.0, %v2237
    %2239 = vdwg.mxu0
    %v2240 = vadd.f32 %v294, %v2189
    %v2241 = vadd.f32 %v296, %v2191
    %v2242 = vadd.f32 %v407, %v2232
    %v2243 = vadd.f32 %v409, %v2234
    %v2244 = vadd.f32 %v298, %v2193
    %v2245 = vadd.f32 %v300, %v2195
    %v2246 = vadd.f32 %v411, %v2236
    %v2247 = vadd.f32 %v413, %v2238
    %v2248 = vxor.u32 %v2240, 2147483648
    %v2249 = vxor.u32 %v2244, 2147483648
    %v2250 = vmul.f32 %v2248, 1.442695
    %v2251 = vpow.pop %v2250
    %v2252 = vmul.f32 %v2249, 1.442695
    %v2253 = vpow.pop %v2252
    %v2254 = vadd.f32 %v2251, 1.0
    %v2255 = vadd.f32 %v2253, 1.0
    %v2256 = vrcp.pop %v2254
    %v2257 = vmul.f32 1.0, %v2256
    %v2258 = vrcp.pop %v2255
    %v2259 = vmul.f32 1.0, %v2258
    %v2260 = vxor.u32 %v2241, 2147483648
    %v2261 = vxor.u32 %v2245, 2147483648
    %v2262 = vmul.f32 %v2260, 1.442695
    %v2263 = vpow.pop %v2262
    %v2264 = vmul.f32 %v2261, 1.442695
    %v2265 = vpow.pop %v2264
    %v2266 = vadd.f32 %v2263, 1.0
    %v2267 = vadd.f32 %v2265, 1.0
    %v2268 = vrcp.pop %v2266
    %v2269 = vmul.f32 1.0, %v2268
    %v2270 = vrcp.pop %v2267
    %v2271 = vmul.f32 1.0, %v2270
    %v2272 = vtanh.pop %v2242
    %v2273 = vtanh.pop %v2246
    %v2274 = vxor.u32 %v2243, 2147483648
    %v2275 = vxor.u32 %v2247, 2147483648
    %v2276 = vmul.f32 %v2274, 1.442695
    %v2277 = vpow.pop %v2276
    %v2278 = vmul.f32 %v2275, 1.442695
    %v2279 = vpow.pop %v2278
    %v2280 = vadd.f32 %v2277, 1.0
    %v2281 = vadd.f32 %v2279, 1.0
    %v2282 = vrcp.pop %v2280
    %v2283 = vmul.f32 1.0, %v2282
    %v2284 = vrcp.pop %v2281
    %v2285 = vmul.f32 1.0, %v2284
    %v2286 = vmul.f32 %v2269, %v2012
    %v2287 = vmul.f32 %v2271, %v2013
    %v2288 = vmul.f32 %v2257, %v2272
    %v2289 = vmul.f32 %v2259, %v2273
    %v2290 = vadd.f32 %v2286, %v2288
    %v2291 = vadd.f32 %v2287, %v2289
    %v2292 = vtanh.pop %v2290
    %v2293 = vtanh.pop %v2291
    %v2294 = vmul.f32 %v2283, %v2292
    %v2295 = vmul.f32 %v2285, %v2293
    %v2296 = vpack.c.bf16 %v2295, %v2294
    %v2297 = vpack.c.bf16 %v2153, %v2152
    %2298 = vmatprep.subr.bf16.mxu0 %v1059
    %2299 = vmatpush1.bf16.msra.mxu0 %v1058
    %2300 = vmatprep.subr.bf16.mxu0 %v1063
    %2301 = vmatpush1.bf16.msra.mxu0 %v1062
    %2302 = vmatprep.subr.bf16.mxu0 %v1067
    %2303 = vmatpush1.bf16.msra.mxu0 %v1066
    %2304 = vmatprep.subr.bf16.mxu0 %v1071
    %2305 = vmatpush1.bf16.msra.mxu0 %v1070
    %2306 = vmatprep.subr.bf16.mxu0 %v1075
    %2307 = vmatpush1.bf16.msra.mxu0 %v1074
    %2308 = vmatprep.subr.bf16.mxu0 %v1079
    %2309 = vmatpush1.bf16.msra.mxu0 %v1078
    %2310 = vmatprep.subr.bf16.mxu0 %v1083
    %2311 = vmatpush1.bf16.msra.mxu0 %v1082
    %2312 = vmatprep.subr.bf16.mxu0 %v1087
    %2313 = vmatpush1.bf16.msra.mxu0 %v1086
    %2314 = vmatprep.subr.bf16.mxu0 %v1091
    %2315 = vmatpush1.bf16.msra.mxu0 %v1090
    %2316 = vmatprep.subr.bf16.mxu0 %v1095
    %2317 = vmatpush1.bf16.msra.mxu0 %v1094
    %2318 = vmatprep.subr.bf16.mxu0 %v1099
    %2319 = vmatpush1.bf16.msra.mxu0 %v1098
    %2320 = vmatprep.subr.bf16.mxu0 %v1103
    %2321 = vmatpush1.bf16.msra.mxu0 %v1102
    %2322 = vmatprep.subr.bf16.mxu0 %v1107
    %2323 = vmatpush1.bf16.msra.mxu0 %v1106
    %2324 = vmatprep.subr.bf16.mxu0 %v1111
    %2325 = vmatpush1.bf16.msra.mxu0 %v1110
    %2326 = vmatprep.subr.bf16.mxu0 %v1115
    %2327 = vmatpush1.bf16.msra.mxu0 %v1114
    %2328 = vmatprep.subr.bf16.mxu0 %v1119
    %2329 = vmatpush1.bf16.msra.mxu0 %v1118
    %2330 = vmatprep.mubr.bf16.mxu0 %v2297
    %2331 = vmatmul.mubr.bf16.gmra.mrb[0].mxu0 %v2296
    %v2332 = vpop.f32.mrb[0].mxu0
    %v2333 = vadd.f32 %v849, %v2332
    %v2334 = vpop.f32.mrb[0].mxu0
    %v2335 = vadd.f32 %v853, %v2334
    %v2336 = vpop.f32.mrb[0].mxu0
    %v2337 = vadd.f32 %v849, %v2336
    %v2338 = vpop.f32.mrb[0].mxu0
    %v2339 = vadd.f32 %v853, %v2338
    %2340 = vdwg.mxu0
    %2341 = vmatprep.subr.bf16.mxu0 %v1061
    %2342 = vmatpush1.bf16.msra.mxu0 %v1060
    %2343 = vmatprep.subr.bf16.mxu0 %v1065
    %2344 = vmatpush1.bf16.msra.mxu0 %v1064
    %2345 = vmatprep.subr.bf16.mxu0 %v1069
    %2346 = vmatpush1.bf16.msra.mxu0 %v1068
    %2347 = vmatprep.subr.bf16.mxu0 %v1073
    %2348 = vmatpush1.bf16.msra.mxu0 %v1072
    %2349 = vmatprep.subr.bf16.mxu0 %v1077
    %2350 = vmatpush1.bf16.msra.mxu0 %v1076
    %2351 = vmatprep.subr.bf16.mxu0 %v1081
    %2352 = vmatpush1.bf16.msra.mxu0 %v1080
    %2353 = vmatprep.subr.bf16.mxu0 %v1085
    %2354 = vmatpush1.bf16.msra.mxu0 %v1084
    %2355 = vmatprep.subr.bf16.mxu0 %v1089
    %2356 = vmatpush1.bf16.msra.mxu0 %v1088
    %2357 = vmatprep.subr.bf16.mxu0 %v1093
    %2358 = vmatpush1.bf16.msra.mxu0 %v1092
    %2359 = vmatprep.subr.bf16.mxu0 %v1097
    %2360 = vmatpush1.bf16.msra.mxu0 %v1096
    %2361 = vmatprep.subr.bf16.mxu0 %v1101
    %2362 = vmatpush1.bf16.msra.mxu0 %v1100
    %2363 = vmatprep.subr.bf16.mxu0 %v1105
    %2364 = vmatpush1.bf16.msra.mxu0 %v1104
    %2365 = vmatprep.subr.bf16.mxu0 %v1109
    %2366 = vmatpush1.bf16.msra.mxu0 %v1108
    %2367 = vmatprep.subr.bf16.mxu0 %v1113
    %2368 = vmatpush1.bf16.msra.mxu0 %v1112
    %2369 = vmatprep.subr.bf16.mxu0 %v1117
    %2370 = vmatpush1.bf16.msra.mxu0 %v1116
    %2371 = vmatprep.subr.bf16.mxu0 %v1121
    %2372 = vmatpush1.bf16.msra.mxu0 %v1120
    %2373 = vmatprep.mubr.bf16.mxu0 %v2297
    %2374 = vmatmul.mubr.bf16.gmra.mrb[0].mxu0 %v2296
    %v2375 = vpop.f32.mrb[0].mxu0
    %v2376 = vadd.f32 %v857, %v2375
    %v2377 = vpop.f32.mrb[0].mxu0
    %v2378 = vadd.f32 %v861, %v2377
    %v2379 = vpop.f32.mrb[0].mxu0
    %v2380 = vadd.f32 %v857, %v2379
    %v2381 = vpop.f32.mrb[0].mxu0
    %v2382 = vadd.f32 %v861, %v2381
    %2383 = vdwg.mxu0
    %v2384 = vxor.u32 %v2333, 2147483648
    %v2385 = vxor.u32 %v2337, 2147483648
    %v2386 = vmul.f32 %v2384, 1.442695
    %v2387 = vpow.pop %v2386
    %v2388 = vmul.f32 %v2385, 1.442695
    %v2389 = vpow.pop %v2388
    %v2390 = vadd.f32 %v2387, 1.0
    %v2391 = vadd.f32 %v2389, 1.0
    %v2392 = vrcp.pop %v2390
    %v2393 = vmul.f32 1.0, %v2392
    %v2394 = vrcp.pop %v2391
    %v2395 = vmul.f32 1.0, %v2394
    %v2396 = vxor.u32 %v2335, 2147483648
    %v2397 = vxor.u32 %v2339, 2147483648
    %v2398 = vmul.f32 %v2396, 1.442695
    %v2399 = vpow.pop %v2398
    %v2400 = vmul.f32 %v2397, 1.442695
    %v2401 = vpow.pop %v2400
    %v2402 = vadd.f32 %v2399, 1.0
    %v2403 = vadd.f32 %v2401, 1.0
    %v2404 = vrcp.pop %v2402
    %v2405 = vmul.f32 1.0, %v2404
    %v2406 = vrcp.pop %v2403
    %v2407 = vmul.f32 1.0, %v2406
    %v2408 = vtanh.pop %v2376
    %v2409 = vtanh.pop %v2380
    %v2410 = vxor.u32 %v2378, 2147483648
    %v2411 = vxor.u32 %v2382, 2147483648
    %v2412 = vmul.f32 %v2410, 1.442695
    %v2413 = vpow.pop %v2412
    %v2414 = vmul.f32 %v2411, 1.442695
    %v2415 = vpow.pop %v2414
    %v2416 = vadd.f32 %v2413, 1.0
    %v2417 = vadd.f32 %v2415, 1.0
    %v2418 = vrcp.pop %v2416
    %v2419 = vmul.f32 1.0, %v2418
    %v2420 = vrcp.pop %v2417
    %v2421 = vmul.f32 1.0, %v2420
    %v2422 = vmul.f32 %v2405, %v2148
    %v2423 = vmul.f32 %v2407, %v2149
    %v2424 = vmul.f32 %v2393, %v2408
    %v2425 = vmul.f32 %v2395, %v2409
    %v2426 = vadd.f32 %v2422, %v2424
    %v2427 = vadd.f32 %v2423, %v2425
    %v2428 = vtanh.pop %v2426
    %v2429 = vtanh.pop %v2427
    %v2430 = vmul.f32 %v2419, %v2428
    %v2431 = vmul.f32 %v2421, %v2429
    %2432 = vmatprep.subr.bf16.mxu0 %v574
    %2433 = vmatpush1.bf16.msra.mxu0 %v573
    %2434 = vmatprep.subr.bf16.mxu0 %v578
    %2435 = vmatpush1.bf16.msra.mxu0 %v577
    %2436 = vmatprep.subr.bf16.mxu0 %v582
    %2437 = vmatpush1.bf16.msra.mxu0 %v581
    %2438 = vmatprep.subr.bf16.mxu0 %v586
    %2439 = vmatpush1.bf16.msra.mxu0 %v585
    %2440 = vmatprep.subr.bf16.mxu0 %v590
    %2441 = vmatpush1.bf16.msra.mxu0 %v589
    %2442 = vmatprep.subr.bf16.mxu0 %v594
    %2443 = vmatpush1.bf16.msra.mxu0 %v593
    %2444 = vmatprep.subr.bf16.mxu0 %v598
    %2445 = vmatpush1.bf16.msra.mxu0 %v597
    %2446 = vmatprep.subr.bf16.mxu0 %v602
    %2447 = vmatpush1.bf16.msra.mxu0 %v601
    %2448 = vmatprep.subr.bf16.mxu0 0
    %2449 = vmatpush1.bf16.msra.mxu0 0
    %2450 = vmatprep.subr.bf16.mxu0 0
    %2451 = vmatpush1.bf16.msra.mxu0 0
    %2452 = vmatprep.subr.bf16.mxu0 0
    %2453 = vmatpush1.bf16.msra.mxu0 0
    %2454 = vmatprep.subr.bf16.mxu0 0
    %2455 = vmatpush1.bf16.msra.mxu0 0
    %2456 = vmatprep.subr.bf16.mxu0 0
    %2457 = vmatpush1.bf16.msra.mxu0 0
    %2458 = vmatprep.subr.bf16.mxu0 0
    %2459 = vmatpush1.bf16.msra.mxu0 0
    %2460 = vmatprep.subr.bf16.mxu0 0
    %2461 = vmatpush1.bf16.msra.mxu0 0
    %2462 = vmatprep.subr.bf16.mxu0 0
    %2463 = vmatpush1.bf16.msra.mxu0 0
    %2464 = vmatprep.mubr.bf16.mxu0 0
    %2465 = vmatmul.mubr.bf16.gmra.mrb[0].mxu0 %v2296
    %v2466 = vpop.f32.mrb[0].mxu0
    %v2467 = vadd.f32 0.0, %v2466
    %v2468 = vpop.f32.mrb[0].mxu0
    %v2469 = vadd.f32 0.0, %v2468
    %v2470 = vpop.f32.mrb[0].mxu0
    %v2471 = vadd.f32 0.0, %v2470
    %v2472 = vpop.f32.mrb[0].mxu0
    %v2473 = vadd.f32 0.0, %v2472
    %2474 = vdwg.mxu0
    %2475 = vmatprep.subr.bf16.mxu0 %v576
    %2476 = vmatpush1.bf16.msra.mxu0 %v575
    %2477 = vmatprep.subr.bf16.mxu0 %v580
    %2478 = vmatpush1.bf16.msra.mxu0 %v579
    %2479 = vmatprep.subr.bf16.mxu0 %v584
    %2480 = vmatpush1.bf16.msra.mxu0 %v583
    %2481 = vmatprep.subr.bf16.mxu0 %v588
    %2482 = vmatpush1.bf16.msra.mxu0 %v587
    %2483 = vmatprep.subr.bf16.mxu0 %v592
    %2484 = vmatpush1.bf16.msra.mxu0 %v591
    %2485 = vmatprep.subr.bf16.mxu0 %v596
    %2486 = vmatpush1.bf16.msra.mxu0 %v595
    %2487 = vmatprep.subr.bf16.mxu0 %v600
    %2488 = vmatpush1.bf16.msra.mxu0 %v599
    %2489 = vmatprep.subr.bf16.mxu0 %v604
    %2490 = vmatpush1.bf16.msra.mxu0 %v603
    %2491 = vmatprep.subr.bf16.mxu0 0
    %2492 = vmatpush1.bf16.msra.mxu0 0
    %2493 = vmatprep.subr.bf16.mxu0 0
    %2494 = vmatpush1.bf16.msra.mxu0 0
    %2495 = vmatprep.subr.bf16.mxu0 0
    %2496 = vmatpush1.bf16.msra.mxu0 0
    %2497 = vmatprep.subr.bf16.mxu0 0
    %2498 = vmatpush1.bf16.msra.mxu0 0
    %2499 = vmatprep.subr.bf16.mxu0 0
    %2500 = vmatpush1.bf16.msra.mxu0 0
    %2501 = vmatprep.subr.bf16.mxu0 0
    %2502 = vmatpush1.bf16.msra.mxu0 0
    %2503 = vmatprep.subr.bf16.mxu0 0
    %2504 = vmatpush1.bf16.msra.mxu0 0
    %2505 = vmatprep.subr.bf16.mxu0 0
    %2506 = vmatpush1.bf16.msra.mxu0 0
    %2507 = vmatprep.mubr.bf16.mxu0 0
    %2508 = vmatmul.mubr.bf16.gmra.mrb[0].mxu0 %v2296
    %v2509 = vpop.f32.mrb[0].mxu0
    %v2510 = vadd.f32 0.0, %v2509
    %v2511 = vpop.f32.mrb[0].mxu0
    %v2512 = vadd.f32 0.0, %v2511
    %v2513 = vpop.f32.mrb[0].mxu0
    %v2514 = vadd.f32 0.0, %v2513
    %v2515 = vpop.f32.mrb[0].mxu0
    %v2516 = vadd.f32 0.0, %v2515
    %2517 = vdwg.mxu0
    %v2518 = vadd.f32 %v304, %v2467
    %v2519 = vadd.f32 %v306, %v2469
    %v2520 = vadd.f32 %v417, %v2510
    %v2521 = vadd.f32 %v419, %v2512
    %v2522 = vadd.f32 %v308, %v2471
    %v2523 = vadd.f32 %v310, %v2473
    %v2524 = vadd.f32 %v421, %v2514
    %v2525 = vadd.f32 %v423, %v2516
    %v2526 = vxor.u32 %v2518, 2147483648
    %v2527 = vxor.u32 %v2522, 2147483648
    %v2528 = vmul.f32 %v2526, 1.442695
    %v2529 = vpow.pop %v2528
    %v2530 = vmul.f32 %v2527, 1.442695
    %v2531 = vpow.pop %v2530
    %v2532 = vadd.f32 %v2529, 1.0
    %v2533 = vadd.f32 %v2531, 1.0
    %v2534 = vrcp.pop %v2532
    %v2535 = vmul.f32 1.0, %v2534
    %v2536 = vrcp.pop %v2533
    %v2537 = vmul.f32 1.0, %v2536
    %v2538 = vxor.u32 %v2519, 2147483648
    %v2539 = vxor.u32 %v2523, 2147483648
    %v2540 = vmul.f32 %v2538, 1.442695
    %v2541 = vpow.pop %v2540
    %v2542 = vmul.f32 %v2539, 1.442695
    %v2543 = vpow.pop %v2542
    %v2544 = vadd.f32 %v2541, 1.0
    %v2545 = vadd.f32 %v2543, 1.0
    %v2546 = vrcp.pop %v2544
    %v2547 = vmul.f32 1.0, %v2546
    %v2548 = vrcp.pop %v2545
    %v2549 = vmul.f32 1.0, %v2548
    %v2550 = vtanh.pop %v2520
    %v2551 = vtanh.pop %v2524
    %v2552 = vxor.u32 %v2521, 2147483648
    %v2553 = vxor.u32 %v2525, 2147483648
    %v2554 = vmul.f32 %v2552, 1.442695
    %v2555 = vpow.pop %v2554
    %v2556 = vmul.f32 %v2553, 1.442695
    %v2557 = vpow.pop %v2556
    %v2558 = vadd.f32 %v2555, 1.0
    %v2559 = vadd.f32 %v2557, 1.0
    %v2560 = vrcp.pop %v2558
    %v2561 = vmul.f32 1.0, %v2560
    %v2562 = vrcp.pop %v2559
    %v2563 = vmul.f32 1.0, %v2562
    %v2564 = vmul.f32 %v2547, %v2290
    %v2565 = vmul.f32 %v2549, %v2291
    %v2566 = vmul.f32 %v2535, %v2550
    %v2567 = vmul.f32 %v2537, %v2551
    %v2568 = vadd.f32 %v2564, %v2566
    %v2569 = vadd.f32 %v2565, %v2567
    %v2570 = vtanh.pop %v2568
    %v2571 = vtanh.pop %v2569
    %v2572 = vmul.f32 %v2561, %v2570
    %v2573 = vmul.f32 %v2563, %v2571
    %v2574 = vpack.c.bf16 %v2573, %v2572
    %v2575 = vpack.c.bf16 %v2431, %v2430
    %2576 = vmatprep.subr.bf16.mxu0 %v1059
    %2577 = vmatpush1.bf16.msra.mxu0 %v1058
    %2578 = vmatprep.subr.bf16.mxu0 %v1063
    %2579 = vmatpush1.bf16.msra.mxu0 %v1062
    %2580 = vmatprep.subr.bf16.mxu0 %v1067
    %2581 = vmatpush1.bf16.msra.mxu0 %v1066
    %2582 = vmatprep.subr.bf16.mxu0 %v1071
    %2583 = vmatpush1.bf16.msra.mxu0 %v1070
    %2584 = vmatprep.subr.bf16.mxu0 %v1075
    %2585 = vmatpush1.bf16.msra.mxu0 %v1074
    %2586 = vmatprep.subr.bf16.mxu0 %v1079
    %2587 = vmatpush1.bf16.msra.mxu0 %v1078
    %2588 = vmatprep.subr.bf16.mxu0 %v1083
    %2589 = vmatpush1.bf16.msra.mxu0 %v1082
    %2590 = vmatprep.subr.bf16.mxu0 %v1087
    %2591 = vmatpush1.bf16.msra.mxu0 %v1086
    %2592 = vmatprep.subr.bf16.mxu0 %v1091
    %2593 = vmatpush1.bf16.msra.mxu0 %v1090
    %2594 = vmatprep.subr.bf16.mxu0 %v1095
    %2595 = vmatpush1.bf16.msra.mxu0 %v1094
    %2596 = vmatprep.subr.bf16.mxu0 %v1099
    %2597 = vmatpush1.bf16.msra.mxu0 %v1098
    %2598 = vmatprep.subr.bf16.mxu0 %v1103
    %2599 = vmatpush1.bf16.msra.mxu0 %v1102
    %2600 = vmatprep.subr.bf16.mxu0 %v1107
    %2601 = vmatpush1.bf16.msra.mxu0 %v1106
    %2602 = vmatprep.subr.bf16.mxu0 %v1111
    %2603 = vmatpush1.bf16.msra.mxu0 %v1110
    %2604 = vmatprep.subr.bf16.mxu0 %v1115
    %2605 = vmatpush1.bf16.msra.mxu0 %v1114
    %2606 = vmatprep.subr.bf16.mxu0 %v1119
    %2607 = vmatpush1.bf16.msra.mxu0 %v1118
    %2608 = vmatprep.mubr.bf16.mxu0 %v2575
    %2609 = vmatmul.mubr.bf16.gmra.mrb[0].mxu0 %v2574
    %v2610 = vpop.f32.mrb[0].mxu0
    %v2611 = vadd.f32 %v849, %v2610
    %v2612 = vpop.f32.mrb[0].mxu0
    %v2613 = vadd.f32 %v853, %v2612
    %v2614 = vpop.f32.mrb[0].mxu0
    %v2615 = vadd.f32 %v849, %v2614
    %v2616 = vpop.f32.mrb[0].mxu0
    %v2617 = vadd.f32 %v853, %v2616
    %2618 = vdwg.mxu0
    %2619 = vmatprep.subr.bf16.mxu0 %v1061
    %2620 = vmatpush1.bf16.msra.mxu0 %v1060
    %2621 = vmatprep.subr.bf16.mxu0 %v1065
    %2622 = vmatpush1.bf16.msra.mxu0 %v1064
    %2623 = vmatprep.subr.bf16.mxu0 %v1069
    %2624 = vmatpush1.bf16.msra.mxu0 %v1068
    %2625 = vmatprep.subr.bf16.mxu0 %v1073
    %2626 = vmatpush1.bf16.msra.mxu0 %v1072
    %2627 = vmatprep.subr.bf16.mxu0 %v1077
    %2628 = vmatpush1.bf16.msra.mxu0 %v1076
    %2629 = vmatprep.subr.bf16.mxu0 %v1081
    %2630 = vmatpush1.bf16.msra.mxu0 %v1080
    %2631 = vmatprep.subr.bf16.mxu0 %v1085
    %2632 = vmatpush1.bf16.msra.mxu0 %v1084
    %2633 = vmatprep.subr.bf16.mxu0 %v1089
    %2634 = vmatpush1.bf16.msra.mxu0 %v1088
    %2635 = vmatprep.subr.bf16.mxu0 %v1093
    %2636 = vmatpush1.bf16.msra.mxu0 %v1092
    %2637 = vmatprep.subr.bf16.mxu0 %v1097
    %2638 = vmatpush1.bf16.msra.mxu0 %v1096
    %2639 = vmatprep.subr.bf16.mxu0 %v1101
    %2640 = vmatpush1.bf16.msra.mxu0 %v1100
    %2641 = vmatprep.subr.bf16.mxu0 %v1105
    %2642 = vmatpush1.bf16.msra.mxu0 %v1104
    %2643 = vmatprep.subr.bf16.mxu0 %v1109
    %2644 = vmatpush1.bf16.msra.mxu0 %v1108
    %2645 = vmatprep.subr.bf16.mxu0 %v1113
    %2646 = vmatpush1.bf16.msra.mxu0 %v1112
    %2647 = vmatprep.subr.bf16.mxu0 %v1117
    %2648 = vmatpush1.bf16.msra.mxu0 %v1116
    %2649 = vmatprep.subr.bf16.mxu0 %v1121
    %2650 = vmatpush1.bf16.msra.mxu0 %v1120
    %2651 = vmatprep.mubr.bf16.mxu0 %v2575
    %2652 = vmatmul.mubr.bf16.gmra.mrb[0].mxu0 %v2574
    %v2653 = vpop.f32.mrb[0].mxu0
    %v2654 = vadd.f32 %v857, %v2653
    %v2655 = vpop.f32.mrb[0].mxu0
    %v2656 = vadd.f32 %v861, %v2655
    %v2657 = vpop.f32.mrb[0].mxu0
    %v2658 = vadd.f32 %v857, %v2657
    %v2659 = vpop.f32.mrb[0].mxu0
    %v2660 = vadd.f32 %v861, %v2659
    %2661 = vdwg.mxu0
    %v2662 = vxor.u32 %v2611, 2147483648
    %v2663 = vxor.u32 %v2615, 2147483648
    %v2664 = vmul.f32 %v2662, 1.442695
    %v2665 = vpow.pop %v2664
    %v2666 = vmul.f32 %v2663, 1.442695
    %v2667 = vpow.pop %v2666
    %v2668 = vadd.f32 %v2665, 1.0
    %v2669 = vadd.f32 %v2667, 1.0
    %v2670 = vrcp.pop %v2668
    %v2671 = vmul.f32 1.0, %v2670
    %v2672 = vrcp.pop %v2669
    %v2673 = vmul.f32 1.0, %v2672
    %v2674 = vxor.u32 %v2613, 2147483648
    %v2675 = vxor.u32 %v2617, 2147483648
    %v2676 = vmul.f32 %v2674, 1.442695
    %v2677 = vpow.pop %v2676
    %v2678 = vmul.f32 %v2675, 1.442695
    %v2679 = vpow.pop %v2678
    %v2680 = vadd.f32 %v2677, 1.0
    %v2681 = vadd.f32 %v2679, 1.0
    %v2682 = vrcp.pop %v2680
    %v2683 = vmul.f32 1.0, %v2682
    %v2684 = vrcp.pop %v2681
    %v2685 = vmul.f32 1.0, %v2684
    %v2686 = vtanh.pop %v2654
    %v2687 = vtanh.pop %v2658
    %v2688 = vxor.u32 %v2656, 2147483648
    %v2689 = vxor.u32 %v2660, 2147483648
    %v2690 = vmul.f32 %v2688, 1.442695
    %v2691 = vpow.pop %v2690
    %v2692 = vmul.f32 %v2689, 1.442695
    %v2693 = vpow.pop %v2692
    %v2694 = vadd.f32 %v2691, 1.0
    %v2695 = vadd.f32 %v2693, 1.0
    %v2696 = vrcp.pop %v2694
    %v2697 = vmul.f32 1.0, %v2696
    %v2698 = vrcp.pop %v2695
    %v2699 = vmul.f32 1.0, %v2698
    %v2700 = vmul.f32 %v2683, %v2426
    %v2701 = vmul.f32 %v2685, %v2427
    %v2702 = vmul.f32 %v2671, %v2686
    %v2703 = vmul.f32 %v2673, %v2687
    %v2704 = vadd.f32 %v2700, %v2702
    %v2705 = vadd.f32 %v2701, %v2703
    %v2706 = vtanh.pop %v2704
    %v2707 = vtanh.pop %v2705
    %v2708 = vmul.f32 %v2697, %v2706
    %v2709 = vmul.f32 %v2699, %v2707
    %2710 = vmatprep.subr.bf16.mxu0 %v574
    %2711 = vmatpush1.bf16.msra.mxu0 %v573
    %2712 = vmatprep.subr.bf16.mxu0 %v578
    %2713 = vmatpush1.bf16.msra.mxu0 %v577
    %2714 = vmatprep.subr.bf16.mxu0 %v582
    %2715 = vmatpush1.bf16.msra.mxu0 %v581
    %2716 = vmatprep.subr.bf16.mxu0 %v586
    %2717 = vmatpush1.bf16.msra.mxu0 %v585
    %2718 = vmatprep.subr.bf16.mxu0 %v590
    %2719 = vmatpush1.bf16.msra.mxu0 %v589
    %2720 = vmatprep.subr.bf16.mxu0 %v594
    %2721 = vmatpush1.bf16.msra.mxu0 %v593
    %2722 = vmatprep.subr.bf16.mxu0 %v598
    %2723 = vmatpush1.bf16.msra.mxu0 %v597
    %2724 = vmatprep.subr.bf16.mxu0 %v602
    %2725 = vmatpush1.bf16.msra.mxu0 %v601
    %2726 = vmatprep.subr.bf16.mxu0 0
    %2727 = vmatpush1.bf16.msra.mxu0 0
    %2728 = vmatprep.subr.bf16.mxu0 0
    %2729 = vmatpush1.bf16.msra.mxu0 0
    %2730 = vmatprep.subr.bf16.mxu0 0
    %2731 = vmatpush1.bf16.msra.mxu0 0
    %2732 = vmatprep.subr.bf16.mxu0 0
    %2733 = vmatpush1.bf16.msra.mxu0 0
    %2734 = vmatprep.subr.bf16.mxu0 0
    %2735 = vmatpush1.bf16.msra.mxu0 0
    %2736 = vmatprep.subr.bf16.mxu0 0
    %2737 = vmatpush1.bf16.msra.mxu0 0
    %2738 = vmatprep.subr.bf16.mxu0 0
    %2739 = vmatpush1.bf16.msra.mxu0 0
    %2740 = vmatprep.subr.bf16.mxu0 0
    %2741 = vmatpush1.bf16.msra.mxu0 0
    %2742 = vmatprep.mubr.bf16.mxu0 0
    %2743 = vmatmul.mubr.bf16.gmra.mrb[0].mxu0 %v2574
    %v2744 = vpop.f32.mrb[0].mxu0
    %v2745 = vadd.f32 0.0, %v2744
    %v2746 = vpop.f32.mrb[0].mxu0
    %v2747 = vadd.f32 0.0, %v2746
    %v2748 = vpop.f32.mrb[0].mxu0
    %v2749 = vadd.f32 0.0, %v2748
    %v2750 = vpop.f32.mrb[0].mxu0
    %v2751 = vadd.f32 0.0, %v2750
    %2752 = vdwg.mxu0
    %2753 = vmatprep.subr.bf16.mxu0 %v576
    %2754 = vmatpush1.bf16.msra.mxu0 %v575
    %2755 = vmatprep.subr.bf16.mxu0 %v580
    %2756 = vmatpush1.bf16.msra.mxu0 %v579
    %2757 = vmatprep.subr.bf16.mxu0 %v584
    %2758 = vmatpush1.bf16.msra.mxu0 %v583
    %2759 = vmatprep.subr.bf16.mxu0 %v588
    %2760 = vmatpush1.bf16.msra.mxu0 %v587
    %2761 = vmatprep.subr.bf16.mxu0 %v592
    %2762 = vmatpush1.bf16.msra.mxu0 %v591
    %2763 = vmatprep.subr.bf16.mxu0 %v596
    %2764 = vmatpush1.bf16.msra.mxu0 %v595
    %2765 = vmatprep.subr.bf16.mxu0 %v600
    %2766 = vmatpush1.bf16.msra.mxu0 %v599
    %2767 = vmatprep.subr.bf16.mxu0 %v604
    %2768 = vmatpush1.bf16.msra.mxu0 %v603
    %2769 = vmatprep.subr.bf16.mxu0 0
    %2770 = vmatpush1.bf16.msra.mxu0 0
    %2771 = vmatprep.subr.bf16.mxu0 0
    %2772 = vmatpush1.bf16.msra.mxu0 0
    %2773 = vmatprep.subr.bf16.mxu0 0
    %2774 = vmatpush1.bf16.msra.mxu0 0
    %2775 = vmatprep.subr.bf16.mxu0 0
    %2776 = vmatpush1.bf16.msra.mxu0 0
    %2777 = vmatprep.subr.bf16.mxu0 0
    %2778 = vmatpush1.bf16.msra.mxu0 0
    %2779 = vmatprep.subr.bf16.mxu0 0
    %2780 = vmatpush1.bf16.msra.mxu0 0
    %2781 = vmatprep.subr.bf16.mxu0 0
    %2782 = vmatpush1.bf16.msra.mxu0 0
    %2783 = vmatprep.subr.bf16.mxu0 0
    %2784 = vmatpush1.bf16.msra.mxu0 0
    %2785 = vmatprep.mubr.bf16.mxu0 0
    %2786 = vmatmul.mubr.bf16.gmra.mrb[0].mxu0 %v2574
    %v2787 = vpop.f32.mrb[0].mxu0
    %v2788 = vadd.f32 0.0, %v2787
    %v2789 = vpop.f32.mrb[0].mxu0
    %v2790 = vadd.f32 0.0, %v2789
    %v2791 = vpop.f32.mrb[0].mxu0
    %v2792 = vadd.f32 0.0, %v2791
    %v2793 = vpop.f32.mrb[0].mxu0
    %v2794 = vadd.f32 0.0, %v2793
    %2795 = vdwg.mxu0
    %v2796 = vadd.f32 %v314, %v2745
    %v2797 = vadd.f32 %v316, %v2747
    %v2798 = vadd.f32 %v427, %v2788
    %v2799 = vadd.f32 %v429, %v2790
    %v2800 = vadd.f32 %v318, %v2749
    %v2801 = vadd.f32 %v320, %v2751
    %v2802 = vadd.f32 %v431, %v2792
    %v2803 = vadd.f32 %v433, %v2794
    %v2804 = vxor.u32 %v2796, 2147483648
    %v2805 = vxor.u32 %v2800, 2147483648
    %v2806 = vmul.f32 %v2804, 1.442695
    %v2807 = vpow.pop %v2806
    %v2808 = vmul.f32 %v2805, 1.442695
    %v2809 = vpow.pop %v2808
    %v2810 = vadd.f32 %v2807, 1.0
    %v2811 = vadd.f32 %v2809, 1.0
    %v2812 = vrcp.pop %v2810
    %v2813 = vmul.f32 1.0, %v2812
    %v2814 = vrcp.pop %v2811
    %v2815 = vmul.f32 1.0, %v2814
    %v2816 = vxor.u32 %v2797, 2147483648
    %v2817 = vxor.u32 %v2801, 2147483648
    %v2818 = vmul.f32 %v2816, 1.442695
    %v2819 = vpow.pop %v2818
    %v2820 = vmul.f32 %v2817, 1.442695
    %v2821 = vpow.pop %v2820
    %v2822 = vadd.f32 %v2819, 1.0
    %v2823 = vadd.f32 %v2821, 1.0
    %v2824 = vrcp.pop %v2822
    %v2825 = vmul.f32 1.0, %v2824
    %v2826 = vrcp.pop %v2823
    %v2827 = vmul.f32 1.0, %v2826
    %v2828 = vtanh.pop %v2798
    %v2829 = vtanh.pop %v2802
    %v2830 = vxor.u32 %v2799, 2147483648
    %v2831 = vxor.u32 %v2803, 2147483648
    %v2832 = vmul.f32 %v2830, 1.442695
    %v2833 = vpow.pop %v2832
    %v2834 = vmul.f32 %v2831, 1.442695
    %v2835 = vpow.pop %v2834
    %v2836 = vadd.f32 %v2833, 1.0
    %v2837 = vadd.f32 %v2835, 1.0
    %v2838 = vrcp.pop %v2836
    %v2839 = vmul.f32 1.0, %v2838
    %v2840 = vrcp.pop %v2837
    %v2841 = vmul.f32 1.0, %v2840
    %v2842 = vmul.f32 %v2825, %v2568
    %v2843 = vmul.f32 %v2827, %v2569
    %v2844 = vmul.f32 %v2813, %v2828
    %v2845 = vmul.f32 %v2815, %v2829
    %v2846 = vadd.f32 %v2842, %v2844
    %v2847 = vadd.f32 %v2843, %v2845
    %v2848 = vtanh.pop %v2846
    %v2849 = vtanh.pop %v2847
    %v2850 = vmul.f32 %v2839, %v2848
    %v2851 = vmul.f32 %v2841, %v2849
    %v2852 = vpack.c.bf16 %v2851, %v2850
    %v2853 = vpack.c.bf16 %v2709, %v2708
    %2854 = vmatprep.subr.bf16.mxu0 %v1059
    %2855 = vmatpush1.bf16.msra.mxu0 %v1058
    %2856 = vmatprep.subr.bf16.mxu0 %v1063
    %2857 = vmatpush1.bf16.msra.mxu0 %v1062
    %2858 = vmatprep.subr.bf16.mxu0 %v1067
    %2859 = vmatpush1.bf16.msra.mxu0 %v1066
    %2860 = vmatprep.subr.bf16.mxu0 %v1071
    %2861 = vmatpush1.bf16.msra.mxu0 %v1070
    %2862 = vmatprep.subr.bf16.mxu0 %v1075
    %2863 = vmatpush1.bf16.msra.mxu0 %v1074
    %2864 = vmatprep.subr.bf16.mxu0 %v1079
    %2865 = vmatpush1.bf16.msra.mxu0 %v1078
    %2866 = vmatprep.subr.bf16.mxu0 %v1083
    %2867 = vmatpush1.bf16.msra.mxu0 %v1082
    %2868 = vmatprep.subr.bf16.mxu0 %v1087
    %2869 = vmatpush1.bf16.msra.mxu0 %v1086
    %2870 = vmatprep.subr.bf16.mxu0 %v1091
    %2871 = vmatpush1.bf16.msra.mxu0 %v1090
    %2872 = vmatprep.subr.bf16.mxu0 %v1095
    %2873 = vmatpush1.bf16.msra.mxu0 %v1094
    %2874 = vmatprep.subr.bf16.mxu0 %v1099
    %2875 = vmatpush1.bf16.msra.mxu0 %v1098
    %2876 = vmatprep.subr.bf16.mxu0 %v1103
    %2877 = vmatpush1.bf16.msra.mxu0 %v1102
    %2878 = vmatprep.subr.bf16.mxu0 %v1107
    %2879 = vmatpush1.bf16.msra.mxu0 %v1106
    %2880 = vmatprep.subr.bf16.mxu0 %v1111
    %2881 = vmatpush1.bf16.msra.mxu0 %v1110
    %2882 = vmatprep.subr.bf16.mxu0 %v1115
    %2883 = vmatpush1.bf16.msra.mxu0 %v1114
    %2884 = vmatprep.subr.bf16.mxu0 %v1119
    %2885 = vmatpush1.bf16.msra.mxu0 %v1118
    %2886 = vmatprep.mubr.bf16.mxu0 %v2853
    %2887 = vmatmul.mubr.bf16.gmra.mrb[0].mxu0 %v2852
    %v2888 = vpop.f32.mrb[0].mxu0
    %v2889 = vadd.f32 %v849, %v2888
    %v2890 = vpop.f32.mrb[0].mxu0
    %v2891 = vadd.f32 %v853, %v2890
    %v2892 = vpop.f32.mrb[0].mxu0
    %v2893 = vadd.f32 %v849, %v2892
    %v2894 = vpop.f32.mrb[0].mxu0
    %v2895 = vadd.f32 %v853, %v2894
    %2896 = vdwg.mxu0
    %2897 = vmatprep.subr.bf16.mxu0 %v1061
    %2898 = vmatpush1.bf16.msra.mxu0 %v1060
    %2899 = vmatprep.subr.bf16.mxu0 %v1065
    %2900 = vmatpush1.bf16.msra.mxu0 %v1064
    %2901 = vmatprep.subr.bf16.mxu0 %v1069
    %2902 = vmatpush1.bf16.msra.mxu0 %v1068
    %2903 = vmatprep.subr.bf16.mxu0 %v1073
    %2904 = vmatpush1.bf16.msra.mxu0 %v1072
    %2905 = vmatprep.subr.bf16.mxu0 %v1077
    %2906 = vmatpush1.bf16.msra.mxu0 %v1076
    %2907 = vmatprep.subr.bf16.mxu0 %v1081
    %2908 = vmatpush1.bf16.msra.mxu0 %v1080
    %2909 = vmatprep.subr.bf16.mxu0 %v1085
    %2910 = vmatpush1.bf16.msra.mxu0 %v1084
    %2911 = vmatprep.subr.bf16.mxu0 %v1089
    %2912 = vmatpush1.bf16.msra.mxu0 %v1088
    %2913 = vmatprep.subr.bf16.mxu0 %v1093
    %2914 = vmatpush1.bf16.msra.mxu0 %v1092
    %2915 = vmatprep.subr.bf16.mxu0 %v1097
    %2916 = vmatpush1.bf16.msra.mxu0 %v1096
    %2917 = vmatprep.subr.bf16.mxu0 %v1101
    %2918 = vmatpush1.bf16.msra.mxu0 %v1100
    %2919 = vmatprep.subr.bf16.mxu0 %v1105
    %2920 = vmatpush1.bf16.msra.mxu0 %v1104
    %2921 = vmatprep.subr.bf16.mxu0 %v1109
    %2922 = vmatpush1.bf16.msra.mxu0 %v1108
    %2923 = vmatprep.subr.bf16.mxu0 %v1113
    %2924 = vmatpush1.bf16.msra.mxu0 %v1112
    %2925 = vmatprep.subr.bf16.mxu0 %v1117
    %2926 = vmatpush1.bf16.msra.mxu0 %v1116
    %2927 = vmatprep.subr.bf16.mxu0 %v1121
    %2928 = vmatpush1.bf16.msra.mxu0 %v1120
    %2929 = vmatprep.mubr.bf16.mxu0 %v2853
    %2930 = vmatmul.mubr.bf16.gmra.mrb[0].mxu0 %v2852
    %v2931 = vpop.f32.mrb[0].mxu0
    %v2932 = vadd.f32 %v857, %v2931
    %v2933 = vpop.f32.mrb[0].mxu0
    %v2934 = vadd.f32 %v861, %v2933
    %v2935 = vpop.f32.mrb[0].mxu0
    %v2936 = vadd.f32 %v857, %v2935
    %v2937 = vpop.f32.mrb[0].mxu0
    %v2938 = vadd.f32 %v861, %v2937
    %2939 = vdwg.mxu0
    %v2940 = vxor.u32 %v2889, 2147483648
    %v2941 = vxor.u32 %v2893, 2147483648
    %v2942 = vmul.f32 %v2940, 1.442695
    %v2943 = vpow.pop %v2942
    %v2944 = vmul.f32 %v2941, 1.442695
    %v2945 = vpow.pop %v2944
    %v2946 = vadd.f32 %v2943, 1.0
    %v2947 = vadd.f32 %v2945, 1.0
    %v2948 = vrcp.pop %v2946
    %v2949 = vmul.f32 1.0, %v2948
    %v2950 = vrcp.pop %v2947
    %v2951 = vmul.f32 1.0, %v2950
    %v2952 = vxor.u32 %v2891, 2147483648
    %v2953 = vxor.u32 %v2895, 2147483648
    %v2954 = vmul.f32 %v2952, 1.442695
    %v2955 = vpow.pop %v2954
    %v2956 = vmul.f32 %v2953, 1.442695
    %v2957 = vpow.pop %v2956
    %v2958 = vadd.f32 %v2955, 1.0
    %v2959 = vadd.f32 %v2957, 1.0
    %v2960 = vrcp.pop %v2958
    %v2961 = vmul.f32 1.0, %v2960
    %v2962 = vrcp.pop %v2959
    %v2963 = vmul.f32 1.0, %v2962
    %v2964 = vtanh.pop %v2932
    %v2965 = vtanh.pop %v2936
    %v2966 = vxor.u32 %v2934, 2147483648
    %v2967 = vxor.u32 %v2938, 2147483648
    %v2968 = vmul.f32 %v2966, 1.442695
    %v2969 = vpow.pop %v2968
    %v2970 = vmul.f32 %v2967, 1.442695
    %v2971 = vpow.pop %v2970
    %v2972 = vadd.f32 %v2969, 1.0
    %v2973 = vadd.f32 %v2971, 1.0
    %v2974 = vrcp.pop %v2972
    %v2975 = vmul.f32 1.0, %v2974
    %v2976 = vrcp.pop %v2973
    %v2977 = vmul.f32 1.0, %v2976
    %v2978 = vmul.f32 %v2961, %v2704
    %v2979 = vmul.f32 %v2963, %v2705
    %v2980 = vmul.f32 %v2949, %v2964
    %v2981 = vmul.f32 %v2951, %v2965
    %v2982 = vadd.f32 %v2978, %v2980
    %v2983 = vadd.f32 %v2979, %v2981
    %v2984 = vtanh.pop %v2982
    %v2985 = vtanh.pop %v2983
    %v2986 = vmul.f32 %v2975, %v2984
    %v2987 = vmul.f32 %v2977, %v2985
    %2988 = vmatprep.subr.bf16.mxu0 %v574
    %2989 = vmatpush1.bf16.msra.mxu0 %v573
    %2990 = vmatprep.subr.bf16.mxu0 %v578
    %2991 = vmatpush1.bf16.msra.mxu0 %v577
    %2992 = vmatprep.subr.bf16.mxu0 %v582
    %2993 = vmatpush1.bf16.msra.mxu0 %v581
    %2994 = vmatprep.subr.bf16.mxu0 %v586
    %2995 = vmatpush1.bf16.msra.mxu0 %v585
    %2996 = vmatprep.subr.bf16.mxu0 %v590
    %2997 = vmatpush1.bf16.msra.mxu0 %v589
    %2998 = vmatprep.subr.bf16.mxu0 %v594
    %2999 = vmatpush1.bf16.msra.mxu0 %v593
    %3000 = vmatprep.subr.bf16.mxu0 %v598
    %3001 = vmatpush1.bf16.msra.mxu0 %v597
    %3002 = vmatprep.subr.bf16.mxu0 %v602
    %3003 = vmatpush1.bf16.msra.mxu0 %v601
    %3004 = vmatprep.subr.bf16.mxu0 0
    %3005 = vmatpush1.bf16.msra.mxu0 0
    %3006 = vmatprep.subr.bf16.mxu0 0
    %3007 = vmatpush1.bf16.msra.mxu0 0
    %3008 = vmatprep.subr.bf16.mxu0 0
    %3009 = vmatpush1.bf16.msra.mxu0 0
    %3010 = vmatprep.subr.bf16.mxu0 0
    %3011 = vmatpush1.bf16.msra.mxu0 0
    %3012 = vmatprep.subr.bf16.mxu0 0
    %3013 = vmatpush1.bf16.msra.mxu0 0
    %3014 = vmatprep.subr.bf16.mxu0 0
    %3015 = vmatpush1.bf16.msra.mxu0 0
    %3016 = vmatprep.subr.bf16.mxu0 0
    %3017 = vmatpush1.bf16.msra.mxu0 0
    %3018 = vmatprep.subr.bf16.mxu0 0
    %3019 = vmatpush1.bf16.msra.mxu0 0
    %3020 = vmatprep.mubr.bf16.mxu0 0
    %3021 = vmatmul.mubr.bf16.gmra.mrb[0].mxu0 %v2852
    %v3022 = vpop.f32.mrb[0].mxu0
    %v3023 = vadd.f32 0.0, %v3022
    %v3024 = vpop.f32.mrb[0].mxu0
    %v3025 = vadd.f32 0.0, %v3024
    %v3026 = vpop.f32.mrb[0].mxu0
    %v3027 = vadd.f32 0.0, %v3026
    %v3028 = vpop.f32.mrb[0].mxu0
    %v3029 = vadd.f32 0.0, %v3028
    %3030 = vdwg.mxu0
    %3031 = vmatprep.subr.bf16.mxu0 %v576
    %3032 = vmatpush1.bf16.msra.mxu0 %v575
    %3033 = vmatprep.subr.bf16.mxu0 %v580
    %3034 = vmatpush1.bf16.msra.mxu0 %v579
    %3035 = vmatprep.subr.bf16.mxu0 %v584
    %3036 = vmatpush1.bf16.msra.mxu0 %v583
    %3037 = vmatprep.subr.bf16.mxu0 %v588
    %3038 = vmatpush1.bf16.msra.mxu0 %v587
    %3039 = vmatprep.subr.bf16.mxu0 %v592
    %3040 = vmatpush1.bf16.msra.mxu0 %v591
    %3041 = vmatprep.subr.bf16.mxu0 %v596
    %3042 = vmatpush1.bf16.msra.mxu0 %v595
    %3043 = vmatprep.subr.bf16.mxu0 %v600
    %3044 = vmatpush1.bf16.msra.mxu0 %v599
    %3045 = vmatprep.subr.bf16.mxu0 %v604
    %3046 = vmatpush1.bf16.msra.mxu0 %v603
    %3047 = vmatprep.subr.bf16.mxu0 0
    %3048 = vmatpush1.bf16.msra.mxu0 0
    %3049 = vmatprep.subr.bf16.mxu0 0
    %3050 = vmatpush1.bf16.msra.mxu0 0
    %3051 = vmatprep.subr.bf16.mxu0 0
    %3052 = vmatpush1.bf16.msra.mxu0 0
    %3053 = vmatprep.subr.bf16.mxu0 0
    %3054 = vmatpush1.bf16.msra.mxu0 0
    %3055 = vmatprep.subr.bf16.mxu0 0
    %3056 = vmatpush1.bf16.msra.mxu0 0
    %3057 = vmatprep.subr.bf16.mxu0 0
    %3058 = vmatpush1.bf16.msra.mxu0 0
    %3059 = vmatprep.subr.bf16.mxu0 0
    %3060 = vmatpush1.bf16.msra.mxu0 0
    %3061 = vmatprep.subr.bf16.mxu0 0
    %3062 = vmatpush1.bf16.msra.mxu0 0
    %3063 = vmatprep.mubr.bf16.mxu0 0
    %3064 = vmatmul.mubr.bf16.gmra.mrb[0].mxu0 %v2852
    %v3065 = vpop.f32.mrb[0].mxu0
    %v3066 = vadd.f32 0.0, %v3065
    %v3067 = vpop.f32.mrb[0].mxu0
    %v3068 = vadd.f32 0.0, %v3067
    %v3069 = vpop.f32.mrb[0].mxu0
    %v3070 = vadd.f32 0.0, %v3069
    %v3071 = vpop.f32.mrb[0].mxu0
    %v3072 = vadd.f32 0.0, %v3071
    %3073 = vdwg.mxu0
    %v3074 = vadd.f32 %v324, %v3023
    %v3075 = vadd.f32 %v326, %v3025
    %v3076 = vadd.f32 %v437, %v3066
    %v3077 = vadd.f32 %v439, %v3068
    %v3078 = vadd.f32 %v328, %v3027
    %v3079 = vadd.f32 %v330, %v3029
    %v3080 = vadd.f32 %v441, %v3070
    %v3081 = vadd.f32 %v443, %v3072
    %v3082 = vxor.u32 %v3074, 2147483648
    %v3083 = vxor.u32 %v3078, 2147483648
    %v3084 = vmul.f32 %v3082, 1.442695
    %v3085 = vpow.pop %v3084
    %v3086 = vmul.f32 %v3083, 1.442695
    %v3087 = vpow.pop %v3086
    %v3088 = vadd.f32 %v3085, 1.0
    %v3089 = vadd.f32 %v3087, 1.0
    %v3090 = vrcp.pop %v3088
    %v3091 = vmul.f32 1.0, %v3090
    %v3092 = vrcp.pop %v3089
    %v3093 = vmul.f32 1.0, %v3092
    %v3094 = vxor.u32 %v3075, 2147483648
    %v3095 = vxor.u32 %v3079, 2147483648
    %v3096 = vmul.f32 %v3094, 1.442695
    %v3097 = vpow.pop %v3096
    %v3098 = vmul.f32 %v3095, 1.442695
    %v3099 = vpow.pop %v3098
    %v3100 = vadd.f32 %v3097, 1.0
    %v3101 = vadd.f32 %v3099, 1.0
    %v3102 = vrcp.pop %v3100
    %v3103 = vmul.f32 1.0, %v3102
    %v3104 = vrcp.pop %v3101
    %v3105 = vmul.f32 1.0, %v3104
    %v3106 = vtanh.pop %v3076
    %v3107 = vtanh.pop %v3080
    %v3108 = vxor.u32 %v3077, 2147483648
    %v3109 = vxor.u32 %v3081, 2147483648
    %v3110 = vmul.f32 %v3108, 1.442695
    %v3111 = vpow.pop %v3110
    %v3112 = vmul.f32 %v3109, 1.442695
    %v3113 = vpow.pop %v3112
    %v3114 = vadd.f32 %v3111, 1.0
    %v3115 = vadd.f32 %v3113, 1.0
    %v3116 = vrcp.pop %v3114
    %v3117 = vmul.f32 1.0, %v3116
    %v3118 = vrcp.pop %v3115
    %v3119 = vmul.f32 1.0, %v3118
    %v3120 = vmul.f32 %v3103, %v2846
    %v3121 = vmul.f32 %v3105, %v2847
    %v3122 = vmul.f32 %v3091, %v3106
    %v3123 = vmul.f32 %v3093, %v3107
    %v3124 = vadd.f32 %v3120, %v3122
    %v3125 = vadd.f32 %v3121, %v3123
    %v3126 = vtanh.pop %v3124
    %v3127 = vtanh.pop %v3125
    %v3128 = vmul.f32 %v3117, %v3126
    %v3129 = vmul.f32 %v3119, %v3127
    %v3130 = vpack.c.bf16 %v3129, %v3128
    %v3131 = vpack.c.bf16 %v2987, %v2986
    %3132 = vmatprep.subr.bf16.mxu0 %v1059
    %3133 = vmatpush1.bf16.msra.mxu0 %v1058
    %3134 = vmatprep.subr.bf16.mxu0 %v1063
    %3135 = vmatpush1.bf16.msra.mxu0 %v1062
    %3136 = vmatprep.subr.bf16.mxu0 %v1067
    %3137 = vmatpush1.bf16.msra.mxu0 %v1066
    %3138 = vmatprep.subr.bf16.mxu0 %v1071
    %3139 = vmatpush1.bf16.msra.mxu0 %v1070
    %3140 = vmatprep.subr.bf16.mxu0 %v1075
    %3141 = vmatpush1.bf16.msra.mxu0 %v1074
    %3142 = vmatprep.subr.bf16.mxu0 %v1079
    %3143 = vmatpush1.bf16.msra.mxu0 %v1078
    %3144 = vmatprep.subr.bf16.mxu0 %v1083
    %3145 = vmatpush1.bf16.msra.mxu0 %v1082
    %3146 = vmatprep.subr.bf16.mxu0 %v1087
    %3147 = vmatpush1.bf16.msra.mxu0 %v1086
    %3148 = vmatprep.subr.bf16.mxu0 %v1091
    %3149 = vmatpush1.bf16.msra.mxu0 %v1090
    %3150 = vmatprep.subr.bf16.mxu0 %v1095
    %3151 = vmatpush1.bf16.msra.mxu0 %v1094
    %3152 = vmatprep.subr.bf16.mxu0 %v1099
    %3153 = vmatpush1.bf16.msra.mxu0 %v1098
    %3154 = vmatprep.subr.bf16.mxu0 %v1103
    %3155 = vmatpush1.bf16.msra.mxu0 %v1102
    %3156 = vmatprep.subr.bf16.mxu0 %v1107
    %3157 = vmatpush1.bf16.msra.mxu0 %v1106
    %3158 = vmatprep.subr.bf16.mxu0 %v1111
    %3159 = vmatpush1.bf16.msra.mxu0 %v1110
    %3160 = vmatprep.subr.bf16.mxu0 %v1115
    %3161 = vmatpush1.bf16.msra.mxu0 %v1114
    %3162 = vmatprep.subr.bf16.mxu0 %v1119
    %3163 = vmatpush1.bf16.msra.mxu0 %v1118
    %3164 = vmatprep.mubr.bf16.mxu0 %v3131
    %3165 = vmatmul.mubr.bf16.gmra.mrb[0].mxu0 %v3130
    %v3166 = vpop.f32.mrb[0].mxu0
    %v3167 = vadd.f32 %v849, %v3166
    %v3168 = vpop.f32.mrb[0].mxu0
    %v3169 = vadd.f32 %v853, %v3168
    %v3170 = vpop.f32.mrb[0].mxu0
    %v3171 = vadd.f32 %v849, %v3170
    %v3172 = vpop.f32.mrb[0].mxu0
    %v3173 = vadd.f32 %v853, %v3172
    %3174 = vdwg.mxu0
    %3175 = vmatprep.subr.bf16.mxu0 %v1061
    %3176 = vmatpush1.bf16.msra.mxu0 %v1060
    %3177 = vmatprep.subr.bf16.mxu0 %v1065
    %3178 = vmatpush1.bf16.msra.mxu0 %v1064
    %3179 = vmatprep.subr.bf16.mxu0 %v1069
    %3180 = vmatpush1.bf16.msra.mxu0 %v1068
    %3181 = vmatprep.subr.bf16.mxu0 %v1073
    %3182 = vmatpush1.bf16.msra.mxu0 %v1072
    %3183 = vmatprep.subr.bf16.mxu0 %v1077
    %3184 = vmatpush1.bf16.msra.mxu0 %v1076
    %3185 = vmatprep.subr.bf16.mxu0 %v1081
    %3186 = vmatpush1.bf16.msra.mxu0 %v1080
    %3187 = vmatprep.subr.bf16.mxu0 %v1085
    %3188 = vmatpush1.bf16.msra.mxu0 %v1084
    %3189 = vmatprep.subr.bf16.mxu0 %v1089
    %3190 = vmatpush1.bf16.msra.mxu0 %v1088
    %3191 = vmatprep.subr.bf16.mxu0 %v1093
    %3192 = vmatpush1.bf16.msra.mxu0 %v1092
    %3193 = vmatprep.subr.bf16.mxu0 %v1097
    %3194 = vmatpush1.bf16.msra.mxu0 %v1096
    %3195 = vmatprep.subr.bf16.mxu0 %v1101
    %3196 = vmatpush1.bf16.msra.mxu0 %v1100
    %3197 = vmatprep.subr.bf16.mxu0 %v1105
    %3198 = vmatpush1.bf16.msra.mxu0 %v1104
    %3199 = vmatprep.subr.bf16.mxu0 %v1109
    %3200 = vmatpush1.bf16.msra.mxu0 %v1108
    %3201 = vmatprep.subr.bf16.mxu0 %v1113
    %3202 = vmatpush1.bf16.msra.mxu0 %v1112
    %3203 = vmatprep.subr.bf16.mxu0 %v1117
    %3204 = vmatpush1.bf16.msra.mxu0 %v1116
    %3205 = vmatprep.subr.bf16.mxu0 %v1121
    %3206 = vmatpush1.bf16.msra.mxu0 %v1120
    %3207 = vmatprep.mubr.bf16.mxu0 %v3131
    %3208 = vmatmul.mubr.bf16.gmra.mrb[0].mxu0 %v3130
    %v3209 = vpop.f32.mrb[0].mxu0
    %v3210 = vadd.f32 %v857, %v3209
    %v3211 = vpop.f32.mrb[0].mxu0
    %v3212 = vadd.f32 %v861, %v3211
    %v3213 = vpop.f32.mrb[0].mxu0
    %v3214 = vadd.f32 %v857, %v3213
    %v3215 = vpop.f32.mrb[0].mxu0
    %v3216 = vadd.f32 %v861, %v3215
    %3217 = vdwg.mxu0
    %v3218 = vxor.u32 %v3167, 2147483648
    %v3219 = vxor.u32 %v3171, 2147483648
    %v3220 = vmul.f32 %v3218, 1.442695
    %v3221 = vpow.pop %v3220
    %v3222 = vmul.f32 %v3219, 1.442695
    %v3223 = vpow.pop %v3222
    %v3224 = vadd.f32 %v3221, 1.0
    %v3225 = vadd.f32 %v3223, 1.0
    %v3226 = vrcp.pop %v3224
    %v3227 = vmul.f32 1.0, %v3226
    %v3228 = vrcp.pop %v3225
    %v3229 = vmul.f32 1.0, %v3228
    %v3230 = vxor.u32 %v3169, 2147483648
    %v3231 = vxor.u32 %v3173, 2147483648
    %v3232 = vmul.f32 %v3230, 1.442695
    %v3233 = vpow.pop %v3232
    %v3234 = vmul.f32 %v3231, 1.442695
    %v3235 = vpow.pop %v3234
    %v3236 = vadd.f32 %v3233, 1.0
    %v3237 = vadd.f32 %v3235, 1.0
    %v3238 = vrcp.pop %v3236
    %v3239 = vmul.f32 1.0, %v3238
    %v3240 = vrcp.pop %v3237
    %v3241 = vmul.f32 1.0, %v3240
    %v3242 = vtanh.pop %v3210
    %v3243 = vtanh.pop %v3214
    %v3244 = vxor.u32 %v3212, 2147483648
    %v3245 = vxor.u32 %v3216, 2147483648
    %v3246 = vmul.f32 %v3244, 1.442695
    %v3247 = vpow.pop %v3246
    %v3248 = vmul.f32 %v3245, 1.442695
    %v3249 = vpow.pop %v3248
    %v3250 = vadd.f32 %v3247, 1.0
    %v3251 = vadd.f32 %v3249, 1.0
    %v3252 = vrcp.pop %v3250
    %v3253 = vmul.f32 1.0, %v3252
    %v3254 = vrcp.pop %v3251
    %v3255 = vmul.f32 1.0, %v3254
    %v3256 = vmul.f32 %v3239, %v2982
    %v3257 = vmul.f32 %v3241, %v2983
    %v3258 = vmul.f32 %v3227, %v3242
    %v3259 = vmul.f32 %v3229, %v3243
    %v3260 = vadd.f32 %v3256, %v3258
    %v3261 = vadd.f32 %v3257, %v3259
    %v3262 = vtanh.pop %v3260
    %v3263 = vtanh.pop %v3261
    %v3264 = vmul.f32 %v3253, %v3262
    %v3265 = vmul.f32 %v3255, %v3263
    %v3266 = vpack.c.bf16 %v3265, %v3264
    %v3267 = vld [vmem:[#allocation10] sm:$0xf]
    %v3268 = vld [vmem:[#allocation10 + $0x4] sm:$0xf]
    %v3269 = vld [vmem:[#allocation10 + $0x8] sm:$0xf]
    %v3270 = vld [vmem:[#allocation10 + $0xc] sm:$0xf]
    %v3271 = vld [vmem:[#allocation10 + $0x10] sm:$0xf]
    %v3272 = vld [vmem:[#allocation10 + $0x14] sm:$0xf]
    %v3273 = vld [vmem:[#allocation10 + $0x18] sm:$0xf]
    %v3274 = vld [vmem:[#allocation10 + $0x1c] sm:$0xf]
    %v3275 = vld [vmem:[#allocation10 + $0x20] sm:$0xf]
    %v3276 = vld [vmem:[#allocation10 + $0x24] sm:$0xf]
    %v3277 = vld [vmem:[#allocation10 + $0x28] sm:$0xf]
    %v3278 = vld [vmem:[#allocation10 + $0x2c] sm:$0xf]
    %v3279 = vld [vmem:[#allocation10 + $0x30] sm:$0xf]
    %v3280 = vld [vmem:[#allocation10 + $0x34] sm:$0xf]
    %v3281 = vld [vmem:[#allocation10 + $0x38] sm:$0xf]
    %v3282 = vld [vmem:[#allocation10 + $0x3c] sm:$0xf]
    %v3283 = vld [vmem:[%s7] sm:$0x1]
    %v3285 = vlaneseq
    %v3286 = vshrl.u32 %v3285, 7
    %v3287 = vsub.s32 0, %v3286
    %v3288 = vrot.slane %v3283, %v3287
    %v3306 = vunpack.c.l.b16 %v3267
    %v3307 = vunpack.c.l.b16 %v3268
    %v3308 = vunpack.c.l.b16 %v3269
    %v3309 = vunpack.c.l.b16 %v3270
    %v3310 = vunpack.c.l.b16 %v3271
    %v3311 = vunpack.c.l.b16 %v3272
    %v3312 = vunpack.c.l.b16 %v3273
    %v3313 = vunpack.c.l.b16 %v3274
    %v3314 = vunpack.c.l.b16 %v3275
    %v3315 = vunpack.c.l.b16 %v3276
    %v3316 = vunpack.c.l.b16 %v3277
    %v3317 = vunpack.c.l.b16 %v3278
    %v3318 = vunpack.c.l.b16 %v3279
    %v3319 = vunpack.c.l.b16 %v3280
    %v3320 = vunpack.c.l.b16 %v3281
    %v3321 = vunpack.c.l.b16 %v3282
    %v3322 = vpack.c.b16 %v3307, %v3306
    %v3323 = vpack.c.b16 %v3309, %v3308
    %v3324 = vpack.c.b16 %v3311, %v3310
    %v3325 = vpack.c.b16 %v3313, %v3312
    %v3326 = vpack.c.b16 %v3315, %v3314
    %v3327 = vpack.c.b16 %v3317, %v3316
    %v3328 = vpack.c.b16 %v3319, %v3318
    %v3329 = vpack.c.b16 %v3321, %v3320
    %3338 = vmatprep.subr.bf16.mxu0 0
    %3339 = vmatpush1.bf16.msra.mxu0 %v3322
    %3340 = vmatprep.subr.bf16.mxu0 0
    %3341 = vmatpush1.bf16.msra.mxu0 %v3323
    %3342 = vmatprep.subr.bf16.mxu0 0
    %3343 = vmatpush1.bf16.msra.mxu0 %v3324
    %3344 = vmatprep.subr.bf16.mxu0 0
    %3345 = vmatpush1.bf16.msra.mxu0 %v3325
    %3346 = vmatprep.subr.bf16.mxu0 0
    %3347 = vmatpush1.bf16.msra.mxu0 %v3326
    %3348 = vmatprep.subr.bf16.mxu0 0
    %3349 = vmatpush1.bf16.msra.mxu0 %v3327
    %3350 = vmatprep.subr.bf16.mxu0 0
    %3351 = vmatpush1.bf16.msra.mxu0 %v3328
    %3352 = vmatprep.subr.bf16.mxu0 0
    %3353 = vmatpush1.bf16.msra.mxu0 %v3329
    %3354 = vmatprep.subr.bf16.mxu0 0
    %3355 = vmatpush1.bf16.msra.mxu0 0
    %3356 = vmatprep.subr.bf16.mxu0 0
    %3357 = vmatpush1.bf16.msra.mxu0 0
    %3358 = vmatprep.subr.bf16.mxu0 0
    %3359 = vmatpush1.bf16.msra.mxu0 0
    %3360 = vmatprep.subr.bf16.mxu0 0
    %3361 = vmatpush1.bf16.msra.mxu0 0
    %3362 = vmatprep.subr.bf16.mxu0 0
    %3363 = vmatpush1.bf16.msra.mxu0 0
    %3364 = vmatprep.subr.bf16.mxu0 0
    %3365 = vmatpush1.bf16.msra.mxu0 0
    %3366 = vmatprep.subr.bf16.mxu0 0
    %3367 = vmatpush1.bf16.msra.mxu0 0
    %3368 = vmatprep.subr.bf16.mxu0 0
    %3369 = vmatpush1.bf16.msra.mxu0 0
    %3370 = vmatprep.mubr.bf16.mxu0 0
    %3371 = vmatmul.mubr.bf16.gmra.mrb[0].mxu0 %v3266
    %v3372 = vpop.f32.mrb[0].mxu0
    %v3373 = vadd.f32 %v3288, %v3372
    %v3374 = vpop.f32.mrb[0].mxu0
    %v3375 = vpop.f32.mrb[0].mxu0
    %v3376 = vadd.f32 %v3288, %v3375
    %v3377 = vpop.f32.mrb[0].mxu0
    %3378 = vdwg.mxu0
    %3379 = vmax.xlane.f32.xlu0 %v3373
    %v3380 = vpop.xlane.xlu0 %3379
    %3381 = vmax.xlane.f32.xlu0 %v3376
    %v3382 = vpop.xlane.xlu0 %3381
    %v3383 = vsub.f32 %v3373, %v3380
    %v3384 = vsub.f32 %v3376, %v3382
    %v3385 = vmul.f32 %v3383, 1.442695
    %v3386 = vpow.pop %v3385
    %v3387 = vmul.f32 %v3384, 1.442695
    %v3388 = vpow.pop %v3387
    %3389 = vadd.xlane.f32.xlu0 %v3386
    %v3390 = vpop.xlane.xlu0 %3389
    %3391 = vadd.xlane.f32.xlu0 %v3388
    %v3392 = vpop.xlane.xlu0 %3391
    %v3393 = vlog2.pop %v3390
    %v3394 = vmul.f32 %v3393, 0.6931472
    %v3395 = vlog2.pop %v3392
    %v3396 = vmul.f32 %v3395, 0.6931472
    %v3397 = vadd.f32 %v3380, %v3394
    %v3398 = vadd.f32 %v3382, %v3396
    %v3399 = vsub.f32 %v3373, %v3397
    %v3400 = vsub.f32 %v3376, %v3398
    %3401 = vst [vmem:[#allocation11] sm:$0xff] %v3399
    %3402 = vst [vmem:[#allocation11 + $0x8] sm:$0xff] %v3400
    // Predicated region
    $region54: #{tpu_custom_call.1} parent=1 // pred_check
      _
    $region55: #{tpu_custom_call.1} parent=1 // pred_check_branch
      %3404 = sbr.rel (0) target = $region57
    $region56: #{tpu_custom_call.1} parent=1 // pred_region
      %s3406 = ssub.s32 256, 256
      %3407 = vsyncadd [#allocation4], %s3406
      %s3408 = sshll.u32 [#allocation11], 4
      %s3409 = int_to_ptr.vmem [resolvable:$true] %s3408
      %3414 = dma.vmem_to_hbm [thread:$0]  %s3409, 256, %s8, [#allocation4], 128, 128, 8
    $region57: #{tpu_custom_call.1} parent=1 // pred_fallthru
      _
    // Predicated region
    $region58: #{tpu_custom_call.1} parent=1 // pred_check
      _
    $region59: #{tpu_custom_call.1} parent=1 // pred_check_branch
      %3416 = sbr.rel (0) target = $region61
    $region60: #{tpu_custom_call.1} parent=1 // pred_region
      %3417 = dma.done [#allocation4], 256
    $region61: #{tpu_custom_call.1} parent=1 // pred_fallthru
      _
    %3418 = vsyncpa [#allocation3], 1
    %3419 = vsyncpa [#allocation6], 1
    %3420 = vsyncpa [#allocation9], 1
    %3421 = vsyncpa [#allocation4], 1

</llo_original>
